<compile_context>
chip_gen: v7x
topology: tpu7x:2x2x1
jax: 0.10.0
libtpu: 0.0.40
codegen_flags: <defaults>
</compile_context>

<pallas_src>
import math
from functools import partial

import jax
import jax.numpy as jnp
from jax.experimental import pallas as pl
from jax.experimental.pallas import tpu as pltpu


# ----------------------------------------------------------------------------
# helpers
# ----------------------------------------------------------------------------
def _round_up(n, m):
    return ((n + m - 1) // m) * m


_INV_SQRT2 = 1.0 / math.sqrt(2.0)


def _erf_poly(z, approx_recip):
    """erf via Abramowitz & Stegun 7.1.26 (max abs err ~1.5e-7). exp/mul/add only."""
    a1, a2, a3, a4, a5 = (0.254829592, -0.284496736, 1.421413741,
                          -1.453152027, 1.061405429)
    p = 0.3275911
    az = jnp.abs(z)
    q = 1.0 + p * az
    if approx_recip:
        t = pl.reciprocal(q, approx=True)     # EUP slot: nearly free vs. f32 divide
    else:
        t = 1.0 / q
    poly = ((((a5 * t + a4) * t + a3) * t + a2) * t + a1) * t
    y = 1.0 - poly * jnp.exp(-az * az)
    return jnp.where(z >= 0, y, -y)


def _gelu_exact(x, approx_recip):
    """PyTorch nn.GELU() (erf form)."""
    return (0.5 * x) * (1.0 + _erf_poly(x * _INV_SQRT2, approx_recip))


# ----------------------------------------------------------------------------
# fused FeedForward kernel:  o = GELU(x @ W1 + b1) @ W2 + b2
# grid = (row tiles [parallel], hidden tiles [arbitrary / reduction for matmul #2])
# ----------------------------------------------------------------------------
def _ffn_kernel(x_ref, w1_ref, b1_ref, w2_ref, b2_ref, o_ref, *scratch,
                approx_recip, n_h):
    h = jnp.dot(x_ref[...], w1_ref[...],
                preferred_element_type=jnp.float32) + b1_ref[...]
    h = _gelu_exact(h, approx_recip)
    # TODO(synk): dropout is identity here (inference / p effectively 0).
    part = jnp.dot(h.astype(w2_ref.dtype), w2_ref[...],
                   preferred_element_type=jnp.float32)

    if n_h == 1:
        # Weights fully resident: single k step, write output directly.
        o_ref[...] = (part + b2_ref[...]).astype(o_ref.dtype)
    else:
        acc_ref = scratch[0]
        k = pl.program_id(1)

        @pl.when(k == 0)
        def _():
            acc_ref[...] = jnp.zeros_like(acc_ref)

        acc_ref[...] += part

        @pl.when(k == n_h - 1)
        def _():
            o_ref[...] = (acc_ref[...] + b2_ref[...]).astype(o_ref.dtype)


def _spec(shape, imap, single_buffered=False):
    """BlockSpec; constant-index operands get single-buffering (halved VMEM footprint)."""
    if single_buffered and hasattr(pl, "Buffered"):
        try:
            return pl.BlockSpec(shape, imap, pipeline_mode=pl.Buffered(1))
        except TypeError:
            pass
    return pl.BlockSpec(shape, imap)


# ----------------------------------------------------------------------------
# wrapper
# ----------------------------------------------------------------------------
def feedforward(x, w1, b1, w2, b2, *, block_rows=512, use_bf16=False,
                hidden_block=None, out_dtype=None,
                vmem_budget_bytes=40 * 2**20):
    """FeedForward forward pass (dropout = identity).

    x: (..., dim); w1: (dim, hidden); b1: (hidden,); w2: (hidden, dim); b2: (dim,).
    use_bf16: stream x / hold weights as bf16 MXU operands (f32 accumulation).
    hidden_block: force a hidden-dim tile size (else chosen from the VMEM budget).
    """
    orig_shape = x.shape
    dim = int(orig_shape[-1])
    hid = int(w1.shape[1])
    assert w1.shape == (dim, hid) and w2.shape == (hid, dim)
    assert b1.shape == (hid,) and b2.shape == (dim,)

    M = 1
    for s in orig_shape[:-1]:
        M *= int(s)

    compute_dtype = jnp.bfloat16 if use_bf16 else jnp.float32
    out_dtype = x.dtype if out_dtype is None else out_dtype

    # ---- tiling -------------------------------------------------------------
    Dp = _round_up(dim, 128)
    Hp0 = _round_up(hid, 128)
    TM = block_rows if M >= block_rows else max(8, _round_up(M, 8))
    n_m = (M + TM - 1) // TM

    w_item = 2 if use_bf16 else 4
    x_item = w_item                       # x streamed at compute width
    o_item = jnp.dtype(out_dtype).itemsize

    def _vmem_need(TH, n_wbuf):
        return (n_wbuf * (2 * Dp * TH) * w_item        # W1 / W2 blocks
                + n_wbuf * TH * 4 + Dp * 4             # biases (f32)
                + 2 * TM * Dp * x_item                 # x (double-buffered)
                + 2 * TM * Dp * o_item                 # out (double-buffered)
                + TM * TH * 4                          # hidden activation (f32)
                + (TM * Dp * 4 if TH < Hp0 else 0))    # accumulator scratch

    if hidden_block is not None:
        TH = min(_round_up(int(hidden_block), 128), Hp0)
    elif _vmem_need(Hp0, 1) <= vmem_budget_bytes:
        TH = Hp0                                       # weights fully resident
    else:
        TH = Hp0
        while TH > 128 and _vmem_need(TH, 2) > vmem_budget_bytes:
            TH -= 128
    Hp = _round_up(hid, TH)   # hidden padded to a multiple of TH (zero pads are exact)
    n_h = Hp // TH
    resident_w = (n_h == 1)

    # ---- cast + pad operands ONCE in the wrapper ----------------------------
    x2 = x.reshape(M, dim)
    if x2.dtype != compute_dtype:
        x2 = x2.astype(compute_dtype)
    if Dp != dim:
        x2 = jnp.pad(x2, ((0, 0), (0, Dp - dim)))

    w1p = w1.astype(compute_dtype)
    w2p = w2.astype(compute_dtype)
    if (Dp, Hp) != (dim, hid):
        w1p = jnp.pad(w1p, ((0, Dp - dim), (0, Hp - hid)))
        w2p = jnp.pad(w2p, ((0, Hp - hid), (0, Dp - dim)))
    b1p = jnp.pad(b1.astype(jnp.float32), (0, Hp - hid)).reshape(1, Hp)
    b2p = jnp.pad(b2.astype(jnp.float32), (0, Dp - dim)).reshape(1, Dp)

    in_specs = [
        pl.BlockSpec((TM, Dp), lambda i, k: (i, 0)),        # x rows (revisited across k)
        _spec((Dp, TH), lambda i, k: (0, k), resident_w),   # W1 column block
        _spec((1, TH), lambda i, k: (0, k), resident_w),    # b1 block
        _spec((TH, Dp), lambda i, k: (k, 0), resident_w),   # W2 row block
        _spec((1, Dp), lambda i, k: (0, 0), True),          # b2: always resident
    ]
    out_spec = pl.BlockSpec((TM, Dp), lambda i, k: (i, 0))
    scratch = [] if n_h == 1 else [pltpu.VMEM((TM, Dp), jnp.float32)]

    vmem_limit = int(min(64 * 2**20,
                         max(32 * 2**20,
                             (_vmem_need(TH, 1 if resident_w else 2) * 3) // 2)))

    out = pl.pallas_call(
        partial(_ffn_kernel, approx_recip=use_bf16, n_h=n_h),
        out_shape=jax.ShapeDtypeStruct((M, Dp), out_dtype),
        grid=(n_m, n_h),
        in_specs=in_specs,
        out_specs=out_spec,
        scratch_shapes=scratch,
        compiler_params=pltpu.CompilerParams(
            dimension_semantics=("parallel", "arbitrary"),
            vmem_limit_bytes=vmem_limit),
    )(x2, w1p, b1p, w2p, b2p)

    if Dp != dim:
        out = out[:, :dim]
    return out.reshape(orig_shape)


# ----------------------------------------------------------------------------
# pure-JAX reference (exact erf GELU, dropout = identity)
# ----------------------------------------------------------------------------
def feedforward_ref(x, w1, b1, w2, b2):
    h = x.astype(jnp.float32) @ w1 + b1
    h = 0.5 * h * (1.0 + jax.lax.erf(h / jnp.sqrt(2.0).astype(jnp.float32)))
    return h @ w2 + b2


def _init_linear(key, fan_in, fan_out):
    kw, kb = jax.random.split(key)
    bound = 1.0 / math.sqrt(fan_in)
    w = jax.random.uniform(kw, (fan_in, fan_out), jnp.float32, -bound, bound)
    b = jax.random.uniform(kb, (fan_out,), jnp.float32, -bound, bound)
    return w, b


def _run_case(key, B, L, dim, hidden, **kw):
    k1, k2, k3 = jax.random.split(key, 3)
    w1, b1 = _init_linear(k1, dim, hidden)
    w2, b2 = _init_linear(k2, hidden, dim)
    x = jax.random.normal(k3, (B, L, dim), jnp.float32)
    out = jax.block_until_ready(jax.jit(partial(feedforward, **kw))(x, w1, b1, w2, b2))
    ref = feedforward_ref(x, w1, b1, w2, b2)
    return x, out, ref


# ----------------------------------------------------------------------------
if __name__ == "__main__":
    key = jax.random.PRNGKey(0)
    k1, k2, k3, k4, k5 = jax.random.split(key, 5)

    # ---- case 1: lane-native shapes, multiple row tiles, f32 exact path -----
    x, out, ref = _run_case(k1, 2, 512, 128, 256)
    assert out.shape == x.shape and out.dtype == jnp.float32
    assert bool(jnp.all(jnp.isfinite(out)))
    assert bool(jnp.allclose(out, ref, atol=2e-4, rtol=2e-4))

    # ---- case 2: small non-aligned dim (exercises lane-padding path) --------
    x, out, ref = _run_case(k2, 2, 40, 32, 32)   # FeedForward default: hidden = dim
    assert out.shape == x.shape
    assert bool(jnp.all(jnp.isfinite(out)))
    assert bool(jnp.allclose(out, ref, atol=2e-4, rtol=2e-4))

    # ---- case 3: forced hidden-dim tiling (accumulator / reduction path) ----
    x, out, ref = _run_case(k3, 2, 256, 128, 384, hidden_block=128)
    assert out.shape == x.shape
    assert bool(jnp.all(jnp.isfinite(out)))
    assert bool(jnp.allclose(out, ref, atol=2e-4, rtol=2e-4))

    # ---- case 4: ragged last row block (M % TM != 0, no row padding) --------
    x, out, ref = _run_case(k4, 2, 300, 128, 256, block_rows=256)
    assert out.shape == x.shape
    assert bool(jnp.all(jnp.isfinite(out)))
    assert bool(jnp.allclose(out, ref, atol=2e-4, rtol=2e-4))

    # ---- case 5: bf16 MXU operands (wrapper-cast), relaxed tolerance --------
    x, out, ref = _run_case(k5, 2, 256, 128, 256, use_bf16=True)
    assert out.shape == x.shape
    assert bool(jnp.all(jnp.isfinite(out)))
    assert bool(jnp.allclose(out, ref, atol=3e-2, rtol=3e-2))

    print("KERNEL_OK")
</pallas_src>

<mosaic_0001>
module attributes {stable_mosaic.version = 11 : i64} {
  func.func @_ffn_kernel(%arg0: i32, %arg1: i32, %arg2: memref<512x128xf32, #tpu.memory_space<vmem>>, %arg3: memref<128x256xf32, #tpu.memory_space<vmem>>, %arg4: memref<1x256xf32, #tpu.memory_space<vmem>>, %arg5: memref<256x128xf32, #tpu.memory_space<vmem>>, %arg6: memref<1x128xf32, #tpu.memory_space<vmem>>, %arg7: memref<512x128xf32, #tpu.memory_space<vmem>>) attributes {dimension_semantics = [#tpu.dimension_semantics<parallel>, #tpu.dimension_semantics<arbitrary>], iteration_bounds = array<i64: 2, 1>, scalar_prefetch = 0 : i64, scratch_operands = 0 : i64, tpu.core_type = #tpu.core_type<tc>, window_params = [{transform_indices = @transform_0, window_bounds = array<i64: 512, 128>}, {pipeline_mode = #tpu.pipeline_mode<synchronous>, transform_indices = @transform_1, window_bounds = array<i64: 128, 256>}, {pipeline_mode = #tpu.pipeline_mode<synchronous>, transform_indices = @transform_2, window_bounds = array<i64: 1, 256>}, {pipeline_mode = #tpu.pipeline_mode<synchronous>, transform_indices = @transform_3, window_bounds = array<i64: 256, 128>}, {pipeline_mode = #tpu.pipeline_mode<synchronous>, transform_indices = @transform_4, window_bounds = array<i64: 1, 128>}, {transform_indices = @transform_5, window_bounds = array<i64: 512, 128>}]} {
    %c0 = arith.constant 0 : index
    %c0_0 = arith.constant 0 : index
    %0 = vector.load %arg2[%c0, %c0_0] : memref<512x128xf32, #tpu.memory_space<vmem>>, vector<512x128xf32>
    %c0_1 = arith.constant 0 : index
    %c0_2 = arith.constant 0 : index
    %1 = vector.load %arg3[%c0_1, %c0_2] : memref<128x256xf32, #tpu.memory_space<vmem>>, vector<128x256xf32>
    %cst = arith.constant dense<0.000000e+00> : vector<512x256xf32>
    %2 = tpu.matmul %0, %1, %cst {dimension_numbers = #tpu.dot_dimension_numbers<[1], [0], [0], [1], [0, 0, 1, 1], [], []>} : vector<512x128xf32>, vector<128x256xf32>, vector<512x256xf32> -> vector<512x256xf32>
    %c0_3 = arith.constant 0 : index
    %c0_4 = arith.constant 0 : index
    %3 = vector.load %arg4[%c0_3, %c0_4] : memref<1x256xf32, #tpu.memory_space<vmem>>, vector<1x256xf32>
    %4 = vector.broadcast %3 : vector<1x256xf32> to vector<512x256xf32>
    %5 = arith.addf %2, %4 : vector<512x256xf32>
    %cst_5 = arith.constant 5.000000e-01 : f32
    %6 = vector.broadcast %cst_5 : f32 to vector<512x256xf32>
    %7 = arith.mulf %6, %5 : vector<512x256xf32>
    %cst_6 = arith.constant 0.707106769 : f32
    %8 = vector.broadcast %cst_6 : f32 to vector<512x256xf32>
    %9 = arith.mulf %5, %8 : vector<512x256xf32>
    %10 = math.absf %9 : vector<512x256xf32>
    %cst_7 = arith.constant 0.327591091 : f32
    %11 = vector.broadcast %cst_7 : f32 to vector<512x256xf32>
    %12 = arith.mulf %11, %10 : vector<512x256xf32>
    %cst_8 = arith.constant 1.000000e+00 : f32
    %13 = vector.broadcast %cst_8 : f32 to vector<512x256xf32>
    %14 = arith.addf %13, %12 : vector<512x256xf32>
    %cst_9 = arith.constant 1.000000e+00 : f32
    %15 = vector.broadcast %cst_9 : f32 to vector<512x256xf32>
    %16 = arith.divf %15, %14 : vector<512x256xf32>
    %cst_10 = arith.constant 1.06140542 : f32
    %17 = vector.broadcast %cst_10 : f32 to vector<512x256xf32>
    %18 = arith.mulf %17, %16 : vector<512x256xf32>
    %cst_11 = arith.constant -1.45315206 : f32
    %19 = vector.broadcast %cst_11 : f32 to vector<512x256xf32>
    %20 = arith.addf %18, %19 : vector<512x256xf32>
    %21 = arith.mulf %20, %16 : vector<512x256xf32>
    %cst_12 = arith.constant 1.42141378 : f32
    %22 = vector.broadcast %cst_12 : f32 to vector<512x256xf32>
    %23 = arith.addf %21, %22 : vector<512x256xf32>
    %24 = arith.mulf %23, %16 : vector<512x256xf32>
    %cst_13 = arith.constant -0.284496725 : f32
    %25 = vector.broadcast %cst_13 : f32 to vector<512x256xf32>
    %26 = arith.addf %24, %25 : vector<512x256xf32>
    %27 = arith.mulf %26, %16 : vector<512x256xf32>
    %cst_14 = arith.constant 0.254829586 : f32
    %28 = vector.broadcast %cst_14 : f32 to vector<512x256xf32>
    %29 = arith.addf %27, %28 : vector<512x256xf32>
    %30 = arith.mulf %29, %16 : vector<512x256xf32>
    %cst_15 = arith.constant 0.000000e+00 : f32
    %31 = vector.broadcast %cst_15 : f32 to vector<512x256xf32>
    %32 = arith.subf %31, %10 : vector<512x256xf32>
    %33 = arith.mulf %32, %10 : vector<512x256xf32>
    %34 = math.exp %33 : vector<512x256xf32>
    %35 = arith.mulf %30, %34 : vector<512x256xf32>
    %cst_16 = arith.constant 1.000000e+00 : f32
    %36 = vector.broadcast %cst_16 : f32 to vector<512x256xf32>
    %37 = arith.subf %36, %35 : vector<512x256xf32>
    %cst_17 = arith.constant 0.000000e+00 : f32
    %38 = vector.broadcast %cst_17 : f32 to vector<512x256xf32>
    %39 = arith.cmpf oge, %9, %38 : vector<512x256xf32>
    %cst_18 = arith.constant 0.000000e+00 : f32
    %40 = vector.broadcast %cst_18 : f32 to vector<512x256xf32>
    %41 = arith.subf %40, %37 : vector<512x256xf32>
    %42 = arith.select %39, %37, %41 : vector<512x256xi1>, vector<512x256xf32>
    %cst_19 = arith.constant 1.000000e+00 : f32
    %43 = vector.broadcast %cst_19 : f32 to vector<512x256xf32>
    %44 = arith.addf %43, %42 : vector<512x256xf32>
    %45 = arith.mulf %7, %44 : vector<512x256xf32>
    %c0_20 = arith.constant 0 : index
    %c0_21 = arith.constant 0 : index
    %46 = vector.load %arg5[%c0_20, %c0_21] : memref<256x128xf32, #tpu.memory_space<vmem>>, vector<256x128xf32>
    %cst_22 = arith.constant dense<0.000000e+00> : vector<512x128xf32>
    %47 = tpu.matmul %45, %46, %cst_22 {dimension_numbers = #tpu.dot_dimension_numbers<[1], [0], [0], [1], [0, 0, 1, 1], [], []>} : vector<512x256xf32>, vector<256x128xf32>, vector<512x128xf32> -> vector<512x128xf32>
    %c0_23 = arith.constant 0 : index
    %c0_24 = arith.constant 0 : index
    %48 = vector.load %arg6[%c0_23, %c0_24] : memref<1x128xf32, #tpu.memory_space<vmem>>, vector<1x128xf32>
    %49 = vector.broadcast %48 : vector<1x128xf32> to vector<512x128xf32>
    %50 = arith.addf %47, %49 : vector<512x128xf32>
    %c0_25 = arith.constant 0 : index
    %c0_26 = arith.constant 0 : index
    %51 = vector.load %arg7[%c0_25, %c0_26] : memref<512x128xf32, #tpu.memory_space<vmem>>, vector<512x128xf32>
    tpu.vector_store %arg7[%c0_25, %c0_26], %50 {strides = array<i32>} : memref<512x128xf32, #tpu.memory_space<vmem>>, vector<512x128xf32>,
    return
  }
  func.func @transform_0(%arg0: i32, %arg1: i32) -> (i32, i32) {
    %c0_i32 = arith.constant 0 : i32
    %c0_i32_0 = arith.constant 0 : i32
    return %arg0, %c0_i32 : i32, i32
  }
  func.func @transform_1(%arg0: i32, %arg1: i32) -> (i32, i32) {
    %c0_i32 = arith.constant 0 : i32
    %c0_i32_0 = arith.constant 0 : i32
    return %c0_i32, %arg1 : i32, i32
  }
  func.func @transform_2(%arg0: i32, %arg1: i32) -> (i32, i32) {
    %c0_i32 = arith.constant 0 : i32
    %c0_i32_0 = arith.constant 0 : i32
    return %c0_i32, %arg1 : i32, i32
  }
  func.func @transform_3(%arg0: i32, %arg1: i32) -> (i32, i32) {
    %c0_i32 = arith.constant 0 : i32
    %c0_i32_0 = arith.constant 0 : i32
    return %arg1, %c0_i32 : i32, i32
  }
  func.func @transform_4(%arg0: i32, %arg1: i32) -> (i32, i32) {
    %c0_i32 = arith.constant 0 : i32
    %c0_i32_0 = arith.constant 0 : i32
    %c0_i32_1 = arith.constant 0 : i32
    return %c0_i32, %c0_i32_0 : i32, i32
  }
  func.func @transform_5(%arg0: i32, %arg1: i32) -> (i32, i32) {
    %c0_i32 = arith.constant 0 : i32
    %c0_i32_0 = arith.constant 0 : i32
    return %arg0, %c0_i32 : i32, i32
  }
}

</mosaic_0001>

<llo_original>
// kernel: feedforward.1
$region0: #{feedforward.1}
  #allocation0 [shape = 'u32[]', space=smem, size = 0x4, offset = 0x4, fixed_abs, tag = 'smem constant byte address 0x4 - core index']
  #allocation1 [shape = 'u32[144,128]{1,0:T(1,128)}', space=vmem, size = 0x12000, scoped, tag = 'internal scratch']
  %s0 = inlined_call_operand.hbm [shape: f32[1024,128], index: 0, kind: input, shape index: {}]
  %s1 = inlined_call_operand.hbm [shape: f32[128,256], index: 1, kind: input, shape index: {}]
  %s2 = inlined_call_operand.vmem [shape: f32[1,256], index: 2, kind: input, shape index: {}]
  %s3 = inlined_call_operand.hbm [shape: f32[256,128], index: 3, kind: input, shape index: {}]
  %s4 = inlined_call_operand.vmem [shape: f32[1,128], index: 4, kind: input, shape index: {}]
  %s5 = inlined_call_operand.hbm [shape: f32[1024,128], index: 5, kind: output, shape index: {}]
  %s6 = sld [smem:[#allocation0]]
  $region65: #{feedforward.1} parent=0
    _
  %s8 = ssub.s32 1, %s6
  %s9 = scalar_select 0, %s8, %s6
  $region1: #{feedforward.1} parent=0
    #allocation2 [shape = 'u8[524288]{0}', space=vmem, size = 0x80000, scoped, tag = 'input window, operand 0']
    #allocation3 [shape = 's32[2]{0}', space=sflag, size = 0x8, scoped, tag = 'scoped memory for feedforward.1']
    #allocation4 [shape = 's32[2]{0}', space=sflag, size = 0x8, scoped, tag = 'scoped memory for feedforward.1']
    #allocation5 [shape = 'u8[131072]{0}', space=vmem, size = 0x20000, scoped, tag = 'input window, operand 1, single buffered']
    #allocation6 [shape = 's32[1]{0}', space=sflag, size = 0x4, scoped, tag = 'scoped memory for feedforward.1']
    #allocation7 [shape = 'u8[131072]{0}', space=vmem, size = 0x20000, scoped, tag = 'input window, operand 3, single buffered']
    #allocation8 [shape = 'u8[524288]{0}', space=vmem, size = 0x80000, scoped, tag = 'output window, operand 0']
    %10 = vsyncpa [#allocation3], 0
    %s11 = scalar_lea.sflag [#allocation3], 1
    %12 = vsyncpa %s11, 0
    %13 = vsyncpa [#allocation6], 0
    %14 = vsyncpa [#allocation4], 0
    %s15 = scalar_lea.sflag [#allocation4], 1
    %16 = vsyncpa %s15, 0
    loop: start=0, step=1, limit=4
    $region2: #{feedforward.1} parent=1 // loop_pre_header
      _
    $region3: #{feedforward.1} parent=1 // loop_header
      %s18 = sphi 0, %s22
      %p19 = scmp.ge.s32.totalorder %s18, 4
      %s25 = sphi 0, %s37
      %s26 = sphi 0, %s33
      %s27 = sphi 0, %s25
      %s28 = sphi 0, %s26
      %s29 = sphi 0, %s27
      %s30 = sphi 0, %s28
      %s40 = sphi 0, %s42
      %s43 = sphi 0, %s40
      %s44 = sphi 0, %s43
      %s60 = sphi 0, %s44
      %s66 = sphi 0, %s68
      %s69 = sphi 0, %s66
      %s70 = sphi 0, %s69
      %s86 = sphi 0, %s70
      %s92 = sphi 0, %s94
      %s95 = sphi 0, %s92
      %s96 = sphi 0, %s95
      %s112 = sphi 0, %s96
      %s118 = sphi 0, %s120
      %s121 = sphi 0, %s118
      %s122 = sphi 0, %s121
      %s138 = sphi 0, %s122
      %s142 = sphi 0, %s142
      %s144 = sphi 0, %s142
      %s145 = sphi 0, %s144
      %s159 = sphi 0, %s145
      %s165 = sphi 0, %s167
      %s168 = sphi 0, %s165
      %s169 = sphi 0, %s168
      %s185 = sphi 0, %s169
    $region4: #{feedforward.1} parent=1 // loop_header_branch
      %21 = sbr.rel (%p19) target = $region8
    $region5: #{feedforward.1} parent=1 // loop_body
      %s23 = ssub.s32 %s18, 1
      %s24 = ssub.s32 %s18, 2
      %s31 = sadd.s32 1, %s26
      %p32 = scmp.ge.s32.totalorder %s31, 1
      %s33 = scalar_select %p32, 0, %s31
      %s34 = sadd.s32 1, %s25
      %s35 = scalar_select %p32, %s34, %s25
      %p36 = scmp.ge.s32.totalorder %s35, 2
      %s37 = scalar_select %p36, 0, %s35
      %s38 = ssub.s32 %s25, %s37
      %p39 = scmp.eq.s32.totalorder %s38, 0
      %s41 = sadd.s32 %s40, 1
      %s42 = scalar_select %p39, %s40, %s41
      %p45 = pneg %p39
      %p46 = scmp.eq.s32.totalorder %s18, 1
      %p47 = por %p45, %p46
      %p48 = scmp.ne.s32.totalorder %s40, %s43
      %p49 = scmp.eq.s32.totalorder %s18, 0
      %p50 = por %p48, %p49
      %p51 = scmp.ne.s32.totalorder %s40, %s43
      %p52 = scmp.eq.s32.totalorder %s23, 1
      %p53 = por %p51, %p52
      %p54 = scmp.ne.s32.totalorder %s43, %s44
      %p55 = scmp.eq.s32.totalorder %s23, 0
      %p56 = por %p54, %p55
      %p57 = scmp.ne.s32.totalorder %s43, %s44
      %p58 = scmp.eq.s32.totalorder %s24, 1
      %p59 = por %p57, %p58
      %p61 = scmp.ne.s32.totalorder %s44, %s60
      %p62 = scmp.eq.s32.totalorder %s24, 0
      %p63 = por %p61, %p62
      %s64 = ssub.s32 %s26, %s33
      %p65 = scmp.eq.s32.totalorder %s64, 0
      %s67 = sadd.s32 %s66, 1
      %s68 = scalar_select %p65, %s66, %s67
      %p71 = pneg %p65
      %p72 = scmp.eq.s32.totalorder %s18, 1
      %p73 = por %p71, %p72
      %p74 = scmp.ne.s32.totalorder %s66, %s69
      %p75 = scmp.eq.s32.totalorder %s18, 0
      %p76 = por %p74, %p75
      %p77 = scmp.ne.s32.totalorder %s66, %s69
      %p78 = scmp.eq.s32.totalorder %s23, 1
      %p79 = por %p77, %p78
      %p80 = scmp.ne.s32.totalorder %s69, %s70
      %p81 = scmp.eq.s32.totalorder %s23, 0
      %p82 = por %p80, %p81
      %p83 = scmp.ne.s32.totalorder %s69, %s70
      %p84 = scmp.eq.s32.totalorder %s24, 1
      %p85 = por %p83, %p84
      %p87 = scmp.ne.s32.totalorder %s70, %s86
      %p88 = scmp.eq.s32.totalorder %s24, 0
      %p89 = por %p87, %p88
      %s90 = ssub.s32 %s26, %s33
      %p91 = scmp.eq.s32.totalorder %s90, 0
      %s93 = sadd.s32 %s92, 1
      %s94 = scalar_select %p91, %s92, %s93
      %p97 = pneg %p91
      %p98 = scmp.eq.s32.totalorder %s18, 1
      %p99 = por %p97, %p98
      %p100 = scmp.ne.s32.totalorder %s92, %s95
      %p101 = scmp.eq.s32.totalorder %s18, 0
      %p102 = por %p100, %p101
      %p103 = scmp.ne.s32.totalorder %s92, %s95
      %p104 = scmp.eq.s32.totalorder %s23, 1
      %p105 = por %p103, %p104
      %p106 = scmp.ne.s32.totalorder %s95, %s96
      %p107 = scmp.eq.s32.totalorder %s23, 0
      %p108 = por %p106, %p107
      %p109 = scmp.ne.s32.totalorder %s95, %s96
      %p110 = scmp.eq.s32.totalorder %s24, 1
      %p111 = por %p109, %p110
      %p113 = scmp.ne.s32.totalorder %s96, %s112
      %p114 = scmp.eq.s32.totalorder %s24, 0
      %p115 = por %p113, %p114
      %s116 = ssub.s32 %s26, %s33
      %p117 = scmp.eq.s32.totalorder %s116, 0
      %s119 = sadd.s32 %s118, 1
      %s120 = scalar_select %p117, %s118, %s119
      %p123 = pneg %p117
      %p124 = scmp.eq.s32.totalorder %s18, 1
      %p125 = por %p123, %p124
      %p126 = scmp.ne.s32.totalorder %s118, %s121
      %p127 = scmp.eq.s32.totalorder %s18, 0
      %p128 = por %p126, %p127
      %p129 = scmp.ne.s32.totalorder %s118, %s121
      %p130 = scmp.eq.s32.totalorder %s23, 1
      %p131 = por %p129, %p130
      %p132 = scmp.ne.s32.totalorder %s121, %s122
      %p133 = scmp.eq.s32.totalorder %s23, 0
      %p134 = por %p132, %p133
      %p135 = scmp.ne.s32.totalorder %s121, %s122
      %p136 = scmp.eq.s32.totalorder %s24, 1
      %p137 = por %p135, %p136
      %p139 = scmp.ne.s32.totalorder %s122, %s138
      %p140 = scmp.eq.s32.totalorder %s24, 0
      %p141 = por %p139, %p140
      %s143 = sadd.s32 %s142, 1
      %p146 = scmp.eq.s32.totalorder %s18, 1
      %p147 = scmp.ne.s32.totalorder %s142, %s144
      %p148 = scmp.eq.s32.totalorder %s18, 0
      %p149 = por %p147, %p148
      %p150 = scmp.ne.s32.totalorder %s142, %s144
      %p151 = scmp.eq.s32.totalorder %s23, 1
      %p152 = por %p150, %p151
      %p153 = scmp.ne.s32.totalorder %s144, %s145
      %p154 = scmp.eq.s32.totalorder %s23, 0
      %p155 = por %p153, %p154
      %p156 = scmp.ne.s32.totalorder %s144, %s145
      %p157 = scmp.eq.s32.totalorder %s24, 1
      %p158 = por %p156, %p157
      %p160 = scmp.ne.s32.totalorder %s145, %s159
      %p161 = scmp.eq.s32.totalorder %s24, 0
      %p162 = por %p160, %p161
      %s163 = ssub.s32 %s25, %s37
      %p164 = scmp.eq.s32.totalorder %s163, 0
      %s166 = sadd.s32 %s165, 1
      %s167 = scalar_select %p164, %s165, %s166
      %p170 = pneg %p164
      %p171 = scmp.eq.s32.totalorder %s18, 1
      %p172 = por %p170, %p171
      %p173 = scmp.ne.s32.totalorder %s165, %s168
      %p174 = scmp.eq.s32.totalorder %s18, 0
      %p175 = por %p173, %p174
      %p176 = scmp.ne.s32.totalorder %s165, %s168
      %p177 = scmp.eq.s32.totalorder %s23, 1
      %p178 = por %p176, %p177
      %p179 = scmp.ne.s32.totalorder %s168, %s169
      %p180 = scmp.eq.s32.totalorder %s23, 0
      %p181 = por %p179, %p180
      %p182 = scmp.ne.s32.totalorder %s168, %s169
      %p183 = scmp.eq.s32.totalorder %s24, 1
      %p184 = por %p182, %p183
      %p186 = scmp.ne.s32.totalorder %s169, %s185
      %p187 = scmp.eq.s32.totalorder %s24, 0
      %p188 = por %p186, %p187
      %p189 = scmp.le.s32.totalorder 1, %s18
      %p190 = scmp.lt.s32.totalorder %s18, 3
      %p191 = pnand %p189, %p190
      %p192 = pneg %p191
      // Predicated region
      $region9: #{feedforward.1} parent=5 // pred_check
        _
      $region10: #{feedforward.1} parent=5 // pred_check_branch
        %194 = sbr.rel (%p191) target = $region12
      $region11: #{feedforward.1} parent=5 // pred_region
        %s195 = ssub.s32 %s18, 1
        // Predicated region
        $region13: #{feedforward.1} parent=11 // pred_check
          %p196 = pneg %p82
        $region14: #{feedforward.1} parent=11 // pred_check_branch
          %198 = sbr.rel (%p196) target = $region16
        $region15: #{feedforward.1} parent=11 // pred_region
          %s199 = smul.u32 2, %s28
          %s201 = ssub.s32 4096, 4096
          %202 = vsyncadd [#allocation6], %s201
          %s203 = smul.addr %s199, 128
          %s204 = scalar_lea.hbm %s1, %s203
          %s205 = sshll.u32 [#allocation5], 4
          %s206 = int_to_ptr.vmem [resolvable:$true] %s205
          %211 = dma.hbm_to_vmem [thread:$0]  %s204, 4096, %s206, [#allocation6], 256, 256, 16
        $region16: #{feedforward.1} parent=11 // pred_fallthru
          _
        // Predicated region
        $region17: #{feedforward.1} parent=11 // pred_check
          %p212 = pneg %p108
        $region18: #{feedforward.1} parent=11 // pred_check_branch
          %214 = sbr.rel (%p212) target = $region20
        $region19: #{feedforward.1} parent=11 // pred_region
          %s215 = smul.u32 2, %s28
          %p216 = scmp.lt.s32.totalorder %s215, 1
          %s217 = scalar_select %p216, %s215, 1
          %s218 = scalar_lea.vmem %s2, %s217
          %s219 = smul.u32 2, %s28
        $region20: #{feedforward.1} parent=11 // pred_fallthru
          _
        // Predicated region
        $region21: #{feedforward.1} parent=11 // pred_check
          %p220 = pneg %p134
        $region22: #{feedforward.1} parent=11 // pred_check_branch
          %222 = sbr.rel (%p220) target = $region24
        $region23: #{feedforward.1} parent=11 // pred_region
          %s223 = smul.u32 32, %s28
          %s225 = ssub.s32 4096, 4096
          %226 = vsyncadd [#allocation6], %s225
          %s227 = smul.addr %s223, 128
          %s228 = scalar_lea.hbm %s3, %s227
          %s229 = sshll.u32 [#allocation7], 4
          %s230 = int_to_ptr.vmem [resolvable:$true] %s229
          %235 = dma.hbm_to_vmem [thread:$0]  %s228, 4096, %s230, [#allocation6], 128, 128, 8
        $region24: #{feedforward.1} parent=11 // pred_fallthru
          _
        // Predicated region
        $region25: #{feedforward.1} parent=11 // pred_check
          %p236 = pneg %p155
        $region26: #{feedforward.1} parent=11 // pred_check_branch
          %238 = sbr.rel (%p236) target = $region28
        $region27: #{feedforward.1} parent=11 // pred_region
          _
        $region28: #{feedforward.1} parent=11 // pred_fallthru
          _
      $region12: #{feedforward.1} parent=5 // pred_fallthru
        _
      %p239 = scmp.lt.s32.totalorder %s18, 2
      // Predicated region
      $region29: #{feedforward.1} parent=5 // pred_check
        %p240 = pneg %p239
      $region30: #{feedforward.1} parent=5 // pred_check_branch
        %242 = sbr.rel (%p240) target = $region32
      $region31: #{feedforward.1} parent=5 // pred_region
        // Predicated region
        $region33: #{feedforward.1} parent=31 // pred_check
          %p243 = pneg %p50
        $region34: #{feedforward.1} parent=31 // pred_check_branch
          %245 = sbr.rel (%p243) target = $region36
        $region35: #{feedforward.1} parent=31 // pred_region
          %s246 = sand.u32 %s40, 1
          %s247 = scalar_lea.sflag [#allocation3], %s246
          %s248 = sand.u32 %s40, 1
          %s249 = smul.addr %s248, 512
          %s250 = scalar_lea.vmem [#allocation2], %s249
          %s251 = smul.u32 64, %s25
          %s253 = ssub.s32 8192, 8192
          %254 = vsyncadd %s247, %s253
          %s255 = smul.addr %s251, 128
          %s256 = scalar_lea.hbm %s0, %s255
          %s257 = sshll.u32 %s250, 4
          %s258 = int_to_ptr.vmem [resolvable:$true] %s257
          %263 = dma.hbm_to_vmem [thread:$0]  %s256, 8192, %s258, %s247, 128, 128, 8
        $region36: #{feedforward.1} parent=31 // pred_fallthru
          _
      $region32: #{feedforward.1} parent=5 // pred_fallthru
        _
      %p264 = scmp.le.s32.totalorder 1, %s18
      %p265 = scmp.lt.s32.totalorder %s18, 3
      %p266 = pnand %p264, %p265
      %p267 = pneg %p266
      // Predicated region
      $region37: #{feedforward.1} parent=5 // pred_check
        _
      $region38: #{feedforward.1} parent=5 // pred_check_branch
        %269 = sbr.rel (%p266) target = $region40
      $region39: #{feedforward.1} parent=5 // pred_region
        %s270 = ssub.s32 %s18, 1
        %s271 = sand.u32 %s43, 1
        %s272 = scalar_lea.sflag [#allocation3], %s271
        %s273 = sand.u32 %s43, 1
        %s274 = smul.addr %s273, 512
        %s275 = scalar_lea.vmem [#allocation2], %s274
        // Predicated region
        $region41: #{feedforward.1} parent=39 // pred_check
          %p276 = pneg %p56
        $region42: #{feedforward.1} parent=39 // pred_check_branch
          %278 = sbr.rel (%p276) target = $region44
        $region43: #{feedforward.1} parent=39 // pred_region
          %279 = dma.done %s272, 8192
        $region44: #{feedforward.1} parent=39 // pred_fallthru
          _
        // Predicated region
        $region45: #{feedforward.1} parent=39 // pred_check
          %p280 = pneg %p82
        $region46: #{feedforward.1} parent=39 // pred_check_branch
          %282 = sbr.rel (%p280) target = $region48
        $region47: #{feedforward.1} parent=39 // pred_region
          %283 = dma.done [#allocation6], 4096
        $region48: #{feedforward.1} parent=39 // pred_fallthru
          _
        // Predicated region
        $region49: #{feedforward.1} parent=39 // pred_check
          %p284 = pneg %p134
        $region50: #{feedforward.1} parent=39 // pred_check_branch
          %286 = sbr.rel (%p284) target = $region52
        $region51: #{feedforward.1} parent=39 // pred_region
          %287 = dma.done [#allocation6], 4096
        $region52: #{feedforward.1} parent=39 // pred_fallthru
          _
        %s288 = sand.u32 %s43, 1
        %s289 = scalar_lea.sflag [#allocation3], %s288
        %s290 = sand.u32 %s43, 1
        %s291 = smul.addr %s290, 512
        %s292 = scalar_lea.vmem [#allocation2], %s291
        %p293 = pneg %p56
        %p294 = pneg %p53
        %p295 = pneg %p82
        %p296 = pneg %p79
        %s297 = smul.u32 2, %s28
        %p298 = scmp.lt.s32.totalorder %s297, 1
        %s299 = scalar_select %p298, %s297, 1
        %s300 = scalar_lea.vmem %s2, %s299
        %p301 = pneg %p108
        %p302 = pneg %p105
        %p303 = pneg %p134
        %p304 = pneg %p131
        %p305 = pneg %p155
        %p306 = pneg %p152
        %p307 = pneg %p181
        %p308 = pneg %p178
        %s309 = sand.u32 %s168, 1
        %s310 = scalar_lea.sflag [#allocation4], %s309
        %s311 = sand.u32 %s168, 1
        %s312 = smul.addr %s311, 512
        %s313 = scalar_lea.vmem [#allocation8], %s312
        %s314 = smul.u32 64, %s27
        %s315 = smul.u32 2, %s28
        %s316 = smul.u32 2, %s28
        %p317 = scmp.lt.s32.totalorder %s316, 1
        %s318 = scalar_select %p317, %s316, 1
        %s319 = scalar_lea.vmem %s2, %s318
        %s320 = smul.u32 2, %s28
        %s321 = smul.u32 32, %s28
        %s322 = smul.u32 64, %s27
        %v323 = vld [vmem:[%s275] sm:$0xff]
        %v324 = vld [vmem:[%s275 + $0x8] sm:$0xff]
        %v325 = vld [vmem:[%s275 + $0x10] sm:$0xff]
        %v326 = vld [vmem:[%s275 + $0x18] sm:$0xff]
        %v327 = vld [vmem:[%s275 + $0x20] sm:$0xff]
        %v328 = vld [vmem:[%s275 + $0x28] sm:$0xff]
        %v329 = vld [vmem:[%s275 + $0x30] sm:$0xff]
        %v330 = vld [vmem:[%s275 + $0x38] sm:$0xff]
        %v331 = vld [vmem:[%s275 + $0x40] sm:$0xff]
        %v332 = vld [vmem:[%s275 + $0x48] sm:$0xff]
        %v333 = vld [vmem:[%s275 + $0x50] sm:$0xff]
        %v334 = vld [vmem:[%s275 + $0x58] sm:$0xff]
        %v335 = vld [vmem:[%s275 + $0x60] sm:$0xff]
        %v336 = vld [vmem:[%s275 + $0x68] sm:$0xff]
        %v337 = vld [vmem:[%s275 + $0x70] sm:$0xff]
        %v338 = vld [vmem:[%s275 + $0x78] sm:$0xff]
        %v339 = vld [vmem:[%s275 + $0x80] sm:$0xff]
        %v340 = vld [vmem:[%s275 + $0x88] sm:$0xff]
        %v341 = vld [vmem:[%s275 + $0x90] sm:$0xff]
        %v342 = vld [vmem:[%s275 + $0x98] sm:$0xff]
        %v343 = vld [vmem:[%s275 + $0xa0] sm:$0xff]
        %v344 = vld [vmem:[%s275 + $0xa8] sm:$0xff]
        %v345 = vld [vmem:[%s275 + $0xb0] sm:$0xff]
        %v346 = vld [vmem:[%s275 + $0xb8] sm:$0xff]
        %v347 = vld [vmem:[%s275 + $0xc0] sm:$0xff]
        %v348 = vld [vmem:[%s275 + $0xc8] sm:$0xff]
        %v349 = vld [vmem:[%s275 + $0xd0] sm:$0xff]
        %v350 = vld [vmem:[%s275 + $0xd8] sm:$0xff]
        %v351 = vld [vmem:[%s275 + $0xe0] sm:$0xff]
        %v352 = vld [vmem:[%s275 + $0xe8] sm:$0xff]
        %v353 = vld [vmem:[%s275 + $0xf0] sm:$0xff]
        %v354 = vld [vmem:[%s275 + $0xf8] sm:$0xff]
        %v355 = vld [vmem:[%s275 + $0x100] sm:$0xff]
        %v356 = vld [vmem:[%s275 + $0x108] sm:$0xff]
        %v357 = vld [vmem:[%s275 + $0x110] sm:$0xff]
        %v358 = vld [vmem:[%s275 + $0x118] sm:$0xff]
        %v359 = vld [vmem:[%s275 + $0x120] sm:$0xff]
        %v360 = vld [vmem:[%s275 + $0x128] sm:$0xff]
        %v361 = vld [vmem:[%s275 + $0x130] sm:$0xff]
        %v362 = vld [vmem:[%s275 + $0x138] sm:$0xff]
        %v363 = vld [vmem:[%s275 + $0x140] sm:$0xff]
        %v364 = vld [vmem:[%s275 + $0x148] sm:$0xff]
        %v365 = vld [vmem:[%s275 + $0x150] sm:$0xff]
        %v366 = vld [vmem:[%s275 + $0x158] sm:$0xff]
        %v367 = vld [vmem:[%s275 + $0x160] sm:$0xff]
        %v368 = vld [vmem:[%s275 + $0x168] sm:$0xff]
        %v369 = vld [vmem:[%s275 + $0x170] sm:$0xff]
        %v370 = vld [vmem:[%s275 + $0x178] sm:$0xff]
        %v371 = vld [vmem:[%s275 + $0x180] sm:$0xff]
        %v372 = vld [vmem:[%s275 + $0x188] sm:$0xff]
        %v373 = vld [vmem:[%s275 + $0x190] sm:$0xff]
        %v374 = vld [vmem:[%s275 + $0x198] sm:$0xff]
        %v375 = vld [vmem:[%s275 + $0x1a0] sm:$0xff]
        %v376 = vld [vmem:[%s275 + $0x1a8] sm:$0xff]
        %v377 = vld [vmem:[%s275 + $0x1b0] sm:$0xff]
        %v378 = vld [vmem:[%s275 + $0x1b8] sm:$0xff]
        %v379 = vld [vmem:[%s275 + $0x1c0] sm:$0xff]
        %v380 = vld [vmem:[%s275 + $0x1c8] sm:$0xff]
        %v381 = vld [vmem:[%s275 + $0x1d0] sm:$0xff]
        %v382 = vld [vmem:[%s275 + $0x1d8] sm:$0xff]
        %v383 = vld [vmem:[%s275 + $0x1e0] sm:$0xff]
        %v384 = vld [vmem:[%s275 + $0x1e8] sm:$0xff]
        %v385 = vld [vmem:[%s275 + $0x1f0] sm:$0xff]
        %v386 = vld [vmem:[%s275 + $0x1f8] sm:$0xff]
        %v387 = vld [vmem:[#allocation5] sm:$0xff]
        %v388 = vld [vmem:[#allocation5 + $0x8] sm:$0xff]
        %v389 = vld [vmem:[#allocation5 + $0x10] sm:$0xff]
        %v390 = vld [vmem:[#allocation5 + $0x18] sm:$0xff]
        %v391 = vld [vmem:[#allocation5 + $0x20] sm:$0xff]
        %v392 = vld [vmem:[#allocation5 + $0x28] sm:$0xff]
        %v393 = vld [vmem:[#allocation5 + $0x30] sm:$0xff]
        %v394 = vld [vmem:[#allocation5 + $0x38] sm:$0xff]
        %v395 = vld [vmem:[#allocation5 + $0x40] sm:$0xff]
        %v396 = vld [vmem:[#allocation5 + $0x48] sm:$0xff]
        %v397 = vld [vmem:[#allocation5 + $0x50] sm:$0xff]
        %v398 = vld [vmem:[#allocation5 + $0x58] sm:$0xff]
        %v399 = vld [vmem:[#allocation5 + $0x60] sm:$0xff]
        %v400 = vld [vmem:[#allocation5 + $0x68] sm:$0xff]
        %v401 = vld [vmem:[#allocation5 + $0x70] sm:$0xff]
        %v402 = vld [vmem:[#allocation5 + $0x78] sm:$0xff]
        %v403 = vld [vmem:[#allocation5 + $0x80] sm:$0xff]
        %v404 = vld [vmem:[#allocation5 + $0x88] sm:$0xff]
        %v405 = vld [vmem:[#allocation5 + $0x90] sm:$0xff]
        %v406 = vld [vmem:[#allocation5 + $0x98] sm:$0xff]
        %v407 = vld [vmem:[#allocation5 + $0xa0] sm:$0xff]
        %v408 = vld [vmem:[#allocation5 + $0xa8] sm:$0xff]
        %v409 = vld [vmem:[#allocation5 + $0xb0] sm:$0xff]
        %v410 = vld [vmem:[#allocation5 + $0xb8] sm:$0xff]
        %v411 = vld [vmem:[#allocation5 + $0xc0] sm:$0xff]
        %v412 = vld [vmem:[#allocation5 + $0xc8] sm:$0xff]
        %v413 = vld [vmem:[#allocation5 + $0xd0] sm:$0xff]
        %v414 = vld [vmem:[#allocation5 + $0xd8] sm:$0xff]
        %v415 = vld [vmem:[#allocation5 + $0xe0] sm:$0xff]
        %v416 = vld [vmem:[#allocation5 + $0xe8] sm:$0xff]
        %v417 = vld [vmem:[#allocation5 + $0xf0] sm:$0xff]
        %v418 = vld [vmem:[#allocation5 + $0xf8] sm:$0xff]
        %v419 = vld [vmem:[%s319] sm:$0x3]
        %v421 = vlaneseq
        %v422 = vshrl.u32 %v421, 7
        %v423 = vsub.s32 0, %v422
        %v424 = vrot.slane %v419, %v423
        %v425 = vlaneseq
        %v426 = vshrl.u32 %v425, 7
        %v427 = vsub.s32 1, %v426
        %v428 = vrot.slane %v419, %v427
        %431 = vmatprep.subr.mxu0 %v388
        %432 = vmatpush1.msra.mxu0 %v387
        %433 = vmatprep.subr.mxu0 %v390
        %434 = vmatpush1.msra.mxu0 %v389
        %435 = vmatprep.subr.mxu0 %v392
        %436 = vmatpush1.msra.mxu0 %v391
        %437 = vmatprep.subr.mxu0 %v394
        %438 = vmatpush1.msra.mxu0 %v393
        %439 = vmatprep.subr.mxu0 %v396
        %440 = vmatpush1.msra.mxu0 %v395
        %441 = vmatprep.subr.mxu0 %v398
        %442 = vmatpush1.msra.mxu0 %v397
        %443 = vmatprep.subr.mxu0 %v400
        %444 = vmatpush1.msra.mxu0 %v399
        %445 = vmatprep.subr.mxu0 %v402
        %446 = vmatpush1.msra.mxu0 %v401
        %447 = vmatprep.subr.mxu0 %v404
        %448 = vmatpush1.msra.mxu0 %v403
        %449 = vmatprep.subr.mxu0 %v406
        %450 = vmatpush1.msra.mxu0 %v405
        %451 = vmatprep.subr.mxu0 %v408
        %452 = vmatpush1.msra.mxu0 %v407
        %453 = vmatprep.subr.mxu0 %v410
        %454 = vmatpush1.msra.mxu0 %v409
        %455 = vmatprep.subr.mxu0 %v412
        %456 = vmatpush1.msra.mxu0 %v411
        %457 = vmatprep.subr.mxu0 %v414
        %458 = vmatpush1.msra.mxu0 %v413
        %459 = vmatprep.subr.mxu0 %v416
        %460 = vmatpush1.msra.mxu0 %v415
        %461 = vmatprep.subr.mxu0 %v418
        %462 = vmatpush1.msra.mxu0 %v417
        %463 = vmatprep.subr.mxu0 0.0
        %464 = vmatpush1.msra.mxu0 0.0
        %465 = vmatprep.subr.mxu0 0.0
        %466 = vmatpush1.msra.mxu0 0.0
        %467 = vmatprep.subr.mxu0 0.0
        %468 = vmatpush1.msra.mxu0 0.0
        %469 = vmatprep.subr.mxu0 0.0
        %470 = vmatpush1.msra.mxu0 0.0
        %471 = vmatprep.subr.mxu0 0.0
        %472 = vmatpush1.msra.mxu0 0.0
        %473 = vmatprep.subr.mxu0 0.0
        %474 = vmatpush1.msra.mxu0 0.0
        %475 = vmatprep.subr.mxu0 0.0
        %476 = vmatpush1.msra.mxu0 0.0
        %477 = vmatprep.subr.mxu0 0.0
        %478 = vmatpush1.msra.mxu0 0.0
        %479 = vmatprep.subr.mxu0 0.0
        %480 = vmatpush1.msra.mxu0 0.0
        %481 = vmatprep.subr.mxu0 0.0
        %482 = vmatpush1.msra.mxu0 0.0
        %483 = vmatprep.subr.mxu0 0.0
        %484 = vmatpush1.msra.mxu0 0.0
        %485 = vmatprep.subr.mxu0 0.0
        %486 = vmatpush1.msra.mxu0 0.0
        %487 = vmatprep.subr.mxu0 0.0
        %488 = vmatpush1.msra.mxu0 0.0
        %489 = vmatprep.subr.mxu0 0.0
        %490 = vmatpush1.msra.mxu0 0.0
        %491 = vmatprep.subr.mxu0 0.0
        %492 = vmatpush1.msra.mxu0 0.0
        %493 = vmatprep.subr.mxu0 0.0
        %494 = vmatpush1.msra.mxu0 0.0
        %495 = vmatprep.mubr.f32.mxu0 0.0
        %496 = vmatmul.mubr.f32.gmra.mrb[0].mxu0 %v323
        %v497 = vpop.f32.mrb[0].mxu0
        %v498 = vadd.f32 %v424, %v497
        %v499 = vpop.f32.mrb[0].mxu0
        %v500 = vadd.f32 %v428, %v499
        %501 = vmatprep.mubr.f32.mxu0 0.0
        %502 = vmatmul.mubr.f32.gmra.mrb[0].mxu0 %v324
        %v503 = vpop.f32.mrb[0].mxu0
        %v504 = vadd.f32 %v424, %v503
        %v505 = vpop.f32.mrb[0].mxu0
        %v506 = vadd.f32 %v428, %v505
        %507 = vmatprep.mubr.f32.mxu0 0.0
        %508 = vmatmul.mubr.f32.gmra.mrb[0].mxu0 %v325
        %v509 = vpop.f32.mrb[0].mxu0
        %v510 = vadd.f32 %v424, %v509
        %v511 = vpop.f32.mrb[0].mxu0
        %v512 = vadd.f32 %v428, %v511
        %513 = vmatprep.mubr.f32.mxu0 0.0
        %514 = vmatmul.mubr.f32.gmra.mrb[0].mxu0 %v326
        %v515 = vpop.f32.mrb[0].mxu0
        %v516 = vadd.f32 %v424, %v515
        %v517 = vpop.f32.mrb[0].mxu0
        %v518 = vadd.f32 %v428, %v517
        %519 = vmatprep.mubr.f32.mxu0 0.0
        %520 = vmatmul.mubr.f32.gmra.mrb[0].mxu0 %v327
        %v521 = vpop.f32.mrb[0].mxu0
        %v522 = vadd.f32 %v424, %v521
        %v523 = vpop.f32.mrb[0].mxu0
        %v524 = vadd.f32 %v428, %v523
        %525 = vmatprep.mubr.f32.mxu0 0.0
        %526 = vmatmul.mubr.f32.gmra.mrb[0].mxu0 %v328
        %v527 = vpop.f32.mrb[0].mxu0
        %v528 = vadd.f32 %v424, %v527
        %v529 = vpop.f32.mrb[0].mxu0
        %v530 = vadd.f32 %v428, %v529
        %531 = vmatprep.mubr.f32.mxu0 0.0
        %532 = vmatmul.mubr.f32.gmra.mrb[0].mxu0 %v329
        %v533 = vpop.f32.mrb[0].mxu0
        %v534 = vadd.f32 %v424, %v533
        %v535 = vpop.f32.mrb[0].mxu0
        %v536 = vadd.f32 %v428, %v535
        %537 = vmatprep.mubr.f32.mxu0 0.0
        %538 = vmatmul.mubr.f32.gmra.mrb[0].mxu0 %v330
        %v539 = vpop.f32.mrb[0].mxu0
        %v540 = vadd.f32 %v424, %v539
        %v541 = vpop.f32.mrb[0].mxu0
        %v542 = vadd.f32 %v428, %v541
        %543 = vmatprep.mubr.f32.mxu0 0.0
        %544 = vmatmul.mubr.f32.gmra.mrb[0].mxu0 %v331
        %v545 = vpop.f32.mrb[0].mxu0
        %v546 = vadd.f32 %v424, %v545
        %v547 = vpop.f32.mrb[0].mxu0
        %v548 = vadd.f32 %v428, %v547
        %549 = vmatprep.mubr.f32.mxu0 0.0
        %550 = vmatmul.mubr.f32.gmra.mrb[0].mxu0 %v332
        %v551 = vpop.f32.mrb[0].mxu0
        %v552 = vadd.f32 %v424, %v551
        %v553 = vpop.f32.mrb[0].mxu0
        %v554 = vadd.f32 %v428, %v553
        %555 = vmatprep.mubr.f32.mxu0 0.0
        %556 = vmatmul.mubr.f32.gmra.mrb[0].mxu0 %v333
        %v557 = vpop.f32.mrb[0].mxu0
        %v558 = vadd.f32 %v424, %v557
        %v559 = vpop.f32.mrb[0].mxu0
        %v560 = vadd.f32 %v428, %v559
        %561 = vmatprep.mubr.f32.mxu0 0.0
        %562 = vmatmul.mubr.f32.gmra.mrb[0].mxu0 %v334
        %v563 = vpop.f32.mrb[0].mxu0
        %v564 = vadd.f32 %v424, %v563
        %v565 = vpop.f32.mrb[0].mxu0
        %v566 = vadd.f32 %v428, %v565
        %567 = vmatprep.mubr.f32.mxu0 0.0
        %568 = vmatmul.mubr.f32.gmra.mrb[0].mxu0 %v335
        %v569 = vpop.f32.mrb[0].mxu0
        %v570 = vadd.f32 %v424, %v569
        %v571 = vpop.f32.mrb[0].mxu0
        %v572 = vadd.f32 %v428, %v571
        %573 = vmatprep.mubr.f32.mxu0 0.0
        %574 = vmatmul.mubr.f32.gmra.mrb[0].mxu0 %v336
        %v575 = vpop.f32.mrb[0].mxu0
        %v576 = vadd.f32 %v424, %v575
        %v577 = vpop.f32.mrb[0].mxu0
        %v578 = vadd.f32 %v428, %v577
        %579 = vmatprep.mubr.f32.mxu0 0.0
        %580 = vmatmul.mubr.f32.gmra.mrb[0].mxu0 %v337
        %v581 = vpop.f32.mrb[0].mxu0
        %v582 = vadd.f32 %v424, %v581
        %v583 = vpop.f32.mrb[0].mxu0
        %v584 = vadd.f32 %v428, %v583
        %585 = vmatprep.mubr.f32.mxu0 0.0
        %586 = vmatmul.mubr.f32.gmra.mrb[0].mxu0 %v338
        %v587 = vpop.f32.mrb[0].mxu0
        %v588 = vadd.f32 %v424, %v587
        %v589 = vpop.f32.mrb[0].mxu0
        %v590 = vadd.f32 %v428, %v589
        %591 = vmatprep.mubr.f32.mxu0 0.0
        %592 = vmatmul.mubr.f32.gmra.mrb[0].mxu0 %v339
        %v593 = vpop.f32.mrb[0].mxu0
        %v594 = vadd.f32 %v424, %v593
        %v595 = vpop.f32.mrb[0].mxu0
        %v596 = vadd.f32 %v428, %v595
        %597 = vmatprep.mubr.f32.mxu0 0.0
        %598 = vmatmul.mubr.f32.gmra.mrb[0].mxu0 %v340
        %v599 = vpop.f32.mrb[0].mxu0
        %v600 = vadd.f32 %v424, %v599
        %v601 = vpop.f32.mrb[0].mxu0
        %v602 = vadd.f32 %v428, %v601
        %603 = vmatprep.mubr.f32.mxu0 0.0
        %604 = vmatmul.mubr.f32.gmra.mrb[0].mxu0 %v341
        %v605 = vpop.f32.mrb[0].mxu0
        %v606 = vadd.f32 %v424, %v605
        %v607 = vpop.f32.mrb[0].mxu0
        %v608 = vadd.f32 %v428, %v607
        %609 = vmatprep.mubr.f32.mxu0 0.0
        %610 = vmatmul.mubr.f32.gmra.mrb[0].mxu0 %v342
        %v611 = vpop.f32.mrb[0].mxu0
        %v612 = vadd.f32 %v424, %v611
        %v613 = vpop.f32.mrb[0].mxu0
        %v614 = vadd.f32 %v428, %v613
        %615 = vmatprep.mubr.f32.mxu0 0.0
        %616 = vmatmul.mubr.f32.gmra.mrb[0].mxu0 %v343
        %v617 = vpop.f32.mrb[0].mxu0
        %v618 = vadd.f32 %v424, %v617
        %v619 = vpop.f32.mrb[0].mxu0
        %v620 = vadd.f32 %v428, %v619
        %621 = vmatprep.mubr.f32.mxu0 0.0
        %622 = vmatmul.mubr.f32.gmra.mrb[0].mxu0 %v344
        %v623 = vpop.f32.mrb[0].mxu0
        %v624 = vadd.f32 %v424, %v623
        %v625 = vpop.f32.mrb[0].mxu0
        %v626 = vadd.f32 %v428, %v625
        %627 = vmatprep.mubr.f32.mxu0 0.0
        %628 = vmatmul.mubr.f32.gmra.mrb[0].mxu0 %v345
        %v629 = vpop.f32.mrb[0].mxu0
        %v630 = vadd.f32 %v424, %v629
        %v631 = vpop.f32.mrb[0].mxu0
        %v632 = vadd.f32 %v428, %v631
        %633 = vmatprep.mubr.f32.mxu0 0.0
        %634 = vmatmul.mubr.f32.gmra.mrb[0].mxu0 %v346
        %v635 = vpop.f32.mrb[0].mxu0
        %v636 = vadd.f32 %v424, %v635
        %v637 = vpop.f32.mrb[0].mxu0
        %v638 = vadd.f32 %v428, %v637
        %639 = vmatprep.mubr.f32.mxu0 0.0
        %640 = vmatmul.mubr.f32.gmra.mrb[0].mxu0 %v347
        %v641 = vpop.f32.mrb[0].mxu0
        %v642 = vadd.f32 %v424, %v641
        %v643 = vpop.f32.mrb[0].mxu0
        %v644 = vadd.f32 %v428, %v643
        %645 = vmatprep.mubr.f32.mxu0 0.0
        %646 = vmatmul.mubr.f32.gmra.mrb[0].mxu0 %v348
        %v647 = vpop.f32.mrb[0].mxu0
        %v648 = vadd.f32 %v424, %v647
        %v649 = vpop.f32.mrb[0].mxu0
        %v650 = vadd.f32 %v428, %v649
        %651 = vmatprep.mubr.f32.mxu0 0.0
        %652 = vmatmul.mubr.f32.gmra.mrb[0].mxu0 %v349
        %v653 = vpop.f32.mrb[0].mxu0
        %v654 = vadd.f32 %v424, %v653
        %v655 = vpop.f32.mrb[0].mxu0
        %v656 = vadd.f32 %v428, %v655
        %657 = vmatprep.mubr.f32.mxu0 0.0
        %658 = vmatmul.mubr.f32.gmra.mrb[0].mxu0 %v350
        %v659 = vpop.f32.mrb[0].mxu0
        %v660 = vadd.f32 %v424, %v659
        %v661 = vpop.f32.mrb[0].mxu0
        %v662 = vadd.f32 %v428, %v661
        %663 = vmatprep.mubr.f32.mxu0 0.0
        %664 = vmatmul.mubr.f32.gmra.mrb[0].mxu0 %v351
        %v665 = vpop.f32.mrb[0].mxu0
        %v666 = vadd.f32 %v424, %v665
        %v667 = vpop.f32.mrb[0].mxu0
        %v668 = vadd.f32 %v428, %v667
        %669 = vmatprep.mubr.f32.mxu0 0.0
        %670 = vmatmul.mubr.f32.gmra.mrb[0].mxu0 %v352
        %v671 = vpop.f32.mrb[0].mxu0
        %v672 = vadd.f32 %v424, %v671
        %v673 = vpop.f32.mrb[0].mxu0
        %v674 = vadd.f32 %v428, %v673
        %675 = vmatprep.mubr.f32.mxu0 0.0
        %676 = vmatmul.mubr.f32.gmra.mrb[0].mxu0 %v353
        %v677 = vpop.f32.mrb[0].mxu0
        %v678 = vadd.f32 %v424, %v677
        %v679 = vpop.f32.mrb[0].mxu0
        %v680 = vadd.f32 %v428, %v679
        %681 = vmatprep.mubr.f32.mxu0 0.0
        %682 = vmatmul.mubr.f32.gmra.mrb[0].mxu0 %v354
        %v683 = vpop.f32.mrb[0].mxu0
        %v684 = vadd.f32 %v424, %v683
        %v685 = vpop.f32.mrb[0].mxu0
        %v686 = vadd.f32 %v428, %v685
        %687 = vmatprep.mubr.f32.mxu0 0.0
        %688 = vmatmul.mubr.f32.gmra.mrb[0].mxu0 %v355
        %v689 = vpop.f32.mrb[0].mxu0
        %v690 = vadd.f32 %v424, %v689
        %v691 = vpop.f32.mrb[0].mxu0
        %v692 = vadd.f32 %v428, %v691
        %693 = vmatprep.mubr.f32.mxu0 0.0
        %694 = vmatmul.mubr.f32.gmra.mrb[0].mxu0 %v356
        %v695 = vpop.f32.mrb[0].mxu0
        %v696 = vadd.f32 %v424, %v695
        %v697 = vpop.f32.mrb[0].mxu0
        %v698 = vadd.f32 %v428, %v697
        %699 = vmatprep.mubr.f32.mxu0 0.0
        %700 = vmatmul.mubr.f32.gmra.mrb[0].mxu0 %v357
        %v701 = vpop.f32.mrb[0].mxu0
        %v702 = vadd.f32 %v424, %v701
        %v703 = vpop.f32.mrb[0].mxu0
        %v704 = vadd.f32 %v428, %v703
        %705 = vmatprep.mubr.f32.mxu0 0.0
        %706 = vmatmul.mubr.f32.gmra.mrb[0].mxu0 %v358
        %v707 = vpop.f32.mrb[0].mxu0
        %v708 = vadd.f32 %v424, %v707
        %v709 = vpop.f32.mrb[0].mxu0
        %v710 = vadd.f32 %v428, %v709
        %711 = vmatprep.mubr.f32.mxu0 0.0
        %712 = vmatmul.mubr.f32.gmra.mrb[0].mxu0 %v359
        %v713 = vpop.f32.mrb[0].mxu0
        %v714 = vadd.f32 %v424, %v713
        %v715 = vpop.f32.mrb[0].mxu0
        %v716 = vadd.f32 %v428, %v715
        %717 = vmatprep.mubr.f32.mxu0 0.0
        %718 = vmatmul.mubr.f32.gmra.mrb[0].mxu0 %v360
        %v719 = vpop.f32.mrb[0].mxu0
        %v720 = vadd.f32 %v424, %v719
        %v721 = vpop.f32.mrb[0].mxu0
        %v722 = vadd.f32 %v428, %v721
        %723 = vmatprep.mubr.f32.mxu0 0.0
        %724 = vmatmul.mubr.f32.gmra.mrb[0].mxu0 %v361
        %v725 = vpop.f32.mrb[0].mxu0
        %v726 = vadd.f32 %v424, %v725
        %v727 = vpop.f32.mrb[0].mxu0
        %v728 = vadd.f32 %v428, %v727
        %729 = vmatprep.mubr.f32.mxu0 0.0
        %730 = vmatmul.mubr.f32.gmra.mrb[0].mxu0 %v362
        %v731 = vpop.f32.mrb[0].mxu0
        %v732 = vadd.f32 %v424, %v731
        %v733 = vpop.f32.mrb[0].mxu0
        %v734 = vadd.f32 %v428, %v733
        %735 = vmatprep.mubr.f32.mxu0 0.0
        %736 = vmatmul.mubr.f32.gmra.mrb[0].mxu0 %v363
        %v737 = vpop.f32.mrb[0].mxu0
        %v738 = vadd.f32 %v424, %v737
        %v739 = vpop.f32.mrb[0].mxu0
        %v740 = vadd.f32 %v428, %v739
        %741 = vmatprep.mubr.f32.mxu0 0.0
        %742 = vmatmul.mubr.f32.gmra.mrb[0].mxu0 %v364
        %v743 = vpop.f32.mrb[0].mxu0
        %v744 = vadd.f32 %v424, %v743
        %v745 = vpop.f32.mrb[0].mxu0
        %v746 = vadd.f32 %v428, %v745
        %747 = vmatprep.mubr.f32.mxu0 0.0
        %748 = vmatmul.mubr.f32.gmra.mrb[0].mxu0 %v365
        %v749 = vpop.f32.mrb[0].mxu0
        %v750 = vadd.f32 %v424, %v749
        %v751 = vpop.f32.mrb[0].mxu0
        %v752 = vadd.f32 %v428, %v751
        %753 = vmatprep.mubr.f32.mxu0 0.0
        %754 = vmatmul.mubr.f32.gmra.mrb[0].mxu0 %v366
        %v755 = vpop.f32.mrb[0].mxu0
        %v756 = vadd.f32 %v424, %v755
        %v757 = vpop.f32.mrb[0].mxu0
        %v758 = vadd.f32 %v428, %v757
        %759 = vmatprep.mubr.f32.mxu0 0.0
        %760 = vmatmul.mubr.f32.gmra.mrb[0].mxu0 %v367
        %v761 = vpop.f32.mrb[0].mxu0
        %v762 = vadd.f32 %v424, %v761
        %v763 = vpop.f32.mrb[0].mxu0
        %v764 = vadd.f32 %v428, %v763
        %765 = vmatprep.mubr.f32.mxu0 0.0
        %766 = vmatmul.mubr.f32.gmra.mrb[0].mxu0 %v368
        %v767 = vpop.f32.mrb[0].mxu0
        %v768 = vadd.f32 %v424, %v767
        %v769 = vpop.f32.mrb[0].mxu0
        %v770 = vadd.f32 %v428, %v769
        %771 = vmatprep.mubr.f32.mxu0 0.0
        %772 = vmatmul.mubr.f32.gmra.mrb[0].mxu0 %v369
        %v773 = vpop.f32.mrb[0].mxu0
        %v774 = vadd.f32 %v424, %v773
        %v775 = vpop.f32.mrb[0].mxu0
        %v776 = vadd.f32 %v428, %v775
        %777 = vmatprep.mubr.f32.mxu0 0.0
        %778 = vmatmul.mubr.f32.gmra.mrb[0].mxu0 %v370
        %v779 = vpop.f32.mrb[0].mxu0
        %v780 = vadd.f32 %v424, %v779
        %v781 = vpop.f32.mrb[0].mxu0
        %v782 = vadd.f32 %v428, %v781
        %783 = vmatprep.mubr.f32.mxu0 0.0
        %784 = vmatmul.mubr.f32.gmra.mrb[0].mxu0 %v371
        %v785 = vpop.f32.mrb[0].mxu0
        %v786 = vadd.f32 %v424, %v785
        %v787 = vpop.f32.mrb[0].mxu0
        %v788 = vadd.f32 %v428, %v787
        %789 = vmatprep.mubr.f32.mxu0 0.0
        %790 = vmatmul.mubr.f32.gmra.mrb[0].mxu0 %v372
        %v791 = vpop.f32.mrb[0].mxu0
        %v792 = vadd.f32 %v424, %v791
        %v793 = vpop.f32.mrb[0].mxu0
        %v794 = vadd.f32 %v428, %v793
        %795 = vmatprep.mubr.f32.mxu0 0.0
        %796 = vmatmul.mubr.f32.gmra.mrb[0].mxu0 %v373
        %v797 = vpop.f32.mrb[0].mxu0
        %v798 = vadd.f32 %v424, %v797
        %v799 = vpop.f32.mrb[0].mxu0
        %v800 = vadd.f32 %v428, %v799
        %801 = vmatprep.mubr.f32.mxu0 0.0
        %802 = vmatmul.mubr.f32.gmra.mrb[0].mxu0 %v374
        %v803 = vpop.f32.mrb[0].mxu0
        %v804 = vadd.f32 %v424, %v803
        %v805 = vpop.f32.mrb[0].mxu0
        %v806 = vadd.f32 %v428, %v805
        %807 = vmatprep.mubr.f32.mxu0 0.0
        %808 = vmatmul.mubr.f32.gmra.mrb[0].mxu0 %v375
        %v809 = vpop.f32.mrb[0].mxu0
        %v810 = vadd.f32 %v424, %v809
        %v811 = vpop.f32.mrb[0].mxu0
        %v812 = vadd.f32 %v428, %v811
        %813 = vmatprep.mubr.f32.mxu0 0.0
        %814 = vmatmul.mubr.f32.gmra.mrb[0].mxu0 %v376
        %v815 = vpop.f32.mrb[0].mxu0
        %v816 = vadd.f32 %v424, %v815
        %v817 = vpop.f32.mrb[0].mxu0
        %v818 = vadd.f32 %v428, %v817
        %819 = vmatprep.mubr.f32.mxu0 0.0
        %820 = vmatmul.mubr.f32.gmra.mrb[0].mxu0 %v377
        %v821 = vpop.f32.mrb[0].mxu0
        %v822 = vadd.f32 %v424, %v821
        %v823 = vpop.f32.mrb[0].mxu0
        %v824 = vadd.f32 %v428, %v823
        %825 = vmatprep.mubr.f32.mxu0 0.0
        %826 = vmatmul.mubr.f32.gmra.mrb[0].mxu0 %v378
        %v827 = vpop.f32.mrb[0].mxu0
        %v828 = vadd.f32 %v424, %v827
        %v829 = vpop.f32.mrb[0].mxu0
        %v830 = vadd.f32 %v428, %v829
        %831 = vmatprep.mubr.f32.mxu0 0.0
        %832 = vmatmul.mubr.f32.gmra.mrb[0].mxu0 %v379
        %v833 = vpop.f32.mrb[0].mxu0
        %v834 = vadd.f32 %v424, %v833
        %v835 = vpop.f32.mrb[0].mxu0
        %v836 = vadd.f32 %v428, %v835
        %837 = vmatprep.mubr.f32.mxu0 0.0
        %838 = vmatmul.mubr.f32.gmra.mrb[0].mxu0 %v380
        %v839 = vpop.f32.mrb[0].mxu0
        %v840 = vadd.f32 %v424, %v839
        %v841 = vpop.f32.mrb[0].mxu0
        %v842 = vadd.f32 %v428, %v841
        %843 = vmatprep.mubr.f32.mxu0 0.0
        %844 = vmatmul.mubr.f32.gmra.mrb[0].mxu0 %v381
        %v845 = vpop.f32.mrb[0].mxu0
        %v846 = vadd.f32 %v424, %v845
        %v847 = vpop.f32.mrb[0].mxu0
        %v848 = vadd.f32 %v428, %v847
        %849 = vmatprep.mubr.f32.mxu0 0.0
        %850 = vmatmul.mubr.f32.gmra.mrb[0].mxu0 %v382
        %v851 = vpop.f32.mrb[0].mxu0
        %v852 = vadd.f32 %v424, %v851
        %v853 = vpop.f32.mrb[0].mxu0
        %v854 = vadd.f32 %v428, %v853
        %855 = vmatprep.mubr.f32.mxu0 0.0
        %856 = vmatmul.mubr.f32.gmra.mrb[0].mxu0 %v383
        %v857 = vpop.f32.mrb[0].mxu0
        %v858 = vadd.f32 %v424, %v857
        %v859 = vpop.f32.mrb[0].mxu0
        %v860 = vadd.f32 %v428, %v859
        %861 = vmatprep.mubr.f32.mxu0 0.0
        %862 = vmatmul.mubr.f32.gmra.mrb[0].mxu0 %v384
        %v863 = vpop.f32.mrb[0].mxu0
        %v864 = vadd.f32 %v424, %v863
        %v865 = vpop.f32.mrb[0].mxu0
        %v866 = vadd.f32 %v428, %v865
        %867 = vmatprep.mubr.f32.mxu0 0.0
        %868 = vmatmul.mubr.f32.gmra.mrb[0].mxu0 %v385
        %v869 = vpop.f32.mrb[0].mxu0
        %v870 = vadd.f32 %v424, %v869
        %v871 = vpop.f32.mrb[0].mxu0
        %v872 = vadd.f32 %v428, %v871
        %873 = vmatprep.mubr.f32.mxu0 0.0
        %874 = vmatmul.mubr.f32.gmra.mrb[0].mxu0 %v386
        %v875 = vpop.f32.mrb[0].mxu0
        %v876 = vadd.f32 %v424, %v875
        %v877 = vpop.f32.mrb[0].mxu0
        %v878 = vadd.f32 %v428, %v877
        %879 = vdwg.mxu0
        %v880 = vmul.f32 %v498, 0.5
        %v881 = vmul.f32 %v500, 0.5
        %v882 = vmul.f32 %v504, 0.5
        %v883 = vmul.f32 %v506, 0.5
        %v884 = vmul.f32 %v510, 0.5
        %v885 = vmul.f32 %v512, 0.5
        %v886 = vmul.f32 %v516, 0.5
        %v887 = vmul.f32 %v518, 0.5
        %v888 = vmul.f32 %v522, 0.5
        %v889 = vmul.f32 %v524, 0.5
        %v890 = vmul.f32 %v528, 0.5
        %v891 = vmul.f32 %v530, 0.5
        %v892 = vmul.f32 %v534, 0.5
        %v893 = vmul.f32 %v536, 0.5
        %v894 = vmul.f32 %v540, 0.5
        %v895 = vmul.f32 %v542, 0.5
        %v896 = vmul.f32 %v546, 0.5
        %v897 = vmul.f32 %v548, 0.5
        %v898 = vmul.f32 %v552, 0.5
        %v899 = vmul.f32 %v554, 0.5
        %v900 = vmul.f32 %v558, 0.5
        %v901 = vmul.f32 %v560, 0.5
        %v902 = vmul.f32 %v564, 0.5
        %v903 = vmul.f32 %v566, 0.5
        %v904 = vmul.f32 %v570, 0.5
        %v905 = vmul.f32 %v572, 0.5
        %v906 = vmul.f32 %v576, 0.5
        %v907 = vmul.f32 %v578, 0.5
        %v908 = vmul.f32 %v582, 0.5
        %v909 = vmul.f32 %v584, 0.5
        %v910 = vmul.f32 %v588, 0.5
        %v911 = vmul.f32 %v590, 0.5
        %v912 = vmul.f32 %v594, 0.5
        %v913 = vmul.f32 %v596, 0.5
        %v914 = vmul.f32 %v600, 0.5
        %v915 = vmul.f32 %v602, 0.5
        %v916 = vmul.f32 %v606, 0.5
        %v917 = vmul.f32 %v608, 0.5
        %v918 = vmul.f32 %v612, 0.5
        %v919 = vmul.f32 %v614, 0.5
        %v920 = vmul.f32 %v618, 0.5
        %v921 = vmul.f32 %v620, 0.5
        %v922 = vmul.f32 %v624, 0.5
        %v923 = vmul.f32 %v626, 0.5
        %v924 = vmul.f32 %v630, 0.5
        %v925 = vmul.f32 %v632, 0.5
        %v926 = vmul.f32 %v636, 0.5
        %v927 = vmul.f32 %v638, 0.5
        %v928 = vmul.f32 %v642, 0.5
        %v929 = vmul.f32 %v644, 0.5
        %v930 = vmul.f32 %v648, 0.5
        %v931 = vmul.f32 %v650, 0.5
        %v932 = vmul.f32 %v654, 0.5
        %v933 = vmul.f32 %v656, 0.5
        %v934 = vmul.f32 %v660, 0.5
        %v935 = vmul.f32 %v662, 0.5
        %v936 = vmul.f32 %v666, 0.5
        %v937 = vmul.f32 %v668, 0.5
        %v938 = vmul.f32 %v672, 0.5
        %v939 = vmul.f32 %v674, 0.5
        %v940 = vmul.f32 %v678, 0.5
        %v941 = vmul.f32 %v680, 0.5
        %v942 = vmul.f32 %v684, 0.5
        %v943 = vmul.f32 %v686, 0.5
        %v944 = vmul.f32 %v690, 0.5
        %v945 = vmul.f32 %v692, 0.5
        %v946 = vmul.f32 %v696, 0.5
        %v947 = vmul.f32 %v698, 0.5
        %v948 = vmul.f32 %v702, 0.5
        %v949 = vmul.f32 %v704, 0.5
        %v950 = vmul.f32 %v708, 0.5
        %v951 = vmul.f32 %v710, 0.5
        %v952 = vmul.f32 %v714, 0.5
        %v953 = vmul.f32 %v716, 0.5
        %v954 = vmul.f32 %v720, 0.5
        %v955 = vmul.f32 %v722, 0.5
        %v956 = vmul.f32 %v726, 0.5
        %v957 = vmul.f32 %v728, 0.5
        %v958 = vmul.f32 %v732, 0.5
        %v959 = vmul.f32 %v734, 0.5
        %v960 = vmul.f32 %v738, 0.5
        %v961 = vmul.f32 %v740, 0.5
        %v962 = vmul.f32 %v744, 0.5
        %v963 = vmul.f32 %v746, 0.5
        %v964 = vmul.f32 %v750, 0.5
        %v965 = vmul.f32 %v752, 0.5
        %v966 = vmul.f32 %v756, 0.5
        %v967 = vmul.f32 %v758, 0.5
        %v968 = vmul.f32 %v762, 0.5
        %v969 = vmul.f32 %v764, 0.5
        %v970 = vmul.f32 %v768, 0.5
        %v971 = vmul.f32 %v770, 0.5
        %v972 = vmul.f32 %v774, 0.5
        %v973 = vmul.f32 %v776, 0.5
        %v974 = vmul.f32 %v780, 0.5
        %v975 = vmul.f32 %v782, 0.5
        %v976 = vmul.f32 %v786, 0.5
        %v977 = vmul.f32 %v788, 0.5
        %v978 = vmul.f32 %v792, 0.5
        %v979 = vmul.f32 %v794, 0.5
        %v980 = vmul.f32 %v798, 0.5
        %v981 = vmul.f32 %v800, 0.5
        %v982 = vmul.f32 %v804, 0.5
        %v983 = vmul.f32 %v806, 0.5
        %v984 = vmul.f32 %v810, 0.5
        %v985 = vmul.f32 %v812, 0.5
        %v986 = vmul.f32 %v816, 0.5
        %v987 = vmul.f32 %v818, 0.5
        %v988 = vmul.f32 %v822, 0.5
        %v989 = vmul.f32 %v824, 0.5
        %v990 = vmul.f32 %v828, 0.5
        %v991 = vmul.f32 %v830, 0.5
        %v992 = vmul.f32 %v834, 0.5
        %v993 = vmul.f32 %v836, 0.5
        %v994 = vmul.f32 %v840, 0.5
        %v995 = vmul.f32 %v842, 0.5
        %v996 = vmul.f32 %v846, 0.5
        %v997 = vmul.f32 %v848, 0.5
        %v998 = vmul.f32 %v852, 0.5
        %v999 = vmul.f32 %v854, 0.5
        %v1000 = vmul.f32 %v858, 0.5
        %v1001 = vmul.f32 %v860, 0.5
        %v1002 = vmul.f32 %v864, 0.5
        %v1003 = vmul.f32 %v866, 0.5
        %v1004 = vmul.f32 %v870, 0.5
        %v1005 = vmul.f32 %v872, 0.5
        %v1006 = vmul.f32 %v876, 0.5
        %v1007 = vmul.f32 %v878, 0.5
        %v1008 = vmul.f32 %v498, 0.70710677
        %v1009 = vmul.f32 %v500, 0.70710677
        %v1010 = vmul.f32 %v504, 0.70710677
        %v1011 = vmul.f32 %v506, 0.70710677
        %v1012 = vmul.f32 %v510, 0.70710677
        %v1013 = vmul.f32 %v512, 0.70710677
        %v1014 = vmul.f32 %v516, 0.70710677
        %v1015 = vmul.f32 %v518, 0.70710677
        %v1016 = vmul.f32 %v522, 0.70710677
        %v1017 = vmul.f32 %v524, 0.70710677
        %v1018 = vmul.f32 %v528, 0.70710677
        %v1019 = vmul.f32 %v530, 0.70710677
        %v1020 = vmul.f32 %v534, 0.70710677
        %v1021 = vmul.f32 %v536, 0.70710677
        %v1022 = vmul.f32 %v540, 0.70710677
        %v1023 = vmul.f32 %v542, 0.70710677
        %v1024 = vmul.f32 %v546, 0.70710677
        %v1025 = vmul.f32 %v548, 0.70710677
        %v1026 = vmul.f32 %v552, 0.70710677
        %v1027 = vmul.f32 %v554, 0.70710677
        %v1028 = vmul.f32 %v558, 0.70710677
        %v1029 = vmul.f32 %v560, 0.70710677
        %v1030 = vmul.f32 %v564, 0.70710677
        %v1031 = vmul.f32 %v566, 0.70710677
        %v1032 = vmul.f32 %v570, 0.70710677
        %v1033 = vmul.f32 %v572, 0.70710677
        %v1034 = vmul.f32 %v576, 0.70710677
        %v1035 = vmul.f32 %v578, 0.70710677
        %v1036 = vmul.f32 %v582, 0.70710677
        %v1037 = vmul.f32 %v584, 0.70710677
        %v1038 = vmul.f32 %v588, 0.70710677
        %v1039 = vmul.f32 %v590, 0.70710677
        %v1040 = vmul.f32 %v594, 0.70710677
        %v1041 = vmul.f32 %v596, 0.70710677
        %v1042 = vmul.f32 %v600, 0.70710677
        %v1043 = vmul.f32 %v602, 0.70710677
        %v1044 = vmul.f32 %v606, 0.70710677
        %v1045 = vmul.f32 %v608, 0.70710677
        %v1046 = vmul.f32 %v612, 0.70710677
        %v1047 = vmul.f32 %v614, 0.70710677
        %v1048 = vmul.f32 %v618, 0.70710677
        %v1049 = vmul.f32 %v620, 0.70710677
        %v1050 = vmul.f32 %v624, 0.70710677
        %v1051 = vmul.f32 %v626, 0.70710677
        %v1052 = vmul.f32 %v630, 0.70710677
        %v1053 = vmul.f32 %v632, 0.70710677
        %v1054 = vmul.f32 %v636, 0.70710677
        %v1055 = vmul.f32 %v638, 0.70710677
        %v1056 = vmul.f32 %v642, 0.70710677
        %v1057 = vmul.f32 %v644, 0.70710677
        %v1058 = vmul.f32 %v648, 0.70710677
        %v1059 = vmul.f32 %v650, 0.70710677
        %v1060 = vmul.f32 %v654, 0.70710677
        %v1061 = vmul.f32 %v656, 0.70710677
        %v1062 = vmul.f32 %v660, 0.70710677
        %v1063 = vmul.f32 %v662, 0.70710677
        %v1064 = vmul.f32 %v666, 0.70710677
        %v1065 = vmul.f32 %v668, 0.70710677
        %v1066 = vmul.f32 %v672, 0.70710677
        %v1067 = vmul.f32 %v674, 0.70710677
        %v1068 = vmul.f32 %v678, 0.70710677
        %v1069 = vmul.f32 %v680, 0.70710677
        %v1070 = vmul.f32 %v684, 0.70710677
        %v1071 = vmul.f32 %v686, 0.70710677
        %v1072 = vmul.f32 %v690, 0.70710677
        %v1073 = vmul.f32 %v692, 0.70710677
        %v1074 = vmul.f32 %v696, 0.70710677
        %v1075 = vmul.f32 %v698, 0.70710677
        %v1076 = vmul.f32 %v702, 0.70710677
        %v1077 = vmul.f32 %v704, 0.70710677
        %v1078 = vmul.f32 %v708, 0.70710677
        %v1079 = vmul.f32 %v710, 0.70710677
        %v1080 = vmul.f32 %v714, 0.70710677
        %v1081 = vmul.f32 %v716, 0.70710677
        %v1082 = vmul.f32 %v720, 0.70710677
        %v1083 = vmul.f32 %v722, 0.70710677
        %v1084 = vmul.f32 %v726, 0.70710677
        %v1085 = vmul.f32 %v728, 0.70710677
        %v1086 = vmul.f32 %v732, 0.70710677
        %v1087 = vmul.f32 %v734, 0.70710677
        %v1088 = vmul.f32 %v738, 0.70710677
        %v1089 = vmul.f32 %v740, 0.70710677
        %v1090 = vmul.f32 %v744, 0.70710677
        %v1091 = vmul.f32 %v746, 0.70710677
        %v1092 = vmul.f32 %v750, 0.70710677
        %v1093 = vmul.f32 %v752, 0.70710677
        %v1094 = vmul.f32 %v756, 0.70710677
        %v1095 = vmul.f32 %v758, 0.70710677
        %v1096 = vmul.f32 %v762, 0.70710677
        %v1097 = vmul.f32 %v764, 0.70710677
        %v1098 = vmul.f32 %v768, 0.70710677
        %v1099 = vmul.f32 %v770, 0.70710677
        %v1100 = vmul.f32 %v774, 0.70710677
        %v1101 = vmul.f32 %v776, 0.70710677
        %v1102 = vmul.f32 %v780, 0.70710677
        %v1103 = vmul.f32 %v782, 0.70710677
        %v1104 = vmul.f32 %v786, 0.70710677
        %v1105 = vmul.f32 %v788, 0.70710677
        %v1106 = vmul.f32 %v792, 0.70710677
        %v1107 = vmul.f32 %v794, 0.70710677
        %v1108 = vmul.f32 %v798, 0.70710677
        %v1109 = vmul.f32 %v800, 0.70710677
        %v1110 = vmul.f32 %v804, 0.70710677
        %v1111 = vmul.f32 %v806, 0.70710677
        %v1112 = vmul.f32 %v810, 0.70710677
        %v1113 = vmul.f32 %v812, 0.70710677
        %v1114 = vmul.f32 %v816, 0.70710677
        %v1115 = vmul.f32 %v818, 0.70710677
        %v1116 = vmul.f32 %v822, 0.70710677
        %v1117 = vmul.f32 %v824, 0.70710677
        %v1118 = vmul.f32 %v828, 0.70710677
        %v1119 = vmul.f32 %v830, 0.70710677
        %v1120 = vmul.f32 %v834, 0.70710677
        %v1121 = vmul.f32 %v836, 0.70710677
        %v1122 = vmul.f32 %v840, 0.70710677
        %v1123 = vmul.f32 %v842, 0.70710677
        %v1124 = vmul.f32 %v846, 0.70710677
        %v1125 = vmul.f32 %v848, 0.70710677
        %v1126 = vmul.f32 %v852, 0.70710677
        %v1127 = vmul.f32 %v854, 0.70710677
        %v1128 = vmul.f32 %v858, 0.70710677
        %v1129 = vmul.f32 %v860, 0.70710677
        %v1130 = vmul.f32 %v864, 0.70710677
        %v1131 = vmul.f32 %v866, 0.70710677
        %v1132 = vmul.f32 %v870, 0.70710677
        %v1133 = vmul.f32 %v872, 0.70710677
        %v1134 = vmul.f32 %v876, 0.70710677
        %v1135 = vmul.f32 %v878, 0.70710677
        %v1136 = vand.u32 2147483647, %v1008
        %v1137 = vand.u32 2147483647, %v1009
        %v1138 = vand.u32 2147483647, %v1010
        %v1139 = vand.u32 2147483647, %v1011
        %v1140 = vand.u32 2147483647, %v1012
        %v1141 = vand.u32 2147483647, %v1013
        %v1142 = vand.u32 2147483647, %v1014
        %v1143 = vand.u32 2147483647, %v1015
        %v1144 = vand.u32 2147483647, %v1016
        %v1145 = vand.u32 2147483647, %v1017
        %v1146 = vand.u32 2147483647, %v1018
        %v1147 = vand.u32 2147483647, %v1019
        %v1148 = vand.u32 2147483647, %v1020
        %v1149 = vand.u32 2147483647, %v1021
        %v1150 = vand.u32 2147483647, %v1022
        %v1151 = vand.u32 2147483647, %v1023
        %v1152 = vand.u32 2147483647, %v1024
        %v1153 = vand.u32 2147483647, %v1025
        %v1154 = vand.u32 2147483647, %v1026
        %v1155 = vand.u32 2147483647, %v1027
        %v1156 = vand.u32 2147483647, %v1028
        %v1157 = vand.u32 2147483647, %v1029
        %v1158 = vand.u32 2147483647, %v1030
        %v1159 = vand.u32 2147483647, %v1031
        %v1160 = vand.u32 2147483647, %v1032
        %v1161 = vand.u32 2147483647, %v1033
        %v1162 = vand.u32 2147483647, %v1034
        %v1163 = vand.u32 2147483647, %v1035
        %v1164 = vand.u32 2147483647, %v1036
        %v1165 = vand.u32 2147483647, %v1037
        %v1166 = vand.u32 2147483647, %v1038
        %v1167 = vand.u32 2147483647, %v1039
        %v1168 = vand.u32 2147483647, %v1040
        %v1169 = vand.u32 2147483647, %v1041
        %v1170 = vand.u32 2147483647, %v1042
        %v1171 = vand.u32 2147483647, %v1043
        %v1172 = vand.u32 2147483647, %v1044
        %v1173 = vand.u32 2147483647, %v1045
        %v1174 = vand.u32 2147483647, %v1046
        %v1175 = vand.u32 2147483647, %v1047
        %v1176 = vand.u32 2147483647, %v1048
        %v1177 = vand.u32 2147483647, %v1049
        %v1178 = vand.u32 2147483647, %v1050
        %v1179 = vand.u32 2147483647, %v1051
        %v1180 = vand.u32 2147483647, %v1052
        %v1181 = vand.u32 2147483647, %v1053
        %v1182 = vand.u32 2147483647, %v1054
        %v1183 = vand.u32 2147483647, %v1055
        %v1184 = vand.u32 2147483647, %v1056
        %v1185 = vand.u32 2147483647, %v1057
        %v1186 = vand.u32 2147483647, %v1058
        %v1187 = vand.u32 2147483647, %v1059
        %v1188 = vand.u32 2147483647, %v1060
        %v1189 = vand.u32 2147483647, %v1061
        %v1190 = vand.u32 2147483647, %v1062
        %v1191 = vand.u32 2147483647, %v1063
        %v1192 = vand.u32 2147483647, %v1064
        %v1193 = vand.u32 2147483647, %v1065
        %v1194 = vand.u32 2147483647, %v1066
        %v1195 = vand.u32 2147483647, %v1067
        %v1196 = vand.u32 2147483647, %v1068
        %v1197 = vand.u32 2147483647, %v1069
        %v1198 = vand.u32 2147483647, %v1070
        %v1199 = vand.u32 2147483647, %v1071
        %v1200 = vand.u32 2147483647, %v1072
        %v1201 = vand.u32 2147483647, %v1073
        %v1202 = vand.u32 2147483647, %v1074
        %v1203 = vand.u32 2147483647, %v1075
        %v1204 = vand.u32 2147483647, %v1076
        %v1205 = vand.u32 2147483647, %v1077
        %v1206 = vand.u32 2147483647, %v1078
        %v1207 = vand.u32 2147483647, %v1079
        %v1208 = vand.u32 2147483647, %v1080
        %v1209 = vand.u32 2147483647, %v1081
        %v1210 = vand.u32 2147483647, %v1082
        %v1211 = vand.u32 2147483647, %v1083
        %v1212 = vand.u32 2147483647, %v1084
        %v1213 = vand.u32 2147483647, %v1085
        %v1214 = vand.u32 2147483647, %v1086
        %v1215 = vand.u32 2147483647, %v1087
        %v1216 = vand.u32 2147483647, %v1088
        %v1217 = vand.u32 2147483647, %v1089
        %v1218 = vand.u32 2147483647, %v1090
        %v1219 = vand.u32 2147483647, %v1091
        %v1220 = vand.u32 2147483647, %v1092
        %v1221 = vand.u32 2147483647, %v1093
        %v1222 = vand.u32 2147483647, %v1094
        %v1223 = vand.u32 2147483647, %v1095
        %v1224 = vand.u32 2147483647, %v1096
        %v1225 = vand.u32 2147483647, %v1097
        %v1226 = vand.u32 2147483647, %v1098
        %v1227 = vand.u32 2147483647, %v1099
        %v1228 = vand.u32 2147483647, %v1100
        %v1229 = vand.u32 2147483647, %v1101
        %v1230 = vand.u32 2147483647, %v1102
        %v1231 = vand.u32 2147483647, %v1103
        %v1232 = vand.u32 2147483647, %v1104
        %v1233 = vand.u32 2147483647, %v1105
        %v1234 = vand.u32 2147483647, %v1106
        %v1235 = vand.u32 2147483647, %v1107
        %v1236 = vand.u32 2147483647, %v1108
        %v1237 = vand.u32 2147483647, %v1109
        %v1238 = vand.u32 2147483647, %v1110
        %v1239 = vand.u32 2147483647, %v1111
        %v1240 = vand.u32 2147483647, %v1112
        %v1241 = vand.u32 2147483647, %v1113
        %v1242 = vand.u32 2147483647, %v1114
        %v1243 = vand.u32 2147483647, %v1115
        %v1244 = vand.u32 2147483647, %v1116
        %v1245 = vand.u32 2147483647, %v1117
        %v1246 = vand.u32 2147483647, %v1118
        %v1247 = vand.u32 2147483647, %v1119
        %v1248 = vand.u32 2147483647, %v1120
        %v1249 = vand.u32 2147483647, %v1121
        %v1250 = vand.u32 2147483647, %v1122
        %v1251 = vand.u32 2147483647, %v1123
        %v1252 = vand.u32 2147483647, %v1124
        %v1253 = vand.u32 2147483647, %v1125
        %v1254 = vand.u32 2147483647, %v1126
        %v1255 = vand.u32 2147483647, %v1127
        %v1256 = vand.u32 2147483647, %v1128
        %v1257 = vand.u32 2147483647, %v1129
        %v1258 = vand.u32 2147483647, %v1130
        %v1259 = vand.u32 2147483647, %v1131
        %v1260 = vand.u32 2147483647, %v1132
        %v1261 = vand.u32 2147483647, %v1133
        %v1262 = vand.u32 2147483647, %v1134
        %v1263 = vand.u32 2147483647, %v1135
        %v1264 = vmul.f32 %v1136, 0.3275911
        %v1265 = vmul.f32 %v1137, 0.3275911
        %v1266 = vmul.f32 %v1138, 0.3275911
        %v1267 = vmul.f32 %v1139, 0.3275911
        %v1268 = vmul.f32 %v1140, 0.3275911
        %v1269 = vmul.f32 %v1141, 0.3275911
        %v1270 = vmul.f32 %v1142, 0.3275911
        %v1271 = vmul.f32 %v1143, 0.3275911
        %v1272 = vmul.f32 %v1144, 0.3275911
        %v1273 = vmul.f32 %v1145, 0.3275911
        %v1274 = vmul.f32 %v1146, 0.3275911
        %v1275 = vmul.f32 %v1147, 0.3275911
        %v1276 = vmul.f32 %v1148, 0.3275911
        %v1277 = vmul.f32 %v1149, 0.3275911
        %v1278 = vmul.f32 %v1150, 0.3275911
        %v1279 = vmul.f32 %v1151, 0.3275911
        %v1280 = vmul.f32 %v1152, 0.3275911
        %v1281 = vmul.f32 %v1153, 0.3275911
        %v1282 = vmul.f32 %v1154, 0.3275911
        %v1283 = vmul.f32 %v1155, 0.3275911
        %v1284 = vmul.f32 %v1156, 0.3275911
        %v1285 = vmul.f32 %v1157, 0.3275911
        %v1286 = vmul.f32 %v1158, 0.3275911
        %v1287 = vmul.f32 %v1159, 0.3275911
        %v1288 = vmul.f32 %v1160, 0.3275911
        %v1289 = vmul.f32 %v1161, 0.3275911
        %v1290 = vmul.f32 %v1162, 0.3275911
        %v1291 = vmul.f32 %v1163, 0.3275911
        %v1292 = vmul.f32 %v1164, 0.3275911
        %v1293 = vmul.f32 %v1165, 0.3275911
        %v1294 = vmul.f32 %v1166, 0.3275911
        %v1295 = vmul.f32 %v1167, 0.3275911
        %v1296 = vmul.f32 %v1168, 0.3275911
        %v1297 = vmul.f32 %v1169, 0.3275911
        %v1298 = vmul.f32 %v1170, 0.3275911
        %v1299 = vmul.f32 %v1171, 0.3275911
        %v1300 = vmul.f32 %v1172, 0.3275911
        %v1301 = vmul.f32 %v1173, 0.3275911
        %v1302 = vmul.f32 %v1174, 0.3275911
        %v1303 = vmul.f32 %v1175, 0.3275911
        %v1304 = vmul.f32 %v1176, 0.3275911
        %v1305 = vmul.f32 %v1177, 0.3275911
        %v1306 = vmul.f32 %v1178, 0.3275911
        %v1307 = vmul.f32 %v1179, 0.3275911
        %v1308 = vmul.f32 %v1180, 0.3275911
        %v1309 = vmul.f32 %v1181, 0.3275911
        %v1310 = vmul.f32 %v1182, 0.3275911
        %v1311 = vmul.f32 %v1183, 0.3275911
        %v1312 = vmul.f32 %v1184, 0.3275911
        %v1313 = vmul.f32 %v1185, 0.3275911
        %v1314 = vmul.f32 %v1186, 0.3275911
        %v1315 = vmul.f32 %v1187, 0.3275911
        %v1316 = vmul.f32 %v1188, 0.3275911
        %v1317 = vmul.f32 %v1189, 0.3275911
        %v1318 = vmul.f32 %v1190, 0.3275911
        %v1319 = vmul.f32 %v1191, 0.3275911
        %v1320 = vmul.f32 %v1192, 0.3275911
        %v1321 = vmul.f32 %v1193, 0.3275911
        %v1322 = vmul.f32 %v1194, 0.3275911
        %v1323 = vmul.f32 %v1195, 0.3275911
        %v1324 = vmul.f32 %v1196, 0.3275911
        %v1325 = vmul.f32 %v1197, 0.3275911
        %v1326 = vmul.f32 %v1198, 0.3275911
        %v1327 = vmul.f32 %v1199, 0.3275911
        %v1328 = vmul.f32 %v1200, 0.3275911
        %v1329 = vmul.f32 %v1201, 0.3275911
        %v1330 = vmul.f32 %v1202, 0.3275911
        %v1331 = vmul.f32 %v1203, 0.3275911
        %v1332 = vmul.f32 %v1204, 0.3275911
        %v1333 = vmul.f32 %v1205, 0.3275911
        %v1334 = vmul.f32 %v1206, 0.3275911
        %v1335 = vmul.f32 %v1207, 0.3275911
        %v1336 = vmul.f32 %v1208, 0.3275911
        %v1337 = vmul.f32 %v1209, 0.3275911
        %v1338 = vmul.f32 %v1210, 0.3275911
        %v1339 = vmul.f32 %v1211, 0.3275911
        %v1340 = vmul.f32 %v1212, 0.3275911
        %v1341 = vmul.f32 %v1213, 0.3275911
        %v1342 = vmul.f32 %v1214, 0.3275911
        %v1343 = vmul.f32 %v1215, 0.3275911
        %v1344 = vmul.f32 %v1216, 0.3275911
        %v1345 = vmul.f32 %v1217, 0.3275911
        %v1346 = vmul.f32 %v1218, 0.3275911
        %v1347 = vmul.f32 %v1219, 0.3275911
        %v1348 = vmul.f32 %v1220, 0.3275911
        %v1349 = vmul.f32 %v1221, 0.3275911
        %v1350 = vmul.f32 %v1222, 0.3275911
        %v1351 = vmul.f32 %v1223, 0.3275911
        %v1352 = vmul.f32 %v1224, 0.3275911
        %v1353 = vmul.f32 %v1225, 0.3275911
        %v1354 = vmul.f32 %v1226, 0.3275911
        %v1355 = vmul.f32 %v1227, 0.3275911
        %v1356 = vmul.f32 %v1228, 0.3275911
        %v1357 = vmul.f32 %v1229, 0.3275911
        %v1358 = vmul.f32 %v1230, 0.3275911
        %v1359 = vmul.f32 %v1231, 0.3275911
        %v1360 = vmul.f32 %v1232, 0.3275911
        %v1361 = vmul.f32 %v1233, 0.3275911
        %v1362 = vmul.f32 %v1234, 0.3275911
        %v1363 = vmul.f32 %v1235, 0.3275911
        %v1364 = vmul.f32 %v1236, 0.3275911
        %v1365 = vmul.f32 %v1237, 0.3275911
        %v1366 = vmul.f32 %v1238, 0.3275911
        %v1367 = vmul.f32 %v1239, 0.3275911
        %v1368 = vmul.f32 %v1240, 0.3275911
        %v1369 = vmul.f32 %v1241, 0.3275911
        %v1370 = vmul.f32 %v1242, 0.3275911
        %v1371 = vmul.f32 %v1243, 0.3275911
        %v1372 = vmul.f32 %v1244, 0.3275911
        %v1373 = vmul.f32 %v1245, 0.3275911
        %v1374 = vmul.f32 %v1246, 0.3275911
        %v1375 = vmul.f32 %v1247, 0.3275911
        %v1376 = vmul.f32 %v1248, 0.3275911
        %v1377 = vmul.f32 %v1249, 0.3275911
        %v1378 = vmul.f32 %v1250, 0.3275911
        %v1379 = vmul.f32 %v1251, 0.3275911
        %v1380 = vmul.f32 %v1252, 0.3275911
        %v1381 = vmul.f32 %v1253, 0.3275911
        %v1382 = vmul.f32 %v1254, 0.3275911
        %v1383 = vmul.f32 %v1255, 0.3275911
        %v1384 = vmul.f32 %v1256, 0.3275911
        %v1385 = vmul.f32 %v1257, 0.3275911
        %v1386 = vmul.f32 %v1258, 0.3275911
        %v1387 = vmul.f32 %v1259, 0.3275911
        %v1388 = vmul.f32 %v1260, 0.3275911
        %v1389 = vmul.f32 %v1261, 0.3275911
        %v1390 = vmul.f32 %v1262, 0.3275911
        %v1391 = vmul.f32 %v1263, 0.3275911
        %v1392 = vadd.f32 %v1264, 1.0
        %v1393 = vadd.f32 %v1265, 1.0
        %v1394 = vadd.f32 %v1266, 1.0
        %v1395 = vadd.f32 %v1267, 1.0
        %v1396 = vadd.f32 %v1268, 1.0
        %v1397 = vadd.f32 %v1269, 1.0
        %v1398 = vadd.f32 %v1270, 1.0
        %v1399 = vadd.f32 %v1271, 1.0
        %v1400 = vadd.f32 %v1272, 1.0
        %v1401 = vadd.f32 %v1273, 1.0
        %v1402 = vadd.f32 %v1274, 1.0
        %v1403 = vadd.f32 %v1275, 1.0
        %v1404 = vadd.f32 %v1276, 1.0
        %v1405 = vadd.f32 %v1277, 1.0
        %v1406 = vadd.f32 %v1278, 1.0
        %v1407 = vadd.f32 %v1279, 1.0
        %v1408 = vadd.f32 %v1280, 1.0
        %v1409 = vadd.f32 %v1281, 1.0
        %v1410 = vadd.f32 %v1282, 1.0
        %v1411 = vadd.f32 %v1283, 1.0
        %v1412 = vadd.f32 %v1284, 1.0
        %v1413 = vadd.f32 %v1285, 1.0
        %v1414 = vadd.f32 %v1286, 1.0
        %v1415 = vadd.f32 %v1287, 1.0
        %v1416 = vadd.f32 %v1288, 1.0
        %v1417 = vadd.f32 %v1289, 1.0
        %v1418 = vadd.f32 %v1290, 1.0
        %v1419 = vadd.f32 %v1291, 1.0
        %v1420 = vadd.f32 %v1292, 1.0
        %v1421 = vadd.f32 %v1293, 1.0
        %v1422 = vadd.f32 %v1294, 1.0
        %v1423 = vadd.f32 %v1295, 1.0
        %v1424 = vadd.f32 %v1296, 1.0
        %v1425 = vadd.f32 %v1297, 1.0
        %v1426 = vadd.f32 %v1298, 1.0
        %v1427 = vadd.f32 %v1299, 1.0
        %v1428 = vadd.f32 %v1300, 1.0
        %v1429 = vadd.f32 %v1301, 1.0
        %v1430 = vadd.f32 %v1302, 1.0
        %v1431 = vadd.f32 %v1303, 1.0
        %v1432 = vadd.f32 %v1304, 1.0
        %v1433 = vadd.f32 %v1305, 1.0
        %v1434 = vadd.f32 %v1306, 1.0
        %v1435 = vadd.f32 %v1307, 1.0
        %v1436 = vadd.f32 %v1308, 1.0
        %v1437 = vadd.f32 %v1309, 1.0
        %v1438 = vadd.f32 %v1310, 1.0
        %v1439 = vadd.f32 %v1311, 1.0
        %v1440 = vadd.f32 %v1312, 1.0
        %v1441 = vadd.f32 %v1313, 1.0
        %v1442 = vadd.f32 %v1314, 1.0
        %v1443 = vadd.f32 %v1315, 1.0
        %v1444 = vadd.f32 %v1316, 1.0
        %v1445 = vadd.f32 %v1317, 1.0
        %v1446 = vadd.f32 %v1318, 1.0
        %v1447 = vadd.f32 %v1319, 1.0
        %v1448 = vadd.f32 %v1320, 1.0
        %v1449 = vadd.f32 %v1321, 1.0
        %v1450 = vadd.f32 %v1322, 1.0
        %v1451 = vadd.f32 %v1323, 1.0
        %v1452 = vadd.f32 %v1324, 1.0
        %v1453 = vadd.f32 %v1325, 1.0
        %v1454 = vadd.f32 %v1326, 1.0
        %v1455 = vadd.f32 %v1327, 1.0
        %v1456 = vadd.f32 %v1328, 1.0
        %v1457 = vadd.f32 %v1329, 1.0
        %v1458 = vadd.f32 %v1330, 1.0
        %v1459 = vadd.f32 %v1331, 1.0
        %v1460 = vadd.f32 %v1332, 1.0
        %v1461 = vadd.f32 %v1333, 1.0
        %v1462 = vadd.f32 %v1334, 1.0
        %v1463 = vadd.f32 %v1335, 1.0
        %v1464 = vadd.f32 %v1336, 1.0
        %v1465 = vadd.f32 %v1337, 1.0
        %v1466 = vadd.f32 %v1338, 1.0
        %v1467 = vadd.f32 %v1339, 1.0
        %v1468 = vadd.f32 %v1340, 1.0
        %v1469 = vadd.f32 %v1341, 1.0
        %v1470 = vadd.f32 %v1342, 1.0
        %v1471 = vadd.f32 %v1343, 1.0
        %v1472 = vadd.f32 %v1344, 1.0
        %v1473 = vadd.f32 %v1345, 1.0
        %v1474 = vadd.f32 %v1346, 1.0
        %v1475 = vadd.f32 %v1347, 1.0
        %v1476 = vadd.f32 %v1348, 1.0
        %v1477 = vadd.f32 %v1349, 1.0
        %v1478 = vadd.f32 %v1350, 1.0
        %v1479 = vadd.f32 %v1351, 1.0
        %v1480 = vadd.f32 %v1352, 1.0
        %v1481 = vadd.f32 %v1353, 1.0
        %v1482 = vadd.f32 %v1354, 1.0
        %v1483 = vadd.f32 %v1355, 1.0
        %v1484 = vadd.f32 %v1356, 1.0
        %v1485 = vadd.f32 %v1357, 1.0
        %v1486 = vadd.f32 %v1358, 1.0
        %v1487 = vadd.f32 %v1359, 1.0
        %v1488 = vadd.f32 %v1360, 1.0
        %v1489 = vadd.f32 %v1361, 1.0
        %v1490 = vadd.f32 %v1362, 1.0
        %v1491 = vadd.f32 %v1363, 1.0
        %v1492 = vadd.f32 %v1364, 1.0
        %v1493 = vadd.f32 %v1365, 1.0
        %v1494 = vadd.f32 %v1366, 1.0
        %v1495 = vadd.f32 %v1367, 1.0
        %v1496 = vadd.f32 %v1368, 1.0
        %v1497 = vadd.f32 %v1369, 1.0
        %v1498 = vadd.f32 %v1370, 1.0
        %v1499 = vadd.f32 %v1371, 1.0
        %v1500 = vadd.f32 %v1372, 1.0
        %v1501 = vadd.f32 %v1373, 1.0
        %v1502 = vadd.f32 %v1374, 1.0
        %v1503 = vadd.f32 %v1375, 1.0
        %v1504 = vadd.f32 %v1376, 1.0
        %v1505 = vadd.f32 %v1377, 1.0
        %v1506 = vadd.f32 %v1378, 1.0
        %v1507 = vadd.f32 %v1379, 1.0
        %v1508 = vadd.f32 %v1380, 1.0
        %v1509 = vadd.f32 %v1381, 1.0
        %v1510 = vadd.f32 %v1382, 1.0
        %v1511 = vadd.f32 %v1383, 1.0
        %v1512 = vadd.f32 %v1384, 1.0
        %v1513 = vadd.f32 %v1385, 1.0
        %v1514 = vadd.f32 %v1386, 1.0
        %v1515 = vadd.f32 %v1387, 1.0
        %v1516 = vadd.f32 %v1388, 1.0
        %v1517 = vadd.f32 %v1389, 1.0
        %v1518 = vadd.f32 %v1390, 1.0
        %v1519 = vadd.f32 %v1391, 1.0
        %v1520 = vrcp.pop %v1392
        %v1521 = vmul.f32 1.0, %v1520
        %v1522 = vrcp.pop %v1393
        %v1523 = vmul.f32 1.0, %v1522
        %v1524 = vrcp.pop %v1394
        %v1525 = vmul.f32 1.0, %v1524
        %v1526 = vrcp.pop %v1395
        %v1527 = vmul.f32 1.0, %v1526
        %v1528 = vrcp.pop %v1396
        %v1529 = vmul.f32 1.0, %v1528
        %v1530 = vrcp.pop %v1397
        %v1531 = vmul.f32 1.0, %v1530
        %v1532 = vrcp.pop %v1398
        %v1533 = vmul.f32 1.0, %v1532
        %v1534 = vrcp.pop %v1399
        %v1535 = vmul.f32 1.0, %v1534
        %v1536 = vrcp.pop %v1400
        %v1537 = vmul.f32 1.0, %v1536
        %v1538 = vrcp.pop %v1401
        %v1539 = vmul.f32 1.0, %v1538
        %v1540 = vrcp.pop %v1402
        %v1541 = vmul.f32 1.0, %v1540
        %v1542 = vrcp.pop %v1403
        %v1543 = vmul.f32 1.0, %v1542
        %v1544 = vrcp.pop %v1404
        %v1545 = vmul.f32 1.0, %v1544
        %v1546 = vrcp.pop %v1405
        %v1547 = vmul.f32 1.0, %v1546
        %v1548 = vrcp.pop %v1406
        %v1549 = vmul.f32 1.0, %v1548
        %v1550 = vrcp.pop %v1407
        %v1551 = vmul.f32 1.0, %v1550
        %v1552 = vrcp.pop %v1408
        %v1553 = vmul.f32 1.0, %v1552
        %v1554 = vrcp.pop %v1409
        %v1555 = vmul.f32 1.0, %v1554
        %v1556 = vrcp.pop %v1410
        %v1557 = vmul.f32 1.0, %v1556
        %v1558 = vrcp.pop %v1411
        %v1559 = vmul.f32 1.0, %v1558
        %v1560 = vrcp.pop %v1412
        %v1561 = vmul.f32 1.0, %v1560
        %v1562 = vrcp.pop %v1413
        %v1563 = vmul.f32 1.0, %v1562
        %v1564 = vrcp.pop %v1414
        %v1565 = vmul.f32 1.0, %v1564
        %v1566 = vrcp.pop %v1415
        %v1567 = vmul.f32 1.0, %v1566
        %v1568 = vrcp.pop %v1416
        %v1569 = vmul.f32 1.0, %v1568
        %v1570 = vrcp.pop %v1417
        %v1571 = vmul.f32 1.0, %v1570
        %v1572 = vrcp.pop %v1418
        %v1573 = vmul.f32 1.0, %v1572
        %v1574 = vrcp.pop %v1419
        %v1575 = vmul.f32 1.0, %v1574
        %v1576 = vrcp.pop %v1420
        %v1577 = vmul.f32 1.0, %v1576
        %v1578 = vrcp.pop %v1421
        %v1579 = vmul.f32 1.0, %v1578
        %v1580 = vrcp.pop %v1422
        %v1581 = vmul.f32 1.0, %v1580
        %v1582 = vrcp.pop %v1423
        %v1583 = vmul.f32 1.0, %v1582
        %v1584 = vrcp.pop %v1424
        %v1585 = vmul.f32 1.0, %v1584
        %v1586 = vrcp.pop %v1425
        %v1587 = vmul.f32 1.0, %v1586
        %v1588 = vrcp.pop %v1426
        %v1589 = vmul.f32 1.0, %v1588
        %v1590 = vrcp.pop %v1427
        %v1591 = vmul.f32 1.0, %v1590
        %v1592 = vrcp.pop %v1428
        %v1593 = vmul.f32 1.0, %v1592
        %v1594 = vrcp.pop %v1429
        %v1595 = vmul.f32 1.0, %v1594
        %v1596 = vrcp.pop %v1430
        %v1597 = vmul.f32 1.0, %v1596
        %v1598 = vrcp.pop %v1431
        %v1599 = vmul.f32 1.0, %v1598
        %v1600 = vrcp.pop %v1432
        %v1601 = vmul.f32 1.0, %v1600
        %v1602 = vrcp.pop %v1433
        %v1603 = vmul.f32 1.0, %v1602
        %v1604 = vrcp.pop %v1434
        %v1605 = vmul.f32 1.0, %v1604
        %v1606 = vrcp.pop %v1435
        %v1607 = vmul.f32 1.0, %v1606
        %v1608 = vrcp.pop %v1436
        %v1609 = vmul.f32 1.0, %v1608
        %v1610 = vrcp.pop %v1437
        %v1611 = vmul.f32 1.0, %v1610
        %v1612 = vrcp.pop %v1438
        %v1613 = vmul.f32 1.0, %v1612
        %v1614 = vrcp.pop %v1439
        %v1615 = vmul.f32 1.0, %v1614
        %v1616 = vrcp.pop %v1440
        %v1617 = vmul.f32 1.0, %v1616
        %v1618 = vrcp.pop %v1441
        %v1619 = vmul.f32 1.0, %v1618
        %v1620 = vrcp.pop %v1442
        %v1621 = vmul.f32 1.0, %v1620
        %v1622 = vrcp.pop %v1443
        %v1623 = vmul.f32 1.0, %v1622
        %v1624 = vrcp.pop %v1444
        %v1625 = vmul.f32 1.0, %v1624
        %v1626 = vrcp.pop %v1445
        %v1627 = vmul.f32 1.0, %v1626
        %v1628 = vrcp.pop %v1446
        %v1629 = vmul.f32 1.0, %v1628
        %v1630 = vrcp.pop %v1447
        %v1631 = vmul.f32 1.0, %v1630
        %v1632 = vrcp.pop %v1448
        %v1633 = vmul.f32 1.0, %v1632
        %v1634 = vrcp.pop %v1449
        %v1635 = vmul.f32 1.0, %v1634
        %v1636 = vrcp.pop %v1450
        %v1637 = vmul.f32 1.0, %v1636
        %v1638 = vrcp.pop %v1451
        %v1639 = vmul.f32 1.0, %v1638
        %v1640 = vrcp.pop %v1452
        %v1641 = vmul.f32 1.0, %v1640
        %v1642 = vrcp.pop %v1453
        %v1643 = vmul.f32 1.0, %v1642
        %v1644 = vrcp.pop %v1454
        %v1645 = vmul.f32 1.0, %v1644
        %v1646 = vrcp.pop %v1455
        %v1647 = vmul.f32 1.0, %v1646
        %v1648 = vrcp.pop %v1456
        %v1649 = vmul.f32 1.0, %v1648
        %v1650 = vrcp.pop %v1457
        %v1651 = vmul.f32 1.0, %v1650
        %v1652 = vrcp.pop %v1458
        %v1653 = vmul.f32 1.0, %v1652
        %v1654 = vrcp.pop %v1459
        %v1655 = vmul.f32 1.0, %v1654
        %v1656 = vrcp.pop %v1460
        %v1657 = vmul.f32 1.0, %v1656
        %v1658 = vrcp.pop %v1461
        %v1659 = vmul.f32 1.0, %v1658
        %v1660 = vrcp.pop %v1462
        %v1661 = vmul.f32 1.0, %v1660
        %v1662 = vrcp.pop %v1463
        %v1663 = vmul.f32 1.0, %v1662
        %v1664 = vrcp.pop %v1464
        %v1665 = vmul.f32 1.0, %v1664
        %v1666 = vrcp.pop %v1465
        %v1667 = vmul.f32 1.0, %v1666
        %v1668 = vrcp.pop %v1466
        %v1669 = vmul.f32 1.0, %v1668
        %v1670 = vrcp.pop %v1467
        %v1671 = vmul.f32 1.0, %v1670
        %v1672 = vrcp.pop %v1468
        %v1673 = vmul.f32 1.0, %v1672
        %v1674 = vrcp.pop %v1469
        %v1675 = vmul.f32 1.0, %v1674
        %v1676 = vrcp.pop %v1470
        %v1677 = vmul.f32 1.0, %v1676
        %v1678 = vrcp.pop %v1471
        %v1679 = vmul.f32 1.0, %v1678
        %v1680 = vrcp.pop %v1472
        %v1681 = vmul.f32 1.0, %v1680
        %v1682 = vrcp.pop %v1473
        %v1683 = vmul.f32 1.0, %v1682
        %v1684 = vrcp.pop %v1474
        %v1685 = vmul.f32 1.0, %v1684
        %v1686 = vrcp.pop %v1475
        %v1687 = vmul.f32 1.0, %v1686
        %v1688 = vrcp.pop %v1476
        %v1689 = vmul.f32 1.0, %v1688
        %v1690 = vrcp.pop %v1477
        %v1691 = vmul.f32 1.0, %v1690
        %v1692 = vrcp.pop %v1478
        %v1693 = vmul.f32 1.0, %v1692
        %v1694 = vrcp.pop %v1479
        %v1695 = vmul.f32 1.0, %v1694
        %v1696 = vrcp.pop %v1480
        %v1697 = vmul.f32 1.0, %v1696
        %v1698 = vrcp.pop %v1481
        %v1699 = vmul.f32 1.0, %v1698
        %v1700 = vrcp.pop %v1482
        %v1701 = vmul.f32 1.0, %v1700
        %v1702 = vrcp.pop %v1483
        %v1703 = vmul.f32 1.0, %v1702
        %v1704 = vrcp.pop %v1484
        %v1705 = vmul.f32 1.0, %v1704
        %v1706 = vrcp.pop %v1485
        %v1707 = vmul.f32 1.0, %v1706
        %v1708 = vrcp.pop %v1486
        %v1709 = vmul.f32 1.0, %v1708
        %v1710 = vrcp.pop %v1487
        %v1711 = vmul.f32 1.0, %v1710
        %v1712 = vrcp.pop %v1488
        %v1713 = vmul.f32 1.0, %v1712
        %v1714 = vrcp.pop %v1489
        %v1715 = vmul.f32 1.0, %v1714
        %v1716 = vrcp.pop %v1490
        %v1717 = vmul.f32 1.0, %v1716
        %v1718 = vrcp.pop %v1491
        %v1719 = vmul.f32 1.0, %v1718
        %v1720 = vrcp.pop %v1492
        %v1721 = vmul.f32 1.0, %v1720
        %v1722 = vrcp.pop %v1493
        %v1723 = vmul.f32 1.0, %v1722
        %v1724 = vrcp.pop %v1494
        %v1725 = vmul.f32 1.0, %v1724
        %v1726 = vrcp.pop %v1495
        %v1727 = vmul.f32 1.0, %v1726
        %v1728 = vrcp.pop %v1496
        %v1729 = vmul.f32 1.0, %v1728
        %v1730 = vrcp.pop %v1497
        %v1731 = vmul.f32 1.0, %v1730
        %v1732 = vrcp.pop %v1498
        %v1733 = vmul.f32 1.0, %v1732
        %v1734 = vrcp.pop %v1499
        %v1735 = vmul.f32 1.0, %v1734
        %v1736 = vrcp.pop %v1500
        %v1737 = vmul.f32 1.0, %v1736
        %v1738 = vrcp.pop %v1501
        %v1739 = vmul.f32 1.0, %v1738
        %v1740 = vrcp.pop %v1502
        %v1741 = vmul.f32 1.0, %v1740
        %v1742 = vrcp.pop %v1503
        %v1743 = vmul.f32 1.0, %v1742
        %v1744 = vrcp.pop %v1504
        %v1745 = vmul.f32 1.0, %v1744
        %v1746 = vrcp.pop %v1505
        %v1747 = vmul.f32 1.0, %v1746
        %v1748 = vrcp.pop %v1506
        %v1749 = vmul.f32 1.0, %v1748
        %v1750 = vrcp.pop %v1507
        %v1751 = vmul.f32 1.0, %v1750
        %v1752 = vrcp.pop %v1508
        %v1753 = vmul.f32 1.0, %v1752
        %v1754 = vrcp.pop %v1509
        %v1755 = vmul.f32 1.0, %v1754
        %v1756 = vrcp.pop %v1510
        %v1757 = vmul.f32 1.0, %v1756
        %v1758 = vrcp.pop %v1511
        %v1759 = vmul.f32 1.0, %v1758
        %v1760 = vrcp.pop %v1512
        %v1761 = vmul.f32 1.0, %v1760
        %v1762 = vrcp.pop %v1513
        %v1763 = vmul.f32 1.0, %v1762
        %v1764 = vrcp.pop %v1514
        %v1765 = vmul.f32 1.0, %v1764
        %v1766 = vrcp.pop %v1515
        %v1767 = vmul.f32 1.0, %v1766
        %v1768 = vrcp.pop %v1516
        %v1769 = vmul.f32 1.0, %v1768
        %v1770 = vrcp.pop %v1517
        %v1771 = vmul.f32 1.0, %v1770
        %v1772 = vrcp.pop %v1518
        %v1773 = vmul.f32 1.0, %v1772
        %v1774 = vrcp.pop %v1519
        %v1775 = vmul.f32 1.0, %v1774
        %v1776 = vmul.f32 %v1521, 1.0614054
        %v1777 = vmul.f32 %v1523, 1.0614054
        %v1778 = vmul.f32 %v1525, 1.0614054
        %v1779 = vmul.f32 %v1527, 1.0614054
        %v1780 = vmul.f32 %v1529, 1.0614054
        %v1781 = vmul.f32 %v1531, 1.0614054
        %v1782 = vmul.f32 %v1533, 1.0614054
        %v1783 = vmul.f32 %v1535, 1.0614054
        %v1784 = vmul.f32 %v1537, 1.0614054
        %v1785 = vmul.f32 %v1539, 1.0614054
        %v1786 = vmul.f32 %v1541, 1.0614054
        %v1787 = vmul.f32 %v1543, 1.0614054
        %v1788 = vmul.f32 %v1545, 1.0614054
        %v1789 = vmul.f32 %v1547, 1.0614054
        %v1790 = vmul.f32 %v1549, 1.0614054
        %v1791 = vmul.f32 %v1551, 1.0614054
        %v1792 = vmul.f32 %v1553, 1.0614054
        %v1793 = vmul.f32 %v1555, 1.0614054
        %v1794 = vmul.f32 %v1557, 1.0614054
        %v1795 = vmul.f32 %v1559, 1.0614054
        %v1796 = vmul.f32 %v1561, 1.0614054
        %v1797 = vmul.f32 %v1563, 1.0614054
        %v1798 = vmul.f32 %v1565, 1.0614054
        %v1799 = vmul.f32 %v1567, 1.0614054
        %v1800 = vmul.f32 %v1569, 1.0614054
        %v1801 = vmul.f32 %v1571, 1.0614054
        %v1802 = vmul.f32 %v1573, 1.0614054
        %v1803 = vmul.f32 %v1575, 1.0614054
        %v1804 = vmul.f32 %v1577, 1.0614054
        %v1805 = vmul.f32 %v1579, 1.0614054
        %v1806 = vmul.f32 %v1581, 1.0614054
        %v1807 = vmul.f32 %v1583, 1.0614054
        %v1808 = vmul.f32 %v1585, 1.0614054
        %v1809 = vmul.f32 %v1587, 1.0614054
        %v1810 = vmul.f32 %v1589, 1.0614054
        %v1811 = vmul.f32 %v1591, 1.0614054
        %v1812 = vmul.f32 %v1593, 1.0614054
        %v1813 = vmul.f32 %v1595, 1.0614054
        %v1814 = vmul.f32 %v1597, 1.0614054
        %v1815 = vmul.f32 %v1599, 1.0614054
        %v1816 = vmul.f32 %v1601, 1.0614054
        %v1817 = vmul.f32 %v1603, 1.0614054
        %v1818 = vmul.f32 %v1605, 1.0614054
        %v1819 = vmul.f32 %v1607, 1.0614054
        %v1820 = vmul.f32 %v1609, 1.0614054
        %v1821 = vmul.f32 %v1611, 1.0614054
        %v1822 = vmul.f32 %v1613, 1.0614054
        %v1823 = vmul.f32 %v1615, 1.0614054
        %v1824 = vmul.f32 %v1617, 1.0614054
        %v1825 = vmul.f32 %v1619, 1.0614054
        %v1826 = vmul.f32 %v1621, 1.0614054
        %v1827 = vmul.f32 %v1623, 1.0614054
        %v1828 = vmul.f32 %v1625, 1.0614054
        %v1829 = vmul.f32 %v1627, 1.0614054
        %v1830 = vmul.f32 %v1629, 1.0614054
        %v1831 = vmul.f32 %v1631, 1.0614054
        %v1832 = vmul.f32 %v1633, 1.0614054
        %v1833 = vmul.f32 %v1635, 1.0614054
        %v1834 = vmul.f32 %v1637, 1.0614054
        %v1835 = vmul.f32 %v1639, 1.0614054
        %v1836 = vmul.f32 %v1641, 1.0614054
        %v1837 = vmul.f32 %v1643, 1.0614054
        %v1838 = vmul.f32 %v1645, 1.0614054
        %v1839 = vmul.f32 %v1647, 1.0614054
        %v1840 = vmul.f32 %v1649, 1.0614054
        %v1841 = vmul.f32 %v1651, 1.0614054
        %v1842 = vmul.f32 %v1653, 1.0614054
        %v1843 = vmul.f32 %v1655, 1.0614054
        %v1844 = vmul.f32 %v1657, 1.0614054
        %v1845 = vmul.f32 %v1659, 1.0614054
        %v1846 = vmul.f32 %v1661, 1.0614054
        %v1847 = vmul.f32 %v1663, 1.0614054
        %v1848 = vmul.f32 %v1665, 1.0614054
        %v1849 = vmul.f32 %v1667, 1.0614054
        %v1850 = vmul.f32 %v1669, 1.0614054
        %v1851 = vmul.f32 %v1671, 1.0614054
        %v1852 = vmul.f32 %v1673, 1.0614054
        %v1853 = vmul.f32 %v1675, 1.0614054
        %v1854 = vmul.f32 %v1677, 1.0614054
        %v1855 = vmul.f32 %v1679, 1.0614054
        %v1856 = vmul.f32 %v1681, 1.0614054
        %v1857 = vmul.f32 %v1683, 1.0614054
        %v1858 = vmul.f32 %v1685, 1.0614054
        %v1859 = vmul.f32 %v1687, 1.0614054
        %v1860 = vmul.f32 %v1689, 1.0614054
        %v1861 = vmul.f32 %v1691, 1.0614054
        %v1862 = vmul.f32 %v1693, 1.0614054
        %v1863 = vmul.f32 %v1695, 1.0614054
        %v1864 = vmul.f32 %v1697, 1.0614054
        %v1865 = vmul.f32 %v1699, 1.0614054
        %v1866 = vmul.f32 %v1701, 1.0614054
        %v1867 = vmul.f32 %v1703, 1.0614054
        %v1868 = vmul.f32 %v1705, 1.0614054
        %v1869 = vmul.f32 %v1707, 1.0614054
        %v1870 = vmul.f32 %v1709, 1.0614054
        %v1871 = vmul.f32 %v1711, 1.0614054
        %v1872 = vmul.f32 %v1713, 1.0614054
        %v1873 = vmul.f32 %v1715, 1.0614054
        %v1874 = vmul.f32 %v1717, 1.0614054
        %v1875 = vmul.f32 %v1719, 1.0614054
        %v1876 = vmul.f32 %v1721, 1.0614054
        %v1877 = vmul.f32 %v1723, 1.0614054
        %v1878 = vmul.f32 %v1725, 1.0614054
        %v1879 = vmul.f32 %v1727, 1.0614054
        %v1880 = vmul.f32 %v1729, 1.0614054
        %v1881 = vmul.f32 %v1731, 1.0614054
        %v1882 = vmul.f32 %v1733, 1.0614054
        %v1883 = vmul.f32 %v1735, 1.0614054
        %v1884 = vmul.f32 %v1737, 1.0614054
        %v1885 = vmul.f32 %v1739, 1.0614054
        %v1886 = vmul.f32 %v1741, 1.0614054
        %v1887 = vmul.f32 %v1743, 1.0614054
        %v1888 = vmul.f32 %v1745, 1.0614054
        %v1889 = vmul.f32 %v1747, 1.0614054
        %v1890 = vmul.f32 %v1749, 1.0614054
        %v1891 = vmul.f32 %v1751, 1.0614054
        %v1892 = vmul.f32 %v1753, 1.0614054
        %v1893 = vmul.f32 %v1755, 1.0614054
        %v1894 = vmul.f32 %v1757, 1.0614054
        %v1895 = vmul.f32 %v1759, 1.0614054
        %v1896 = vmul.f32 %v1761, 1.0614054
        %v1897 = vmul.f32 %v1763, 1.0614054
        %v1898 = vmul.f32 %v1765, 1.0614054
        %v1899 = vmul.f32 %v1767, 1.0614054
        %v1900 = vmul.f32 %v1769, 1.0614054
        %v1901 = vmul.f32 %v1771, 1.0614054
        %v1902 = vmul.f32 %v1773, 1.0614054
        %v1903 = vmul.f32 %v1775, 1.0614054
        %v1904 = vadd.f32 %v1776, -1.4531521
        %v1905 = vadd.f32 %v1777, -1.4531521
        %v1906 = vadd.f32 %v1778, -1.4531521
        %v1907 = vadd.f32 %v1779, -1.4531521
        %v1908 = vadd.f32 %v1780, -1.4531521
        %v1909 = vadd.f32 %v1781, -1.4531521
        %v1910 = vadd.f32 %v1782, -1.4531521
        %v1911 = vadd.f32 %v1783, -1.4531521
        %v1912 = vadd.f32 %v1784, -1.4531521
        %v1913 = vadd.f32 %v1785, -1.4531521
        %v1914 = vadd.f32 %v1786, -1.4531521
        %v1915 = vadd.f32 %v1787, -1.4531521
        %v1916 = vadd.f32 %v1788, -1.4531521
        %v1917 = vadd.f32 %v1789, -1.4531521
        %v1918 = vadd.f32 %v1790, -1.4531521
        %v1919 = vadd.f32 %v1791, -1.4531521
        %v1920 = vadd.f32 %v1792, -1.4531521
        %v1921 = vadd.f32 %v1793, -1.4531521
        %v1922 = vadd.f32 %v1794, -1.4531521
        %v1923 = vadd.f32 %v1795, -1.4531521
        %v1924 = vadd.f32 %v1796, -1.4531521
        %v1925 = vadd.f32 %v1797, -1.4531521
        %v1926 = vadd.f32 %v1798, -1.4531521
        %v1927 = vadd.f32 %v1799, -1.4531521
        %v1928 = vadd.f32 %v1800, -1.4531521
        %v1929 = vadd.f32 %v1801, -1.4531521
        %v1930 = vadd.f32 %v1802, -1.4531521
        %v1931 = vadd.f32 %v1803, -1.4531521
        %v1932 = vadd.f32 %v1804, -1.4531521
        %v1933 = vadd.f32 %v1805, -1.4531521
        %v1934 = vadd.f32 %v1806, -1.4531521
        %v1935 = vadd.f32 %v1807, -1.4531521
        %v1936 = vadd.f32 %v1808, -1.4531521
        %v1937 = vadd.f32 %v1809, -1.4531521
        %v1938 = vadd.f32 %v1810, -1.4531521
        %v1939 = vadd.f32 %v1811, -1.4531521
        %v1940 = vadd.f32 %v1812, -1.4531521
        %v1941 = vadd.f32 %v1813, -1.4531521
        %v1942 = vadd.f32 %v1814, -1.4531521
        %v1943 = vadd.f32 %v1815, -1.4531521
        %v1944 = vadd.f32 %v1816, -1.4531521
        %v1945 = vadd.f32 %v1817, -1.4531521
        %v1946 = vadd.f32 %v1818, -1.4531521
        %v1947 = vadd.f32 %v1819, -1.4531521
        %v1948 = vadd.f32 %v1820, -1.4531521
        %v1949 = vadd.f32 %v1821, -1.4531521
        %v1950 = vadd.f32 %v1822, -1.4531521
        %v1951 = vadd.f32 %v1823, -1.4531521
        %v1952 = vadd.f32 %v1824, -1.4531521
        %v1953 = vadd.f32 %v1825, -1.4531521
        %v1954 = vadd.f32 %v1826, -1.4531521
        %v1955 = vadd.f32 %v1827, -1.4531521
        %v1956 = vadd.f32 %v1828, -1.4531521
        %v1957 = vadd.f32 %v1829, -1.4531521
        %v1958 = vadd.f32 %v1830, -1.4531521
        %v1959 = vadd.f32 %v1831, -1.4531521
        %v1960 = vadd.f32 %v1832, -1.4531521
        %v1961 = vadd.f32 %v1833, -1.4531521
        %v1962 = vadd.f32 %v1834, -1.4531521
        %v1963 = vadd.f32 %v1835, -1.4531521
        %v1964 = vadd.f32 %v1836, -1.4531521
        %v1965 = vadd.f32 %v1837, -1.4531521
        %v1966 = vadd.f32 %v1838, -1.4531521
        %v1967 = vadd.f32 %v1839, -1.4531521
        %v1968 = vadd.f32 %v1840, -1.4531521
        %v1969 = vadd.f32 %v1841, -1.4531521
        %v1970 = vadd.f32 %v1842, -1.4531521
        %v1971 = vadd.f32 %v1843, -1.4531521
        %v1972 = vadd.f32 %v1844, -1.4531521
        %v1973 = vadd.f32 %v1845, -1.4531521
        %v1974 = vadd.f32 %v1846, -1.4531521
        %v1975 = vadd.f32 %v1847, -1.4531521
        %v1976 = vadd.f32 %v1848, -1.4531521
        %v1977 = vadd.f32 %v1849, -1.4531521
        %v1978 = vadd.f32 %v1850, -1.4531521
        %v1979 = vadd.f32 %v1851, -1.4531521
        %v1980 = vadd.f32 %v1852, -1.4531521
        %v1981 = vadd.f32 %v1853, -1.4531521
        %v1982 = vadd.f32 %v1854, -1.4531521
        %v1983 = vadd.f32 %v1855, -1.4531521
        %v1984 = vadd.f32 %v1856, -1.4531521
        %v1985 = vadd.f32 %v1857, -1.4531521
        %v1986 = vadd.f32 %v1858, -1.4531521
        %v1987 = vadd.f32 %v1859, -1.4531521
        %v1988 = vadd.f32 %v1860, -1.4531521
        %v1989 = vadd.f32 %v1861, -1.4531521
        %v1990 = vadd.f32 %v1862, -1.4531521
        %v1991 = vadd.f32 %v1863, -1.4531521
        %v1992 = vadd.f32 %v1864, -1.4531521
        %v1993 = vadd.f32 %v1865, -1.4531521
        %v1994 = vadd.f32 %v1866, -1.4531521
        %v1995 = vadd.f32 %v1867, -1.4531521
        %v1996 = vadd.f32 %v1868, -1.4531521
        %v1997 = vadd.f32 %v1869, -1.4531521
        %v1998 = vadd.f32 %v1870, -1.4531521
        %v1999 = vadd.f32 %v1871, -1.4531521
        %v2000 = vadd.f32 %v1872, -1.4531521
        %v2001 = vadd.f32 %v1873, -1.4531521
        %v2002 = vadd.f32 %v1874, -1.4531521
        %v2003 = vadd.f32 %v1875, -1.4531521
        %v2004 = vadd.f32 %v1876, -1.4531521
        %v2005 = vadd.f32 %v1877, -1.4531521
        %v2006 = vadd.f32 %v1878, -1.4531521
        %v2007 = vadd.f32 %v1879, -1.4531521
        %v2008 = vadd.f32 %v1880, -1.4531521
        %v2009 = vadd.f32 %v1881, -1.4531521
        %v2010 = vadd.f32 %v1882, -1.4531521
        %v2011 = vadd.f32 %v1883, -1.4531521
        %v2012 = vadd.f32 %v1884, -1.4531521
        %v2013 = vadd.f32 %v1885, -1.4531521
        %v2014 = vadd.f32 %v1886, -1.4531521
        %v2015 = vadd.f32 %v1887, -1.4531521
        %v2016 = vadd.f32 %v1888, -1.4531521
        %v2017 = vadd.f32 %v1889, -1.4531521
        %v2018 = vadd.f32 %v1890, -1.4531521
        %v2019 = vadd.f32 %v1891, -1.4531521
        %v2020 = vadd.f32 %v1892, -1.4531521
        %v2021 = vadd.f32 %v1893, -1.4531521
        %v2022 = vadd.f32 %v1894, -1.4531521
        %v2023 = vadd.f32 %v1895, -1.4531521
        %v2024 = vadd.f32 %v1896, -1.4531521
        %v2025 = vadd.f32 %v1897, -1.4531521
        %v2026 = vadd.f32 %v1898, -1.4531521
        %v2027 = vadd.f32 %v1899, -1.4531521
        %v2028 = vadd.f32 %v1900, -1.4531521
        %v2029 = vadd.f32 %v1901, -1.4531521
        %v2030 = vadd.f32 %v1902, -1.4531521
        %v2031 = vadd.f32 %v1903, -1.4531521
        %v2032 = vmul.f32 %v1904, %v1521
        %v2033 = vmul.f32 %v1905, %v1523
        %v2034 = vmul.f32 %v1906, %v1525
        %v2035 = vmul.f32 %v1907, %v1527
        %v2036 = vmul.f32 %v1908, %v1529
        %v2037 = vmul.f32 %v1909, %v1531
        %v2038 = vmul.f32 %v1910, %v1533
        %v2039 = vmul.f32 %v1911, %v1535
        %v2040 = vmul.f32 %v1912, %v1537
        %v2041 = vmul.f32 %v1913, %v1539
        %v2042 = vmul.f32 %v1914, %v1541
        %v2043 = vmul.f32 %v1915, %v1543
        %v2044 = vmul.f32 %v1916, %v1545
        %v2045 = vmul.f32 %v1917, %v1547
        %v2046 = vmul.f32 %v1918, %v1549
        %v2047 = vmul.f32 %v1919, %v1551
        %v2048 = vmul.f32 %v1920, %v1553
        %v2049 = vmul.f32 %v1921, %v1555
        %v2050 = vmul.f32 %v1922, %v1557
        %v2051 = vmul.f32 %v1923, %v1559
        %v2052 = vmul.f32 %v1924, %v1561
        %v2053 = vmul.f32 %v1925, %v1563
        %v2054 = vmul.f32 %v1926, %v1565
        %v2055 = vmul.f32 %v1927, %v1567
        %v2056 = vmul.f32 %v1928, %v1569
        %v2057 = vmul.f32 %v1929, %v1571
        %v2058 = vmul.f32 %v1930, %v1573
        %v2059 = vmul.f32 %v1931, %v1575
        %v2060 = vmul.f32 %v1932, %v1577
        %v2061 = vmul.f32 %v1933, %v1579
        %v2062 = vmul.f32 %v1934, %v1581
        %v2063 = vmul.f32 %v1935, %v1583
        %v2064 = vmul.f32 %v1936, %v1585
        %v2065 = vmul.f32 %v1937, %v1587
        %v2066 = vmul.f32 %v1938, %v1589
        %v2067 = vmul.f32 %v1939, %v1591
        %v2068 = vmul.f32 %v1940, %v1593
        %v2069 = vmul.f32 %v1941, %v1595
        %v2070 = vmul.f32 %v1942, %v1597
        %v2071 = vmul.f32 %v1943, %v1599
        %v2072 = vmul.f32 %v1944, %v1601
        %v2073 = vmul.f32 %v1945, %v1603
        %v2074 = vmul.f32 %v1946, %v1605
        %v2075 = vmul.f32 %v1947, %v1607
        %v2076 = vmul.f32 %v1948, %v1609
        %v2077 = vmul.f32 %v1949, %v1611
        %v2078 = vmul.f32 %v1950, %v1613
        %v2079 = vmul.f32 %v1951, %v1615
        %v2080 = vmul.f32 %v1952, %v1617
        %v2081 = vmul.f32 %v1953, %v1619
        %v2082 = vmul.f32 %v1954, %v1621
        %v2083 = vmul.f32 %v1955, %v1623
        %v2084 = vmul.f32 %v1956, %v1625
        %v2085 = vmul.f32 %v1957, %v1627
        %v2086 = vmul.f32 %v1958, %v1629
        %v2087 = vmul.f32 %v1959, %v1631
        %v2088 = vmul.f32 %v1960, %v1633
        %v2089 = vmul.f32 %v1961, %v1635
        %v2090 = vmul.f32 %v1962, %v1637
        %v2091 = vmul.f32 %v1963, %v1639
        %v2092 = vmul.f32 %v1964, %v1641
        %v2093 = vmul.f32 %v1965, %v1643
        %v2094 = vmul.f32 %v1966, %v1645
        %v2095 = vmul.f32 %v1967, %v1647
        %v2096 = vmul.f32 %v1968, %v1649
        %v2097 = vmul.f32 %v1969, %v1651
        %v2098 = vmul.f32 %v1970, %v1653
        %v2099 = vmul.f32 %v1971, %v1655
        %v2100 = vmul.f32 %v1972, %v1657
        %v2101 = vmul.f32 %v1973, %v1659
        %v2102 = vmul.f32 %v1974, %v1661
        %v2103 = vmul.f32 %v1975, %v1663
        %v2104 = vmul.f32 %v1976, %v1665
        %v2105 = vmul.f32 %v1977, %v1667
        %v2106 = vmul.f32 %v1978, %v1669
        %v2107 = vmul.f32 %v1979, %v1671
        %v2108 = vmul.f32 %v1980, %v1673
        %v2109 = vmul.f32 %v1981, %v1675
        %v2110 = vmul.f32 %v1982, %v1677
        %v2111 = vmul.f32 %v1983, %v1679
        %v2112 = vmul.f32 %v1984, %v1681
        %v2113 = vmul.f32 %v1985, %v1683
        %v2114 = vmul.f32 %v1986, %v1685
        %v2115 = vmul.f32 %v1987, %v1687
        %v2116 = vmul.f32 %v1988, %v1689
        %v2117 = vmul.f32 %v1989, %v1691
        %v2118 = vmul.f32 %v1990, %v1693
        %v2119 = vmul.f32 %v1991, %v1695
        %v2120 = vmul.f32 %v1992, %v1697
        %v2121 = vmul.f32 %v1993, %v1699
        %v2122 = vmul.f32 %v1994, %v1701
        %v2123 = vmul.f32 %v1995, %v1703
        %v2124 = vmul.f32 %v1996, %v1705
        %v2125 = vmul.f32 %v1997, %v1707
        %v2126 = vmul.f32 %v1998, %v1709
        %v2127 = vmul.f32 %v1999, %v1711
        %v2128 = vmul.f32 %v2000, %v1713
        %v2129 = vmul.f32 %v2001, %v1715
        %v2130 = vmul.f32 %v2002, %v1717
        %v2131 = vmul.f32 %v2003, %v1719
        %v2132 = vmul.f32 %v2004, %v1721
        %v2133 = vmul.f32 %v2005, %v1723
        %v2134 = vmul.f32 %v2006, %v1725
        %v2135 = vmul.f32 %v2007, %v1727
        %v2136 = vmul.f32 %v2008, %v1729
        %v2137 = vmul.f32 %v2009, %v1731
        %v2138 = vmul.f32 %v2010, %v1733
        %v2139 = vmul.f32 %v2011, %v1735
        %v2140 = vmul.f32 %v2012, %v1737
        %v2141 = vmul.f32 %v2013, %v1739
        %v2142 = vmul.f32 %v2014, %v1741
        %v2143 = vmul.f32 %v2015, %v1743
        %v2144 = vmul.f32 %v2016, %v1745
        %v2145 = vmul.f32 %v2017, %v1747
        %v2146 = vmul.f32 %v2018, %v1749
        %v2147 = vmul.f32 %v2019, %v1751
        %v2148 = vmul.f32 %v2020, %v1753
        %v2149 = vmul.f32 %v2021, %v1755
        %v2150 = vmul.f32 %v2022, %v1757
        %v2151 = vmul.f32 %v2023, %v1759
        %v2152 = vmul.f32 %v2024, %v1761
        %v2153 = vmul.f32 %v2025, %v1763
        %v2154 = vmul.f32 %v2026, %v1765
        %v2155 = vmul.f32 %v2027, %v1767
        %v2156 = vmul.f32 %v2028, %v1769
        %v2157 = vmul.f32 %v2029, %v1771
        %v2158 = vmul.f32 %v2030, %v1773
        %v2159 = vmul.f32 %v2031, %v1775
        %v2160 = vadd.f32 %v2032, 1.4214138
        %v2161 = vadd.f32 %v2033, 1.4214138
        %v2162 = vadd.f32 %v2034, 1.4214138
        %v2163 = vadd.f32 %v2035, 1.4214138
        %v2164 = vadd.f32 %v2036, 1.4214138
        %v2165 = vadd.f32 %v2037, 1.4214138
        %v2166 = vadd.f32 %v2038, 1.4214138
        %v2167 = vadd.f32 %v2039, 1.4214138
        %v2168 = vadd.f32 %v2040, 1.4214138
        %v2169 = vadd.f32 %v2041, 1.4214138
        %v2170 = vadd.f32 %v2042, 1.4214138
        %v2171 = vadd.f32 %v2043, 1.4214138
        %v2172 = vadd.f32 %v2044, 1.4214138
        %v2173 = vadd.f32 %v2045, 1.4214138
        %v2174 = vadd.f32 %v2046, 1.4214138
        %v2175 = vadd.f32 %v2047, 1.4214138
        %v2176 = vadd.f32 %v2048, 1.4214138
        %v2177 = vadd.f32 %v2049, 1.4214138
        %v2178 = vadd.f32 %v2050, 1.4214138
        %v2179 = vadd.f32 %v2051, 1.4214138
        %v2180 = vadd.f32 %v2052, 1.4214138
        %v2181 = vadd.f32 %v2053, 1.4214138
        %v2182 = vadd.f32 %v2054, 1.4214138
        %v2183 = vadd.f32 %v2055, 1.4214138
        %v2184 = vadd.f32 %v2056, 1.4214138
        %v2185 = vadd.f32 %v2057, 1.4214138
        %v2186 = vadd.f32 %v2058, 1.4214138
        %v2187 = vadd.f32 %v2059, 1.4214138
        %v2188 = vadd.f32 %v2060, 1.4214138
        %v2189 = vadd.f32 %v2061, 1.4214138
        %v2190 = vadd.f32 %v2062, 1.4214138
        %v2191 = vadd.f32 %v2063, 1.4214138
        %v2192 = vadd.f32 %v2064, 1.4214138
        %v2193 = vadd.f32 %v2065, 1.4214138
        %v2194 = vadd.f32 %v2066, 1.4214138
        %v2195 = vadd.f32 %v2067, 1.4214138
        %v2196 = vadd.f32 %v2068, 1.4214138
        %v2197 = vadd.f32 %v2069, 1.4214138
        %v2198 = vadd.f32 %v2070, 1.4214138
        %v2199 = vadd.f32 %v2071, 1.4214138
        %v2200 = vadd.f32 %v2072, 1.4214138
        %v2201 = vadd.f32 %v2073, 1.4214138
        %v2202 = vadd.f32 %v2074, 1.4214138
        %v2203 = vadd.f32 %v2075, 1.4214138
        %v2204 = vadd.f32 %v2076, 1.4214138
        %v2205 = vadd.f32 %v2077, 1.4214138
        %v2206 = vadd.f32 %v2078, 1.4214138
        %v2207 = vadd.f32 %v2079, 1.4214138
        %v2208 = vadd.f32 %v2080, 1.4214138
        %v2209 = vadd.f32 %v2081, 1.4214138
        %v2210 = vadd.f32 %v2082, 1.4214138
        %v2211 = vadd.f32 %v2083, 1.4214138
        %v2212 = vadd.f32 %v2084, 1.4214138
        %v2213 = vadd.f32 %v2085, 1.4214138
        %v2214 = vadd.f32 %v2086, 1.4214138
        %v2215 = vadd.f32 %v2087, 1.4214138
        %v2216 = vadd.f32 %v2088, 1.4214138
        %v2217 = vadd.f32 %v2089, 1.4214138
        %v2218 = vadd.f32 %v2090, 1.4214138
        %v2219 = vadd.f32 %v2091, 1.4214138
        %v2220 = vadd.f32 %v2092, 1.4214138
        %v2221 = vadd.f32 %v2093, 1.4214138
        %v2222 = vadd.f32 %v2094, 1.4214138
        %v2223 = vadd.f32 %v2095, 1.4214138
        %v2224 = vadd.f32 %v2096, 1.4214138
        %v2225 = vadd.f32 %v2097, 1.4214138
        %v2226 = vadd.f32 %v2098, 1.4214138
        %v2227 = vadd.f32 %v2099, 1.4214138
        %v2228 = vadd.f32 %v2100, 1.4214138
        %v2229 = vadd.f32 %v2101, 1.4214138
        %v2230 = vadd.f32 %v2102, 1.4214138
        %v2231 = vadd.f32 %v2103, 1.4214138
        %v2232 = vadd.f32 %v2104, 1.4214138
        %v2233 = vadd.f32 %v2105, 1.4214138
        %v2234 = vadd.f32 %v2106, 1.4214138
        %v2235 = vadd.f32 %v2107, 1.4214138
        %v2236 = vadd.f32 %v2108, 1.4214138
        %v2237 = vadd.f32 %v2109, 1.4214138
        %v2238 = vadd.f32 %v2110, 1.4214138
        %v2239 = vadd.f32 %v2111, 1.4214138
        %v2240 = vadd.f32 %v2112, 1.4214138
        %v2241 = vadd.f32 %v2113, 1.4214138
        %v2242 = vadd.f32 %v2114, 1.4214138
        %v2243 = vadd.f32 %v2115, 1.4214138
        %v2244 = vadd.f32 %v2116, 1.4214138
        %v2245 = vadd.f32 %v2117, 1.4214138
        %v2246 = vadd.f32 %v2118, 1.4214138
        %v2247 = vadd.f32 %v2119, 1.4214138
        %v2248 = vadd.f32 %v2120, 1.4214138
        %v2249 = vadd.f32 %v2121, 1.4214138
        %v2250 = vadd.f32 %v2122, 1.4214138
        %v2251 = vadd.f32 %v2123, 1.4214138
        %v2252 = vadd.f32 %v2124, 1.4214138
        %v2253 = vadd.f32 %v2125, 1.4214138
        %v2254 = vadd.f32 %v2126, 1.4214138
        %v2255 = vadd.f32 %v2127, 1.4214138
        %v2256 = vadd.f32 %v2128, 1.4214138
        %v2257 = vadd.f32 %v2129, 1.4214138
        %v2258 = vadd.f32 %v2130, 1.4214138
        %v2259 = vadd.f32 %v2131, 1.4214138
        %v2260 = vadd.f32 %v2132, 1.4214138
        %v2261 = vadd.f32 %v2133, 1.4214138
        %v2262 = vadd.f32 %v2134, 1.4214138
        %v2263 = vadd.f32 %v2135, 1.4214138
        %v2264 = vadd.f32 %v2136, 1.4214138
        %v2265 = vadd.f32 %v2137, 1.4214138
        %v2266 = vadd.f32 %v2138, 1.4214138
        %v2267 = vadd.f32 %v2139, 1.4214138
        %v2268 = vadd.f32 %v2140, 1.4214138
        %v2269 = vadd.f32 %v2141, 1.4214138
        %v2270 = vadd.f32 %v2142, 1.4214138
        %v2271 = vadd.f32 %v2143, 1.4214138
        %v2272 = vadd.f32 %v2144, 1.4214138
        %v2273 = vadd.f32 %v2145, 1.4214138
        %v2274 = vadd.f32 %v2146, 1.4214138
        %v2275 = vadd.f32 %v2147, 1.4214138
        %v2276 = vadd.f32 %v2148, 1.4214138
        %v2277 = vadd.f32 %v2149, 1.4214138
        %v2278 = vadd.f32 %v2150, 1.4214138
        %v2279 = vadd.f32 %v2151, 1.4214138
        %v2280 = vadd.f32 %v2152, 1.4214138
        %v2281 = vadd.f32 %v2153, 1.4214138
        %v2282 = vadd.f32 %v2154, 1.4214138
        %v2283 = vadd.f32 %v2155, 1.4214138
        %v2284 = vadd.f32 %v2156, 1.4214138
        %v2285 = vadd.f32 %v2157, 1.4214138
        %v2286 = vadd.f32 %v2158, 1.4214138
        %v2287 = vadd.f32 %v2159, 1.4214138
        %v2288 = vmul.f32 %v2160, %v1521
        %v2289 = vmul.f32 %v2161, %v1523
        %v2290 = vmul.f32 %v2162, %v1525
        %v2291 = vmul.f32 %v2163, %v1527
        %v2292 = vmul.f32 %v2164, %v1529
        %v2293 = vmul.f32 %v2165, %v1531
        %v2294 = vmul.f32 %v2166, %v1533
        %v2295 = vmul.f32 %v2167, %v1535
        %v2296 = vmul.f32 %v2168, %v1537
        %v2297 = vmul.f32 %v2169, %v1539
        %v2298 = vmul.f32 %v2170, %v1541
        %v2299 = vmul.f32 %v2171, %v1543
        %v2300 = vmul.f32 %v2172, %v1545
        %v2301 = vmul.f32 %v2173, %v1547
        %v2302 = vmul.f32 %v2174, %v1549
        %v2303 = vmul.f32 %v2175, %v1551
        %v2304 = vmul.f32 %v2176, %v1553
        %v2305 = vmul.f32 %v2177, %v1555
        %v2306 = vmul.f32 %v2178, %v1557
        %v2307 = vmul.f32 %v2179, %v1559
        %v2308 = vmul.f32 %v2180, %v1561
        %v2309 = vmul.f32 %v2181, %v1563
        %v2310 = vmul.f32 %v2182, %v1565
        %v2311 = vmul.f32 %v2183, %v1567
        %v2312 = vmul.f32 %v2184, %v1569
        %v2313 = vmul.f32 %v2185, %v1571
        %v2314 = vmul.f32 %v2186, %v1573
        %v2315 = vmul.f32 %v2187, %v1575
        %v2316 = vmul.f32 %v2188, %v1577
        %v2317 = vmul.f32 %v2189, %v1579
        %v2318 = vmul.f32 %v2190, %v1581
        %v2319 = vmul.f32 %v2191, %v1583
        %v2320 = vmul.f32 %v2192, %v1585
        %v2321 = vmul.f32 %v2193, %v1587
        %v2322 = vmul.f32 %v2194, %v1589
        %v2323 = vmul.f32 %v2195, %v1591
        %v2324 = vmul.f32 %v2196, %v1593
        %v2325 = vmul.f32 %v2197, %v1595
        %v2326 = vmul.f32 %v2198, %v1597
        %v2327 = vmul.f32 %v2199, %v1599
        %v2328 = vmul.f32 %v2200, %v1601
        %v2329 = vmul.f32 %v2201, %v1603
        %v2330 = vmul.f32 %v2202, %v1605
        %v2331 = vmul.f32 %v2203, %v1607
        %v2332 = vmul.f32 %v2204, %v1609
        %v2333 = vmul.f32 %v2205, %v1611
        %v2334 = vmul.f32 %v2206, %v1613
        %v2335 = vmul.f32 %v2207, %v1615
        %v2336 = vmul.f32 %v2208, %v1617
        %v2337 = vmul.f32 %v2209, %v1619
        %v2338 = vmul.f32 %v2210, %v1621
        %v2339 = vmul.f32 %v2211, %v1623
        %v2340 = vmul.f32 %v2212, %v1625
        %v2341 = vmul.f32 %v2213, %v1627
        %v2342 = vmul.f32 %v2214, %v1629
        %v2343 = vmul.f32 %v2215, %v1631
        %v2344 = vmul.f32 %v2216, %v1633
        %v2345 = vmul.f32 %v2217, %v1635
        %v2346 = vmul.f32 %v2218, %v1637
        %v2347 = vmul.f32 %v2219, %v1639
        %v2348 = vmul.f32 %v2220, %v1641
        %v2349 = vmul.f32 %v2221, %v1643
        %v2350 = vmul.f32 %v2222, %v1645
        %v2351 = vmul.f32 %v2223, %v1647
        %v2352 = vmul.f32 %v2224, %v1649
        %v2353 = vmul.f32 %v2225, %v1651
        %v2354 = vmul.f32 %v2226, %v1653
        %v2355 = vmul.f32 %v2227, %v1655
        %v2356 = vmul.f32 %v2228, %v1657
        %v2357 = vmul.f32 %v2229, %v1659
        %v2358 = vmul.f32 %v2230, %v1661
        %v2359 = vmul.f32 %v2231, %v1663
        %v2360 = vmul.f32 %v2232, %v1665
        %v2361 = vmul.f32 %v2233, %v1667
        %v2362 = vmul.f32 %v2234, %v1669
        %v2363 = vmul.f32 %v2235, %v1671
        %v2364 = vmul.f32 %v2236, %v1673
        %v2365 = vmul.f32 %v2237, %v1675
        %v2366 = vmul.f32 %v2238, %v1677
        %v2367 = vmul.f32 %v2239, %v1679
        %v2368 = vmul.f32 %v2240, %v1681
        %v2369 = vmul.f32 %v2241, %v1683
        %v2370 = vmul.f32 %v2242, %v1685
        %v2371 = vmul.f32 %v2243, %v1687
        %v2372 = vmul.f32 %v2244, %v1689
        %v2373 = vmul.f32 %v2245, %v1691
        %v2374 = vmul.f32 %v2246, %v1693
        %v2375 = vmul.f32 %v2247, %v1695
        %v2376 = vmul.f32 %v2248, %v1697
        %v2377 = vmul.f32 %v2249, %v1699
        %v2378 = vmul.f32 %v2250, %v1701
        %v2379 = vmul.f32 %v2251, %v1703
        %v2380 = vmul.f32 %v2252, %v1705
        %v2381 = vmul.f32 %v2253, %v1707
        %v2382 = vmul.f32 %v2254, %v1709
        %v2383 = vmul.f32 %v2255, %v1711
        %v2384 = vmul.f32 %v2256, %v1713
        %v2385 = vmul.f32 %v2257, %v1715
        %v2386 = vmul.f32 %v2258, %v1717
        %v2387 = vmul.f32 %v2259, %v1719
        %v2388 = vmul.f32 %v2260, %v1721
        %v2389 = vmul.f32 %v2261, %v1723
        %v2390 = vmul.f32 %v2262, %v1725
        %v2391 = vmul.f32 %v2263, %v1727
        %v2392 = vmul.f32 %v2264, %v1729
        %v2393 = vmul.f32 %v2265, %v1731
        %v2394 = vmul.f32 %v2266, %v1733
        %v2395 = vmul.f32 %v2267, %v1735
        %v2396 = vmul.f32 %v2268, %v1737
        %v2397 = vmul.f32 %v2269, %v1739
        %v2398 = vmul.f32 %v2270, %v1741
        %v2399 = vmul.f32 %v2271, %v1743
        %v2400 = vmul.f32 %v2272, %v1745
        %v2401 = vmul.f32 %v2273, %v1747
        %v2402 = vmul.f32 %v2274, %v1749
        %v2403 = vmul.f32 %v2275, %v1751
        %v2404 = vmul.f32 %v2276, %v1753
        %v2405 = vmul.f32 %v2277, %v1755
        %v2406 = vmul.f32 %v2278, %v1757
        %v2407 = vmul.f32 %v2279, %v1759
        %v2408 = vmul.f32 %v2280, %v1761
        %v2409 = vmul.f32 %v2281, %v1763
        %v2410 = vmul.f32 %v2282, %v1765
        %v2411 = vmul.f32 %v2283, %v1767
        %v2412 = vmul.f32 %v2284, %v1769
        %v2413 = vmul.f32 %v2285, %v1771
        %v2414 = vmul.f32 %v2286, %v1773
        %v2415 = vmul.f32 %v2287, %v1775
        %v2416 = vadd.f32 %v2288, -0.28449672
        %v2417 = vadd.f32 %v2289, -0.28449672
        %v2418 = vadd.f32 %v2290, -0.28449672
        %v2419 = vadd.f32 %v2291, -0.28449672
        %v2420 = vadd.f32 %v2292, -0.28449672
        %v2421 = vadd.f32 %v2293, -0.28449672
        %v2422 = vadd.f32 %v2294, -0.28449672
        %v2423 = vadd.f32 %v2295, -0.28449672
        %v2424 = vadd.f32 %v2296, -0.28449672
        %v2425 = vadd.f32 %v2297, -0.28449672
        %v2426 = vadd.f32 %v2298, -0.28449672
        %v2427 = vadd.f32 %v2299, -0.28449672
        %v2428 = vadd.f32 %v2300, -0.28449672
        %v2429 = vadd.f32 %v2301, -0.28449672
        %v2430 = vadd.f32 %v2302, -0.28449672
        %v2431 = vadd.f32 %v2303, -0.28449672
        %v2432 = vadd.f32 %v2304, -0.28449672
        %v2433 = vadd.f32 %v2305, -0.28449672
        %v2434 = vadd.f32 %v2306, -0.28449672
        %v2435 = vadd.f32 %v2307, -0.28449672
        %v2436 = vadd.f32 %v2308, -0.28449672
        %v2437 = vadd.f32 %v2309, -0.28449672
        %v2438 = vadd.f32 %v2310, -0.28449672
        %v2439 = vadd.f32 %v2311, -0.28449672
        %v2440 = vadd.f32 %v2312, -0.28449672
        %v2441 = vadd.f32 %v2313, -0.28449672
        %v2442 = vadd.f32 %v2314, -0.28449672
        %v2443 = vadd.f32 %v2315, -0.28449672
        %v2444 = vadd.f32 %v2316, -0.28449672
        %v2445 = vadd.f32 %v2317, -0.28449672
        %v2446 = vadd.f32 %v2318, -0.28449672
        %v2447 = vadd.f32 %v2319, -0.28449672
        %v2448 = vadd.f32 %v2320, -0.28449672
        %v2449 = vadd.f32 %v2321, -0.28449672
        %v2450 = vadd.f32 %v2322, -0.28449672
        %v2451 = vadd.f32 %v2323, -0.28449672
        %v2452 = vadd.f32 %v2324, -0.28449672
        %v2453 = vadd.f32 %v2325, -0.28449672
        %v2454 = vadd.f32 %v2326, -0.28449672
        %v2455 = vadd.f32 %v2327, -0.28449672
        %v2456 = vadd.f32 %v2328, -0.28449672
        %v2457 = vadd.f32 %v2329, -0.28449672
        %v2458 = vadd.f32 %v2330, -0.28449672
        %v2459 = vadd.f32 %v2331, -0.28449672
        %v2460 = vadd.f32 %v2332, -0.28449672
        %v2461 = vadd.f32 %v2333, -0.28449672
        %v2462 = vadd.f32 %v2334, -0.28449672
        %v2463 = vadd.f32 %v2335, -0.28449672
        %v2464 = vadd.f32 %v2336, -0.28449672
        %v2465 = vadd.f32 %v2337, -0.28449672
        %v2466 = vadd.f32 %v2338, -0.28449672
        %v2467 = vadd.f32 %v2339, -0.28449672
        %v2468 = vadd.f32 %v2340, -0.28449672
        %v2469 = vadd.f32 %v2341, -0.28449672
        %v2470 = vadd.f32 %v2342, -0.28449672
        %v2471 = vadd.f32 %v2343, -0.28449672
        %v2472 = vadd.f32 %v2344, -0.28449672
        %v2473 = vadd.f32 %v2345, -0.28449672
        %v2474 = vadd.f32 %v2346, -0.28449672
        %v2475 = vadd.f32 %v2347, -0.28449672
        %v2476 = vadd.f32 %v2348, -0.28449672
        %v2477 = vadd.f32 %v2349, -0.28449672
        %v2478 = vadd.f32 %v2350, -0.28449672
        %v2479 = vadd.f32 %v2351, -0.28449672
        %v2480 = vadd.f32 %v2352, -0.28449672
        %v2481 = vadd.f32 %v2353, -0.28449672
        %v2482 = vadd.f32 %v2354, -0.28449672
        %v2483 = vadd.f32 %v2355, -0.28449672
        %v2484 = vadd.f32 %v2356, -0.28449672
        %v2485 = vadd.f32 %v2357, -0.28449672
        %v2486 = vadd.f32 %v2358, -0.28449672
        %v2487 = vadd.f32 %v2359, -0.28449672
        %v2488 = vadd.f32 %v2360, -0.28449672
        %v2489 = vadd.f32 %v2361, -0.28449672
        %v2490 = vadd.f32 %v2362, -0.28449672
        %v2491 = vadd.f32 %v2363, -0.28449672
        %v2492 = vadd.f32 %v2364, -0.28449672
        %v2493 = vadd.f32 %v2365, -0.28449672
        %v2494 = vadd.f32 %v2366, -0.28449672
        %v2495 = vadd.f32 %v2367, -0.28449672
        %v2496 = vadd.f32 %v2368, -0.28449672
        %v2497 = vadd.f32 %v2369, -0.28449672
        %v2498 = vadd.f32 %v2370, -0.28449672
        %v2499 = vadd.f32 %v2371, -0.28449672
        %v2500 = vadd.f32 %v2372, -0.28449672
        %v2501 = vadd.f32 %v2373, -0.28449672
        %v2502 = vadd.f32 %v2374, -0.28449672
        %v2503 = vadd.f32 %v2375, -0.28449672
        %v2504 = vadd.f32 %v2376, -0.28449672
        %v2505 = vadd.f32 %v2377, -0.28449672
        %v2506 = vadd.f32 %v2378, -0.28449672
        %v2507 = vadd.f32 %v2379, -0.28449672
        %v2508 = vadd.f32 %v2380, -0.28449672
        %v2509 = vadd.f32 %v2381, -0.28449672
        %v2510 = vadd.f32 %v2382, -0.28449672
        %v2511 = vadd.f32 %v2383, -0.28449672
        %v2512 = vadd.f32 %v2384, -0.28449672
        %v2513 = vadd.f32 %v2385, -0.28449672
        %v2514 = vadd.f32 %v2386, -0.28449672
        %v2515 = vadd.f32 %v2387, -0.28449672
        %v2516 = vadd.f32 %v2388, -0.28449672
        %v2517 = vadd.f32 %v2389, -0.28449672
        %v2518 = vadd.f32 %v2390, -0.28449672
        %v2519 = vadd.f32 %v2391, -0.28449672
        %v2520 = vadd.f32 %v2392, -0.28449672
        %v2521 = vadd.f32 %v2393, -0.28449672
        %v2522 = vadd.f32 %v2394, -0.28449672
        %v2523 = vadd.f32 %v2395, -0.28449672
        %v2524 = vadd.f32 %v2396, -0.28449672
        %v2525 = vadd.f32 %v2397, -0.28449672
        %v2526 = vadd.f32 %v2398, -0.28449672
        %v2527 = vadd.f32 %v2399, -0.28449672
        %v2528 = vadd.f32 %v2400, -0.28449672
        %v2529 = vadd.f32 %v2401, -0.28449672
        %v2530 = vadd.f32 %v2402, -0.28449672
        %v2531 = vadd.f32 %v2403, -0.28449672
        %v2532 = vadd.f32 %v2404, -0.28449672
        %v2533 = vadd.f32 %v2405, -0.28449672
        %v2534 = vadd.f32 %v2406, -0.28449672
        %v2535 = vadd.f32 %v2407, -0.28449672
        %v2536 = vadd.f32 %v2408, -0.28449672
        %v2537 = vadd.f32 %v2409, -0.28449672
        %v2538 = vadd.f32 %v2410, -0.28449672
        %v2539 = vadd.f32 %v2411, -0.28449672
        %v2540 = vadd.f32 %v2412, -0.28449672
        %v2541 = vadd.f32 %v2413, -0.28449672
        %v2542 = vadd.f32 %v2414, -0.28449672
        %v2543 = vadd.f32 %v2415, -0.28449672
        %v2544 = vmul.f32 %v2416, %v1521
        %v2545 = vmul.f32 %v2417, %v1523
        %v2546 = vmul.f32 %v2418, %v1525
        %v2547 = vmul.f32 %v2419, %v1527
        %v2548 = vmul.f32 %v2420, %v1529
        %v2549 = vmul.f32 %v2421, %v1531
        %v2550 = vmul.f32 %v2422, %v1533
        %v2551 = vmul.f32 %v2423, %v1535
        %v2552 = vmul.f32 %v2424, %v1537
        %v2553 = vmul.f32 %v2425, %v1539
        %v2554 = vmul.f32 %v2426, %v1541
        %v2555 = vmul.f32 %v2427, %v1543
        %v2556 = vmul.f32 %v2428, %v1545
        %v2557 = vmul.f32 %v2429, %v1547
        %v2558 = vmul.f32 %v2430, %v1549
        %v2559 = vmul.f32 %v2431, %v1551
        %v2560 = vmul.f32 %v2432, %v1553
        %v2561 = vmul.f32 %v2433, %v1555
        %v2562 = vmul.f32 %v2434, %v1557
        %v2563 = vmul.f32 %v2435, %v1559
        %v2564 = vmul.f32 %v2436, %v1561
        %v2565 = vmul.f32 %v2437, %v1563
        %v2566 = vmul.f32 %v2438, %v1565
        %v2567 = vmul.f32 %v2439, %v1567
        %v2568 = vmul.f32 %v2440, %v1569
        %v2569 = vmul.f32 %v2441, %v1571
        %v2570 = vmul.f32 %v2442, %v1573
        %v2571 = vmul.f32 %v2443, %v1575
        %v2572 = vmul.f32 %v2444, %v1577
        %v2573 = vmul.f32 %v2445, %v1579
        %v2574 = vmul.f32 %v2446, %v1581
        %v2575 = vmul.f32 %v2447, %v1583
        %v2576 = vmul.f32 %v2448, %v1585
        %v2577 = vmul.f32 %v2449, %v1587
        %v2578 = vmul.f32 %v2450, %v1589
        %v2579 = vmul.f32 %v2451, %v1591
        %v2580 = vmul.f32 %v2452, %v1593
        %v2581 = vmul.f32 %v2453, %v1595
        %v2582 = vmul.f32 %v2454, %v1597
        %v2583 = vmul.f32 %v2455, %v1599
        %v2584 = vmul.f32 %v2456, %v1601
        %v2585 = vmul.f32 %v2457, %v1603
        %v2586 = vmul.f32 %v2458, %v1605
        %v2587 = vmul.f32 %v2459, %v1607
        %v2588 = vmul.f32 %v2460, %v1609
        %v2589 = vmul.f32 %v2461, %v1611
        %v2590 = vmul.f32 %v2462, %v1613
        %v2591 = vmul.f32 %v2463, %v1615
        %v2592 = vmul.f32 %v2464, %v1617
        %v2593 = vmul.f32 %v2465, %v1619
        %v2594 = vmul.f32 %v2466, %v1621
        %v2595 = vmul.f32 %v2467, %v1623
        %v2596 = vmul.f32 %v2468, %v1625
        %v2597 = vmul.f32 %v2469, %v1627
        %v2598 = vmul.f32 %v2470, %v1629
        %v2599 = vmul.f32 %v2471, %v1631
        %v2600 = vmul.f32 %v2472, %v1633
        %v2601 = vmul.f32 %v2473, %v1635
        %v2602 = vmul.f32 %v2474, %v1637
        %v2603 = vmul.f32 %v2475, %v1639
        %v2604 = vmul.f32 %v2476, %v1641
        %v2605 = vmul.f32 %v2477, %v1643
        %v2606 = vmul.f32 %v2478, %v1645
        %v2607 = vmul.f32 %v2479, %v1647
        %v2608 = vmul.f32 %v2480, %v1649
        %v2609 = vmul.f32 %v2481, %v1651
        %v2610 = vmul.f32 %v2482, %v1653
        %v2611 = vmul.f32 %v2483, %v1655
        %v2612 = vmul.f32 %v2484, %v1657
        %v2613 = vmul.f32 %v2485, %v1659
        %v2614 = vmul.f32 %v2486, %v1661
        %v2615 = vmul.f32 %v2487, %v1663
        %v2616 = vmul.f32 %v2488, %v1665
        %v2617 = vmul.f32 %v2489, %v1667
        %v2618 = vmul.f32 %v2490, %v1669
        %v2619 = vmul.f32 %v2491, %v1671
        %v2620 = vmul.f32 %v2492, %v1673
        %v2621 = vmul.f32 %v2493, %v1675
        %v2622 = vmul.f32 %v2494, %v1677
        %v2623 = vmul.f32 %v2495, %v1679
        %v2624 = vmul.f32 %v2496, %v1681
        %v2625 = vmul.f32 %v2497, %v1683
        %v2626 = vmul.f32 %v2498, %v1685
        %v2627 = vmul.f32 %v2499, %v1687
        %v2628 = vmul.f32 %v2500, %v1689
        %v2629 = vmul.f32 %v2501, %v1691
        %v2630 = vmul.f32 %v2502, %v1693
        %v2631 = vmul.f32 %v2503, %v1695
        %v2632 = vmul.f32 %v2504, %v1697
        %v2633 = vmul.f32 %v2505, %v1699
        %v2634 = vmul.f32 %v2506, %v1701
        %v2635 = vmul.f32 %v2507, %v1703
        %v2636 = vmul.f32 %v2508, %v1705
        %v2637 = vmul.f32 %v2509, %v1707
        %v2638 = vmul.f32 %v2510, %v1709
        %v2639 = vmul.f32 %v2511, %v1711
        %v2640 = vmul.f32 %v2512, %v1713
        %v2641 = vmul.f32 %v2513, %v1715
        %v2642 = vmul.f32 %v2514, %v1717
        %v2643 = vmul.f32 %v2515, %v1719
        %v2644 = vmul.f32 %v2516, %v1721
        %v2645 = vmul.f32 %v2517, %v1723
        %v2646 = vmul.f32 %v2518, %v1725
        %v2647 = vmul.f32 %v2519, %v1727
        %v2648 = vmul.f32 %v2520, %v1729
        %v2649 = vmul.f32 %v2521, %v1731
        %v2650 = vmul.f32 %v2522, %v1733
        %v2651 = vmul.f32 %v2523, %v1735
        %v2652 = vmul.f32 %v2524, %v1737
        %v2653 = vmul.f32 %v2525, %v1739
        %v2654 = vmul.f32 %v2526, %v1741
        %v2655 = vmul.f32 %v2527, %v1743
        %v2656 = vmul.f32 %v2528, %v1745
        %v2657 = vmul.f32 %v2529, %v1747
        %v2658 = vmul.f32 %v2530, %v1749
        %v2659 = vmul.f32 %v2531, %v1751
        %v2660 = vmul.f32 %v2532, %v1753
        %v2661 = vmul.f32 %v2533, %v1755
        %v2662 = vmul.f32 %v2534, %v1757
        %v2663 = vmul.f32 %v2535, %v1759
        %v2664 = vmul.f32 %v2536, %v1761
        %v2665 = vmul.f32 %v2537, %v1763
        %v2666 = vmul.f32 %v2538, %v1765
        %v2667 = vmul.f32 %v2539, %v1767
        %v2668 = vmul.f32 %v2540, %v1769
        %v2669 = vmul.f32 %v2541, %v1771
        %v2670 = vmul.f32 %v2542, %v1773
        %v2671 = vmul.f32 %v2543, %v1775
        %v2672 = vadd.f32 %v2544, 0.2548296
        %v2673 = vadd.f32 %v2545, 0.2548296
        %v2674 = vadd.f32 %v2546, 0.2548296
        %v2675 = vadd.f32 %v2547, 0.2548296
        %v2676 = vadd.f32 %v2548, 0.2548296
        %v2677 = vadd.f32 %v2549, 0.2548296
        %v2678 = vadd.f32 %v2550, 0.2548296
        %v2679 = vadd.f32 %v2551, 0.2548296
        %v2680 = vadd.f32 %v2552, 0.2548296
        %v2681 = vadd.f32 %v2553, 0.2548296
        %v2682 = vadd.f32 %v2554, 0.2548296
        %v2683 = vadd.f32 %v2555, 0.2548296
        %v2684 = vadd.f32 %v2556, 0.2548296
        %v2685 = vadd.f32 %v2557, 0.2548296
        %v2686 = vadd.f32 %v2558, 0.2548296
        %v2687 = vadd.f32 %v2559, 0.2548296
        %v2688 = vadd.f32 %v2560, 0.2548296
        %v2689 = vadd.f32 %v2561, 0.2548296
        %v2690 = vadd.f32 %v2562, 0.2548296
        %v2691 = vadd.f32 %v2563, 0.2548296
        %v2692 = vadd.f32 %v2564, 0.2548296
        %v2693 = vadd.f32 %v2565, 0.2548296
        %v2694 = vadd.f32 %v2566, 0.2548296
        %v2695 = vadd.f32 %v2567, 0.2548296
        %v2696 = vadd.f32 %v2568, 0.2548296
        %v2697 = vadd.f32 %v2569, 0.2548296
        %v2698 = vadd.f32 %v2570, 0.2548296
        %v2699 = vadd.f32 %v2571, 0.2548296
        %v2700 = vadd.f32 %v2572, 0.2548296
        %v2701 = vadd.f32 %v2573, 0.2548296
        %v2702 = vadd.f32 %v2574, 0.2548296
        %v2703 = vadd.f32 %v2575, 0.2548296
        %v2704 = vadd.f32 %v2576, 0.2548296
        %v2705 = vadd.f32 %v2577, 0.2548296
        %v2706 = vadd.f32 %v2578, 0.2548296
        %v2707 = vadd.f32 %v2579, 0.2548296
        %v2708 = vadd.f32 %v2580, 0.2548296
        %v2709 = vadd.f32 %v2581, 0.2548296
        %v2710 = vadd.f32 %v2582, 0.2548296
        %v2711 = vadd.f32 %v2583, 0.2548296
        %v2712 = vadd.f32 %v2584, 0.2548296
        %v2713 = vadd.f32 %v2585, 0.2548296
        %v2714 = vadd.f32 %v2586, 0.2548296
        %v2715 = vadd.f32 %v2587, 0.2548296
        %v2716 = vadd.f32 %v2588, 0.2548296
        %v2717 = vadd.f32 %v2589, 0.2548296
        %v2718 = vadd.f32 %v2590, 0.2548296
        %v2719 = vadd.f32 %v2591, 0.2548296
        %v2720 = vadd.f32 %v2592, 0.2548296
        %v2721 = vadd.f32 %v2593, 0.2548296
        %v2722 = vadd.f32 %v2594, 0.2548296
        %v2723 = vadd.f32 %v2595, 0.2548296
        %v2724 = vadd.f32 %v2596, 0.2548296
        %v2725 = vadd.f32 %v2597, 0.2548296
        %v2726 = vadd.f32 %v2598, 0.2548296
        %v2727 = vadd.f32 %v2599, 0.2548296
        %v2728 = vadd.f32 %v2600, 0.2548296
        %v2729 = vadd.f32 %v2601, 0.2548296
        %v2730 = vadd.f32 %v2602, 0.2548296
        %v2731 = vadd.f32 %v2603, 0.2548296
        %v2732 = vadd.f32 %v2604, 0.2548296
        %v2733 = vadd.f32 %v2605, 0.2548296
        %v2734 = vadd.f32 %v2606, 0.2548296
        %v2735 = vadd.f32 %v2607, 0.2548296
        %v2736 = vadd.f32 %v2608, 0.2548296
        %v2737 = vadd.f32 %v2609, 0.2548296
        %v2738 = vadd.f32 %v2610, 0.2548296
        %v2739 = vadd.f32 %v2611, 0.2548296
        %v2740 = vadd.f32 %v2612, 0.2548296
        %v2741 = vadd.f32 %v2613, 0.2548296
        %v2742 = vadd.f32 %v2614, 0.2548296
        %v2743 = vadd.f32 %v2615, 0.2548296
        %v2744 = vadd.f32 %v2616, 0.2548296
        %v2745 = vadd.f32 %v2617, 0.2548296
        %v2746 = vadd.f32 %v2618, 0.2548296
        %v2747 = vadd.f32 %v2619, 0.2548296
        %v2748 = vadd.f32 %v2620, 0.2548296
        %v2749 = vadd.f32 %v2621, 0.2548296
        %v2750 = vadd.f32 %v2622, 0.2548296
        %v2751 = vadd.f32 %v2623, 0.2548296
        %v2752 = vadd.f32 %v2624, 0.2548296
        %v2753 = vadd.f32 %v2625, 0.2548296
        %v2754 = vadd.f32 %v2626, 0.2548296
        %v2755 = vadd.f32 %v2627, 0.2548296
        %v2756 = vadd.f32 %v2628, 0.2548296
        %v2757 = vadd.f32 %v2629, 0.2548296
        %v2758 = vadd.f32 %v2630, 0.2548296
        %v2759 = vadd.f32 %v2631, 0.2548296
        %v2760 = vadd.f32 %v2632, 0.2548296
        %v2761 = vadd.f32 %v2633, 0.2548296
        %v2762 = vadd.f32 %v2634, 0.2548296
        %v2763 = vadd.f32 %v2635, 0.2548296
        %v2764 = vadd.f32 %v2636, 0.2548296
        %v2765 = vadd.f32 %v2637, 0.2548296
        %v2766 = vadd.f32 %v2638, 0.2548296
        %v2767 = vadd.f32 %v2639, 0.2548296
        %v2768 = vadd.f32 %v2640, 0.2548296
        %v2769 = vadd.f32 %v2641, 0.2548296
        %v2770 = vadd.f32 %v2642, 0.2548296
        %v2771 = vadd.f32 %v2643, 0.2548296
        %v2772 = vadd.f32 %v2644, 0.2548296
        %v2773 = vadd.f32 %v2645, 0.2548296
        %v2774 = vadd.f32 %v2646, 0.2548296
        %v2775 = vadd.f32 %v2647, 0.2548296
        %v2776 = vadd.f32 %v2648, 0.2548296
        %v2777 = vadd.f32 %v2649, 0.2548296
        %v2778 = vadd.f32 %v2650, 0.2548296
        %v2779 = vadd.f32 %v2651, 0.2548296
        %v2780 = vadd.f32 %v2652, 0.2548296
        %v2781 = vadd.f32 %v2653, 0.2548296
        %v2782 = vadd.f32 %v2654, 0.2548296
        %v2783 = vadd.f32 %v2655, 0.2548296
        %v2784 = vadd.f32 %v2656, 0.2548296
        %v2785 = vadd.f32 %v2657, 0.2548296
        %v2786 = vadd.f32 %v2658, 0.2548296
        %v2787 = vadd.f32 %v2659, 0.2548296
        %v2788 = vadd.f32 %v2660, 0.2548296
        %v2789 = vadd.f32 %v2661, 0.2548296
        %v2790 = vadd.f32 %v2662, 0.2548296
        %v2791 = vadd.f32 %v2663, 0.2548296
        %v2792 = vadd.f32 %v2664, 0.2548296
        %v2793 = vadd.f32 %v2665, 0.2548296
        %v2794 = vadd.f32 %v2666, 0.2548296
        %v2795 = vadd.f32 %v2667, 0.2548296
        %v2796 = vadd.f32 %v2668, 0.2548296
        %v2797 = vadd.f32 %v2669, 0.2548296
        %v2798 = vadd.f32 %v2670, 0.2548296
        %v2799 = vadd.f32 %v2671, 0.2548296
        %v2800 = vmul.f32 %v2672, %v1521
        %v2801 = vmul.f32 %v2673, %v1523
        %v2802 = vmul.f32 %v2674, %v1525
        %v2803 = vmul.f32 %v2675, %v1527
        %v2804 = vmul.f32 %v2676, %v1529
        %v2805 = vmul.f32 %v2677, %v1531
        %v2806 = vmul.f32 %v2678, %v1533
        %v2807 = vmul.f32 %v2679, %v1535
        %v2808 = vmul.f32 %v2680, %v1537
        %v2809 = vmul.f32 %v2681, %v1539
        %v2810 = vmul.f32 %v2682, %v1541
        %v2811 = vmul.f32 %v2683, %v1543
        %v2812 = vmul.f32 %v2684, %v1545
        %v2813 = vmul.f32 %v2685, %v1547
        %v2814 = vmul.f32 %v2686, %v1549
        %v2815 = vmul.f32 %v2687, %v1551
        %v2816 = vmul.f32 %v2688, %v1553
        %v2817 = vmul.f32 %v2689, %v1555
        %v2818 = vmul.f32 %v2690, %v1557
        %v2819 = vmul.f32 %v2691, %v1559
        %v2820 = vmul.f32 %v2692, %v1561
        %v2821 = vmul.f32 %v2693, %v1563
        %v2822 = vmul.f32 %v2694, %v1565
        %v2823 = vmul.f32 %v2695, %v1567
        %v2824 = vmul.f32 %v2696, %v1569
        %v2825 = vmul.f32 %v2697, %v1571
        %v2826 = vmul.f32 %v2698, %v1573
        %v2827 = vmul.f32 %v2699, %v1575
        %v2828 = vmul.f32 %v2700, %v1577
        %v2829 = vmul.f32 %v2701, %v1579
        %v2830 = vmul.f32 %v2702, %v1581
        %v2831 = vmul.f32 %v2703, %v1583
        %v2832 = vmul.f32 %v2704, %v1585
        %v2833 = vmul.f32 %v2705, %v1587
        %v2834 = vmul.f32 %v2706, %v1589
        %v2835 = vmul.f32 %v2707, %v1591
        %v2836 = vmul.f32 %v2708, %v1593
        %v2837 = vmul.f32 %v2709, %v1595
        %v2838 = vmul.f32 %v2710, %v1597
        %v2839 = vmul.f32 %v2711, %v1599
        %v2840 = vmul.f32 %v2712, %v1601
        %v2841 = vmul.f32 %v2713, %v1603
        %v2842 = vmul.f32 %v2714, %v1605
        %v2843 = vmul.f32 %v2715, %v1607
        %v2844 = vmul.f32 %v2716, %v1609
        %v2845 = vmul.f32 %v2717, %v1611
        %v2846 = vmul.f32 %v2718, %v1613
        %v2847 = vmul.f32 %v2719, %v1615
        %v2848 = vmul.f32 %v2720, %v1617
        %v2849 = vmul.f32 %v2721, %v1619
        %v2850 = vmul.f32 %v2722, %v1621
        %v2851 = vmul.f32 %v2723, %v1623
        %v2852 = vmul.f32 %v2724, %v1625
        %v2853 = vmul.f32 %v2725, %v1627
        %v2854 = vmul.f32 %v2726, %v1629
        %v2855 = vmul.f32 %v2727, %v1631
        %v2856 = vmul.f32 %v2728, %v1633
        %v2857 = vmul.f32 %v2729, %v1635
        %v2858 = vmul.f32 %v2730, %v1637
        %v2859 = vmul.f32 %v2731, %v1639
        %v2860 = vmul.f32 %v2732, %v1641
        %v2861 = vmul.f32 %v2733, %v1643
        %v2862 = vmul.f32 %v2734, %v1645
        %v2863 = vmul.f32 %v2735, %v1647
        %v2864 = vmul.f32 %v2736, %v1649
        %v2865 = vmul.f32 %v2737, %v1651
        %v2866 = vmul.f32 %v2738, %v1653
        %v2867 = vmul.f32 %v2739, %v1655
        %v2868 = vmul.f32 %v2740, %v1657
        %v2869 = vmul.f32 %v2741, %v1659
        %v2870 = vmul.f32 %v2742, %v1661
        %v2871 = vmul.f32 %v2743, %v1663
        %v2872 = vmul.f32 %v2744, %v1665
        %v2873 = vmul.f32 %v2745, %v1667
        %v2874 = vmul.f32 %v2746, %v1669
        %v2875 = vmul.f32 %v2747, %v1671
        %v2876 = vmul.f32 %v2748, %v1673
        %v2877 = vmul.f32 %v2749, %v1675
        %v2878 = vmul.f32 %v2750, %v1677
        %v2879 = vmul.f32 %v2751, %v1679
        %v2880 = vmul.f32 %v2752, %v1681
        %v2881 = vmul.f32 %v2753, %v1683
        %v2882 = vmul.f32 %v2754, %v1685
        %v2883 = vmul.f32 %v2755, %v1687
        %v2884 = vmul.f32 %v2756, %v1689
        %v2885 = vmul.f32 %v2757, %v1691
        %v2886 = vmul.f32 %v2758, %v1693
        %v2887 = vmul.f32 %v2759, %v1695
        %v2888 = vmul.f32 %v2760, %v1697
        %v2889 = vmul.f32 %v2761, %v1699
        %v2890 = vmul.f32 %v2762, %v1701
        %v2891 = vmul.f32 %v2763, %v1703
        %v2892 = vmul.f32 %v2764, %v1705
        %v2893 = vmul.f32 %v2765, %v1707
        %v2894 = vmul.f32 %v2766, %v1709
        %v2895 = vmul.f32 %v2767, %v1711
        %v2896 = vmul.f32 %v2768, %v1713
        %v2897 = vmul.f32 %v2769, %v1715
        %v2898 = vmul.f32 %v2770, %v1717
        %v2899 = vmul.f32 %v2771, %v1719
        %v2900 = vmul.f32 %v2772, %v1721
        %v2901 = vmul.f32 %v2773, %v1723
        %v2902 = vmul.f32 %v2774, %v1725
        %v2903 = vmul.f32 %v2775, %v1727
        %v2904 = vmul.f32 %v2776, %v1729
        %v2905 = vmul.f32 %v2777, %v1731
        %v2906 = vmul.f32 %v2778, %v1733
        %v2907 = vmul.f32 %v2779, %v1735
        %v2908 = vmul.f32 %v2780, %v1737
        %v2909 = vmul.f32 %v2781, %v1739
        %v2910 = vmul.f32 %v2782, %v1741
        %v2911 = vmul.f32 %v2783, %v1743
        %v2912 = vmul.f32 %v2784, %v1745
        %v2913 = vmul.f32 %v2785, %v1747
        %v2914 = vmul.f32 %v2786, %v1749
        %v2915 = vmul.f32 %v2787, %v1751
        %v2916 = vmul.f32 %v2788, %v1753
        %v2917 = vmul.f32 %v2789, %v1755
        %v2918 = vmul.f32 %v2790, %v1757
        %v2919 = vmul.f32 %v2791, %v1759
        %v2920 = vmul.f32 %v2792, %v1761
        %v2921 = vmul.f32 %v2793, %v1763
        %v2922 = vmul.f32 %v2794, %v1765
        %v2923 = vmul.f32 %v2795, %v1767
        %v2924 = vmul.f32 %v2796, %v1769
        %v2925 = vmul.f32 %v2797, %v1771
        %v2926 = vmul.f32 %v2798, %v1773
        %v2927 = vmul.f32 %v2799, %v1775
        %v2928 = vsub.f32 0.0, %v1136
        %v2929 = vsub.f32 0.0, %v1137
        %v2930 = vsub.f32 0.0, %v1138
        %v2931 = vsub.f32 0.0, %v1139
        %v2932 = vsub.f32 0.0, %v1140
        %v2933 = vsub.f32 0.0, %v1141
        %v2934 = vsub.f32 0.0, %v1142
        %v2935 = vsub.f32 0.0, %v1143
        %v2936 = vsub.f32 0.0, %v1144
        %v2937 = vsub.f32 0.0, %v1145
        %v2938 = vsub.f32 0.0, %v1146
        %v2939 = vsub.f32 0.0, %v1147
        %v2940 = vsub.f32 0.0, %v1148
        %v2941 = vsub.f32 0.0, %v1149
        %v2942 = vsub.f32 0.0, %v1150
        %v2943 = vsub.f32 0.0, %v1151
        %v2944 = vsub.f32 0.0, %v1152
        %v2945 = vsub.f32 0.0, %v1153
        %v2946 = vsub.f32 0.0, %v1154
        %v2947 = vsub.f32 0.0, %v1155
        %v2948 = vsub.f32 0.0, %v1156
        %v2949 = vsub.f32 0.0, %v1157
        %v2950 = vsub.f32 0.0, %v1158
        %v2951 = vsub.f32 0.0, %v1159
        %v2952 = vsub.f32 0.0, %v1160
        %v2953 = vsub.f32 0.0, %v1161
        %v2954 = vsub.f32 0.0, %v1162
        %v2955 = vsub.f32 0.0, %v1163
        %v2956 = vsub.f32 0.0, %v1164
        %v2957 = vsub.f32 0.0, %v1165
        %v2958 = vsub.f32 0.0, %v1166
        %v2959 = vsub.f32 0.0, %v1167
        %v2960 = vsub.f32 0.0, %v1168
        %v2961 = vsub.f32 0.0, %v1169
        %v2962 = vsub.f32 0.0, %v1170
        %v2963 = vsub.f32 0.0, %v1171
        %v2964 = vsub.f32 0.0, %v1172
        %v2965 = vsub.f32 0.0, %v1173
        %v2966 = vsub.f32 0.0, %v1174
        %v2967 = vsub.f32 0.0, %v1175
        %v2968 = vsub.f32 0.0, %v1176
        %v2969 = vsub.f32 0.0, %v1177
        %v2970 = vsub.f32 0.0, %v1178
        %v2971 = vsub.f32 0.0, %v1179
        %v2972 = vsub.f32 0.0, %v1180
        %v2973 = vsub.f32 0.0, %v1181
        %v2974 = vsub.f32 0.0, %v1182
        %v2975 = vsub.f32 0.0, %v1183
        %v2976 = vsub.f32 0.0, %v1184
        %v2977 = vsub.f32 0.0, %v1185
        %v2978 = vsub.f32 0.0, %v1186
        %v2979 = vsub.f32 0.0, %v1187
        %v2980 = vsub.f32 0.0, %v1188
        %v2981 = vsub.f32 0.0, %v1189
        %v2982 = vsub.f32 0.0, %v1190
        %v2983 = vsub.f32 0.0, %v1191
        %v2984 = vsub.f32 0.0, %v1192
        %v2985 = vsub.f32 0.0, %v1193
        %v2986 = vsub.f32 0.0, %v1194
        %v2987 = vsub.f32 0.0, %v1195
        %v2988 = vsub.f32 0.0, %v1196
        %v2989 = vsub.f32 0.0, %v1197
        %v2990 = vsub.f32 0.0, %v1198
        %v2991 = vsub.f32 0.0, %v1199
        %v2992 = vsub.f32 0.0, %v1200
        %v2993 = vsub.f32 0.0, %v1201
        %v2994 = vsub.f32 0.0, %v1202
        %v2995 = vsub.f32 0.0, %v1203
        %v2996 = vsub.f32 0.0, %v1204
        %v2997 = vsub.f32 0.0, %v1205
        %v2998 = vsub.f32 0.0, %v1206
        %v2999 = vsub.f32 0.0, %v1207
        %v3000 = vsub.f32 0.0, %v1208
        %v3001 = vsub.f32 0.0, %v1209
        %v3002 = vsub.f32 0.0, %v1210
        %v3003 = vsub.f32 0.0, %v1211
        %v3004 = vsub.f32 0.0, %v1212
        %v3005 = vsub.f32 0.0, %v1213
        %v3006 = vsub.f32 0.0, %v1214
        %v3007 = vsub.f32 0.0, %v1215
        %v3008 = vsub.f32 0.0, %v1216
        %v3009 = vsub.f32 0.0, %v1217
        %v3010 = vsub.f32 0.0, %v1218
        %v3011 = vsub.f32 0.0, %v1219
        %v3012 = vsub.f32 0.0, %v1220
        %v3013 = vsub.f32 0.0, %v1221
        %v3014 = vsub.f32 0.0, %v1222
        %v3015 = vsub.f32 0.0, %v1223
        %v3016 = vsub.f32 0.0, %v1224
        %v3017 = vsub.f32 0.0, %v1225
        %v3018 = vsub.f32 0.0, %v1226
        %v3019 = vsub.f32 0.0, %v1227
        %v3020 = vsub.f32 0.0, %v1228
        %v3021 = vsub.f32 0.0, %v1229
        %v3022 = vsub.f32 0.0, %v1230
        %v3023 = vsub.f32 0.0, %v1231
        %v3024 = vsub.f32 0.0, %v1232
        %v3025 = vsub.f32 0.0, %v1233
        %v3026 = vsub.f32 0.0, %v1234
        %v3027 = vsub.f32 0.0, %v1235
        %v3028 = vsub.f32 0.0, %v1236
        %v3029 = vsub.f32 0.0, %v1237
        %v3030 = vsub.f32 0.0, %v1238
        %v3031 = vsub.f32 0.0, %v1239
        %v3032 = vsub.f32 0.0, %v1240
        %v3033 = vsub.f32 0.0, %v1241
        %v3034 = vsub.f32 0.0, %v1242
        %v3035 = vsub.f32 0.0, %v1243
        %v3036 = vsub.f32 0.0, %v1244
        %v3037 = vsub.f32 0.0, %v1245
        %v3038 = vsub.f32 0.0, %v1246
        %v3039 = vsub.f32 0.0, %v1247
        %v3040 = vsub.f32 0.0, %v1248
        %v3041 = vsub.f32 0.0, %v1249
        %v3042 = vsub.f32 0.0, %v1250
        %v3043 = vsub.f32 0.0, %v1251
        %v3044 = vsub.f32 0.0, %v1252
        %v3045 = vsub.f32 0.0, %v1253
        %v3046 = vsub.f32 0.0, %v1254
        %v3047 = vsub.f32 0.0, %v1255
        %v3048 = vsub.f32 0.0, %v1256
        %v3049 = vsub.f32 0.0, %v1257
        %v3050 = vsub.f32 0.0, %v1258
        %v3051 = vsub.f32 0.0, %v1259
        %v3052 = vsub.f32 0.0, %v1260
        %v3053 = vsub.f32 0.0, %v1261
        %v3054 = vsub.f32 0.0, %v1262
        %v3055 = vsub.f32 0.0, %v1263
        %v3056 = vmul.f32 %v2928, %v1136
        %v3057 = vmul.f32 %v2929, %v1137
        %v3058 = vmul.f32 %v2930, %v1138
        %v3059 = vmul.f32 %v2931, %v1139
        %v3060 = vmul.f32 %v2932, %v1140
        %v3061 = vmul.f32 %v2933, %v1141
        %v3062 = vmul.f32 %v2934, %v1142
        %v3063 = vmul.f32 %v2935, %v1143
        %v3064 = vmul.f32 %v2936, %v1144
        %v3065 = vmul.f32 %v2937, %v1145
        %v3066 = vmul.f32 %v2938, %v1146
        %v3067 = vmul.f32 %v2939, %v1147
        %v3068 = vmul.f32 %v2940, %v1148
        %v3069 = vmul.f32 %v2941, %v1149
        %v3070 = vmul.f32 %v2942, %v1150
        %v3071 = vmul.f32 %v2943, %v1151
        %v3072 = vmul.f32 %v2944, %v1152
        %v3073 = vmul.f32 %v2945, %v1153
        %v3074 = vmul.f32 %v2946, %v1154
        %v3075 = vmul.f32 %v2947, %v1155
        %v3076 = vmul.f32 %v2948, %v1156
        %v3077 = vmul.f32 %v2949, %v1157
        %v3078 = vmul.f32 %v2950, %v1158
        %v3079 = vmul.f32 %v2951, %v1159
        %v3080 = vmul.f32 %v2952, %v1160
        %v3081 = vmul.f32 %v2953, %v1161
        %v3082 = vmul.f32 %v2954, %v1162
        %v3083 = vmul.f32 %v2955, %v1163
        %v3084 = vmul.f32 %v2956, %v1164
        %v3085 = vmul.f32 %v2957, %v1165
        %v3086 = vmul.f32 %v2958, %v1166
        %v3087 = vmul.f32 %v2959, %v1167
        %v3088 = vmul.f32 %v2960, %v1168
        %v3089 = vmul.f32 %v2961, %v1169
        %v3090 = vmul.f32 %v2962, %v1170
        %v3091 = vmul.f32 %v2963, %v1171
        %v3092 = vmul.f32 %v2964, %v1172
        %v3093 = vmul.f32 %v2965, %v1173
        %v3094 = vmul.f32 %v2966, %v1174
        %v3095 = vmul.f32 %v2967, %v1175
        %v3096 = vmul.f32 %v2968, %v1176
        %v3097 = vmul.f32 %v2969, %v1177
        %v3098 = vmul.f32 %v2970, %v1178
        %v3099 = vmul.f32 %v2971, %v1179
        %v3100 = vmul.f32 %v2972, %v1180
        %v3101 = vmul.f32 %v2973, %v1181
        %v3102 = vmul.f32 %v2974, %v1182
        %v3103 = vmul.f32 %v2975, %v1183
        %v3104 = vmul.f32 %v2976, %v1184
        %v3105 = vmul.f32 %v2977, %v1185
        %v3106 = vmul.f32 %v2978, %v1186
        %v3107 = vmul.f32 %v2979, %v1187
        %v3108 = vmul.f32 %v2980, %v1188
        %v3109 = vmul.f32 %v2981, %v1189
        %v3110 = vmul.f32 %v2982, %v1190
        %v3111 = vmul.f32 %v2983, %v1191
        %v3112 = vmul.f32 %v2984, %v1192
        %v3113 = vmul.f32 %v2985, %v1193
        %v3114 = vmul.f32 %v2986, %v1194
        %v3115 = vmul.f32 %v2987, %v1195
        %v3116 = vmul.f32 %v2988, %v1196
        %v3117 = vmul.f32 %v2989, %v1197
        %v3118 = vmul.f32 %v2990, %v1198
        %v3119 = vmul.f32 %v2991, %v1199
        %v3120 = vmul.f32 %v2992, %v1200
        %v3121 = vmul.f32 %v2993, %v1201
        %v3122 = vmul.f32 %v2994, %v1202
        %v3123 = vmul.f32 %v2995, %v1203
        %v3124 = vmul.f32 %v2996, %v1204
        %v3125 = vmul.f32 %v2997, %v1205
        %v3126 = vmul.f32 %v2998, %v1206
        %v3127 = vmul.f32 %v2999, %v1207
        %v3128 = vmul.f32 %v3000, %v1208
        %v3129 = vmul.f32 %v3001, %v1209
        %v3130 = vmul.f32 %v3002, %v1210
        %v3131 = vmul.f32 %v3003, %v1211
        %v3132 = vmul.f32 %v3004, %v1212
        %v3133 = vmul.f32 %v3005, %v1213
        %v3134 = vmul.f32 %v3006, %v1214
        %v3135 = vmul.f32 %v3007, %v1215
        %v3136 = vmul.f32 %v3008, %v1216
        %v3137 = vmul.f32 %v3009, %v1217
        %v3138 = vmul.f32 %v3010, %v1218
        %v3139 = vmul.f32 %v3011, %v1219
        %v3140 = vmul.f32 %v3012, %v1220
        %v3141 = vmul.f32 %v3013, %v1221
        %v3142 = vmul.f32 %v3014, %v1222
        %v3143 = vmul.f32 %v3015, %v1223
        %v3144 = vmul.f32 %v3016, %v1224
        %v3145 = vmul.f32 %v3017, %v1225
        %v3146 = vmul.f32 %v3018, %v1226
        %v3147 = vmul.f32 %v3019, %v1227
        %v3148 = vmul.f32 %v3020, %v1228
        %v3149 = vmul.f32 %v3021, %v1229
        %v3150 = vmul.f32 %v3022, %v1230
        %v3151 = vmul.f32 %v3023, %v1231
        %v3152 = vmul.f32 %v3024, %v1232
        %v3153 = vmul.f32 %v3025, %v1233
        %v3154 = vmul.f32 %v3026, %v1234
        %v3155 = vmul.f32 %v3027, %v1235
        %v3156 = vmul.f32 %v3028, %v1236
        %v3157 = vmul.f32 %v3029, %v1237
        %v3158 = vmul.f32 %v3030, %v1238
        %v3159 = vmul.f32 %v3031, %v1239
        %v3160 = vmul.f32 %v3032, %v1240
        %v3161 = vmul.f32 %v3033, %v1241
        %v3162 = vmul.f32 %v3034, %v1242
        %v3163 = vmul.f32 %v3035, %v1243
        %v3164 = vmul.f32 %v3036, %v1244
        %v3165 = vmul.f32 %v3037, %v1245
        %v3166 = vmul.f32 %v3038, %v1246
        %v3167 = vmul.f32 %v3039, %v1247
        %v3168 = vmul.f32 %v3040, %v1248
        %v3169 = vmul.f32 %v3041, %v1249
        %v3170 = vmul.f32 %v3042, %v1250
        %v3171 = vmul.f32 %v3043, %v1251
        %v3172 = vmul.f32 %v3044, %v1252
        %v3173 = vmul.f32 %v3045, %v1253
        %v3174 = vmul.f32 %v3046, %v1254
        %v3175 = vmul.f32 %v3047, %v1255
        %v3176 = vmul.f32 %v3048, %v1256
        %v3177 = vmul.f32 %v3049, %v1257
        %v3178 = vmul.f32 %v3050, %v1258
        %v3179 = vmul.f32 %v3051, %v1259
        %v3180 = vmul.f32 %v3052, %v1260
        %v3181 = vmul.f32 %v3053, %v1261
        %v3182 = vmul.f32 %v3054, %v1262
        %v3183 = vmul.f32 %v3055, %v1263
        %v3184 = vmul.f32 %v3056, 1.442695
        %v3185 = vpow.pop %v3184
        %v3186 = vmul.f32 %v3057, 1.442695
        %v3187 = vpow.pop %v3186
        %v3188 = vmul.f32 %v3058, 1.442695
        %v3189 = vpow.pop %v3188
        %v3190 = vmul.f32 %v3059, 1.442695
        %v3191 = vpow.pop %v3190
        %v3192 = vmul.f32 %v3060, 1.442695
        %v3193 = vpow.pop %v3192
        %v3194 = vmul.f32 %v3061, 1.442695
        %v3195 = vpow.pop %v3194
        %v3196 = vmul.f32 %v3062, 1.442695
        %v3197 = vpow.pop %v3196
        %v3198 = vmul.f32 %v3063, 1.442695
        %v3199 = vpow.pop %v3198
        %v3200 = vmul.f32 %v3064, 1.442695
        %v3201 = vpow.pop %v3200
        %v3202 = vmul.f32 %v3065, 1.442695
        %v3203 = vpow.pop %v3202
        %v3204 = vmul.f32 %v3066, 1.442695
        %v3205 = vpow.pop %v3204
        %v3206 = vmul.f32 %v3067, 1.442695
        %v3207 = vpow.pop %v3206
        %v3208 = vmul.f32 %v3068, 1.442695
        %v3209 = vpow.pop %v3208
        %v3210 = vmul.f32 %v3069, 1.442695
        %v3211 = vpow.pop %v3210
        %v3212 = vmul.f32 %v3070, 1.442695
        %v3213 = vpow.pop %v3212
        %v3214 = vmul.f32 %v3071, 1.442695
        %v3215 = vpow.pop %v3214
        %v3216 = vmul.f32 %v3072, 1.442695
        %v3217 = vpow.pop %v3216
        %v3218 = vmul.f32 %v3073, 1.442695
        %v3219 = vpow.pop %v3218
        %v3220 = vmul.f32 %v3074, 1.442695
        %v3221 = vpow.pop %v3220
        %v3222 = vmul.f32 %v3075, 1.442695
        %v3223 = vpow.pop %v3222
        %v3224 = vmul.f32 %v3076, 1.442695
        %v3225 = vpow.pop %v3224
        %v3226 = vmul.f32 %v3077, 1.442695
        %v3227 = vpow.pop %v3226
        %v3228 = vmul.f32 %v3078, 1.442695
        %v3229 = vpow.pop %v3228
        %v3230 = vmul.f32 %v3079, 1.442695
        %v3231 = vpow.pop %v3230
        %v3232 = vmul.f32 %v3080, 1.442695
        %v3233 = vpow.pop %v3232
        %v3234 = vmul.f32 %v3081, 1.442695
        %v3235 = vpow.pop %v3234
        %v3236 = vmul.f32 %v3082, 1.442695
        %v3237 = vpow.pop %v3236
        %v3238 = vmul.f32 %v3083, 1.442695
        %v3239 = vpow.pop %v3238
        %v3240 = vmul.f32 %v3084, 1.442695
        %v3241 = vpow.pop %v3240
        %v3242 = vmul.f32 %v3085, 1.442695
        %v3243 = vpow.pop %v3242
        %v3244 = vmul.f32 %v3086, 1.442695
        %v3245 = vpow.pop %v3244
        %v3246 = vmul.f32 %v3087, 1.442695
        %v3247 = vpow.pop %v3246
        %v3248 = vmul.f32 %v3088, 1.442695
        %v3249 = vpow.pop %v3248
        %v3250 = vmul.f32 %v3089, 1.442695
        %v3251 = vpow.pop %v3250
        %v3252 = vmul.f32 %v3090, 1.442695
        %v3253 = vpow.pop %v3252
        %v3254 = vmul.f32 %v3091, 1.442695
        %v3255 = vpow.pop %v3254
        %v3256 = vmul.f32 %v3092, 1.442695
        %v3257 = vpow.pop %v3256
        %v3258 = vmul.f32 %v3093, 1.442695
        %v3259 = vpow.pop %v3258
        %v3260 = vmul.f32 %v3094, 1.442695
        %v3261 = vpow.pop %v3260
        %v3262 = vmul.f32 %v3095, 1.442695
        %v3263 = vpow.pop %v3262
        %v3264 = vmul.f32 %v3096, 1.442695
        %v3265 = vpow.pop %v3264
        %v3266 = vmul.f32 %v3097, 1.442695
        %v3267 = vpow.pop %v3266
        %v3268 = vmul.f32 %v3098, 1.442695
        %v3269 = vpow.pop %v3268
        %v3270 = vmul.f32 %v3099, 1.442695
        %v3271 = vpow.pop %v3270
        %v3272 = vmul.f32 %v3100, 1.442695
        %v3273 = vpow.pop %v3272
        %v3274 = vmul.f32 %v3101, 1.442695
        %v3275 = vpow.pop %v3274
        %v3276 = vmul.f32 %v3102, 1.442695
        %v3277 = vpow.pop %v3276
        %v3278 = vmul.f32 %v3103, 1.442695
        %v3279 = vpow.pop %v3278
        %v3280 = vmul.f32 %v3104, 1.442695
        %v3281 = vpow.pop %v3280
        %v3282 = vmul.f32 %v3105, 1.442695
        %v3283 = vpow.pop %v3282
        %v3284 = vmul.f32 %v3106, 1.442695
        %v3285 = vpow.pop %v3284
        %v3286 = vmul.f32 %v3107, 1.442695
        %v3287 = vpow.pop %v3286
        %v3288 = vmul.f32 %v3108, 1.442695
        %v3289 = vpow.pop %v3288
        %v3290 = vmul.f32 %v3109, 1.442695
        %v3291 = vpow.pop %v3290
        %v3292 = vmul.f32 %v3110, 1.442695
        %v3293 = vpow.pop %v3292
        %v3294 = vmul.f32 %v3111, 1.442695
        %v3295 = vpow.pop %v3294
        %v3296 = vmul.f32 %v3112, 1.442695
        %v3297 = vpow.pop %v3296
        %v3298 = vmul.f32 %v3113, 1.442695
        %v3299 = vpow.pop %v3298
        %v3300 = vmul.f32 %v3114, 1.442695
        %v3301 = vpow.pop %v3300
        %v3302 = vmul.f32 %v3115, 1.442695
        %v3303 = vpow.pop %v3302
        %v3304 = vmul.f32 %v3116, 1.442695
        %v3305 = vpow.pop %v3304
        %v3306 = vmul.f32 %v3117, 1.442695
        %v3307 = vpow.pop %v3306
        %v3308 = vmul.f32 %v3118, 1.442695
        %v3309 = vpow.pop %v3308
        %v3310 = vmul.f32 %v3119, 1.442695
        %v3311 = vpow.pop %v3310
        %v3312 = vmul.f32 %v3120, 1.442695
        %v3313 = vpow.pop %v3312
        %v3314 = vmul.f32 %v3121, 1.442695
        %v3315 = vpow.pop %v3314
        %v3316 = vmul.f32 %v3122, 1.442695
        %v3317 = vpow.pop %v3316
        %v3318 = vmul.f32 %v3123, 1.442695
        %v3319 = vpow.pop %v3318
        %v3320 = vmul.f32 %v3124, 1.442695
        %v3321 = vpow.pop %v3320
        %v3322 = vmul.f32 %v3125, 1.442695
        %v3323 = vpow.pop %v3322
        %v3324 = vmul.f32 %v3126, 1.442695
        %v3325 = vpow.pop %v3324
        %v3326 = vmul.f32 %v3127, 1.442695
        %v3327 = vpow.pop %v3326
        %v3328 = vmul.f32 %v3128, 1.442695
        %v3329 = vpow.pop %v3328
        %v3330 = vmul.f32 %v3129, 1.442695
        %v3331 = vpow.pop %v3330
        %v3332 = vmul.f32 %v3130, 1.442695
        %v3333 = vpow.pop %v3332
        %v3334 = vmul.f32 %v3131, 1.442695
        %v3335 = vpow.pop %v3334
        %v3336 = vmul.f32 %v3132, 1.442695
        %v3337 = vpow.pop %v3336
        %v3338 = vmul.f32 %v3133, 1.442695
        %v3339 = vpow.pop %v3338
        %v3340 = vmul.f32 %v3134, 1.442695
        %v3341 = vpow.pop %v3340
        %v3342 = vmul.f32 %v3135, 1.442695
        %v3343 = vpow.pop %v3342
        %v3344 = vmul.f32 %v3136, 1.442695
        %v3345 = vpow.pop %v3344
        %v3346 = vmul.f32 %v3137, 1.442695
        %v3347 = vpow.pop %v3346
        %v3348 = vmul.f32 %v3138, 1.442695
        %v3349 = vpow.pop %v3348
        %v3350 = vmul.f32 %v3139, 1.442695
        %v3351 = vpow.pop %v3350
        %v3352 = vmul.f32 %v3140, 1.442695
        %v3353 = vpow.pop %v3352
        %v3354 = vmul.f32 %v3141, 1.442695
        %v3355 = vpow.pop %v3354
        %v3356 = vmul.f32 %v3142, 1.442695
        %v3357 = vpow.pop %v3356
        %v3358 = vmul.f32 %v3143, 1.442695
        %v3359 = vpow.pop %v3358
        %v3360 = vmul.f32 %v3144, 1.442695
        %v3361 = vpow.pop %v3360
        %v3362 = vmul.f32 %v3145, 1.442695
        %v3363 = vpow.pop %v3362
        %v3364 = vmul.f32 %v3146, 1.442695
        %v3365 = vpow.pop %v3364
        %v3366 = vmul.f32 %v3147, 1.442695
        %v3367 = vpow.pop %v3366
        %v3368 = vmul.f32 %v3148, 1.442695
        %v3369 = vpow.pop %v3368
        %v3370 = vmul.f32 %v3149, 1.442695
        %v3371 = vpow.pop %v3370
        %v3372 = vmul.f32 %v3150, 1.442695
        %v3373 = vpow.pop %v3372
        %v3374 = vmul.f32 %v3151, 1.442695
        %v3375 = vpow.pop %v3374
        %v3376 = vmul.f32 %v3152, 1.442695
        %v3377 = vpow.pop %v3376
        %v3378 = vmul.f32 %v3153, 1.442695
        %v3379 = vpow.pop %v3378
        %v3380 = vmul.f32 %v3154, 1.442695
        %v3381 = vpow.pop %v3380
        %v3382 = vmul.f32 %v3155, 1.442695
        %v3383 = vpow.pop %v3382
        %v3384 = vmul.f32 %v3156, 1.442695
        %v3385 = vpow.pop %v3384
        %v3386 = vmul.f32 %v3157, 1.442695
        %v3387 = vpow.pop %v3386
        %v3388 = vmul.f32 %v3158, 1.442695
        %v3389 = vpow.pop %v3388
        %v3390 = vmul.f32 %v3159, 1.442695
        %v3391 = vpow.pop %v3390
        %v3392 = vmul.f32 %v3160, 1.442695
        %v3393 = vpow.pop %v3392
        %v3394 = vmul.f32 %v3161, 1.442695
        %v3395 = vpow.pop %v3394
        %v3396 = vmul.f32 %v3162, 1.442695
        %v3397 = vpow.pop %v3396
        %v3398 = vmul.f32 %v3163, 1.442695
        %v3399 = vpow.pop %v3398
        %v3400 = vmul.f32 %v3164, 1.442695
        %v3401 = vpow.pop %v3400
        %v3402 = vmul.f32 %v3165, 1.442695
        %v3403 = vpow.pop %v3402
        %v3404 = vmul.f32 %v3166, 1.442695
        %v3405 = vpow.pop %v3404
        %v3406 = vmul.f32 %v3167, 1.442695
        %v3407 = vpow.pop %v3406
        %v3408 = vmul.f32 %v3168, 1.442695
        %v3409 = vpow.pop %v3408
        %v3410 = vmul.f32 %v3169, 1.442695
        %v3411 = vpow.pop %v3410
        %v3412 = vmul.f32 %v3170, 1.442695
        %v3413 = vpow.pop %v3412
        %v3414 = vmul.f32 %v3171, 1.442695
        %v3415 = vpow.pop %v3414
        %v3416 = vmul.f32 %v3172, 1.442695
        %v3417 = vpow.pop %v3416
        %v3418 = vmul.f32 %v3173, 1.442695
        %v3419 = vpow.pop %v3418
        %v3420 = vmul.f32 %v3174, 1.442695
        %v3421 = vpow.pop %v3420
        %v3422 = vmul.f32 %v3175, 1.442695
        %v3423 = vpow.pop %v3422
        %v3424 = vmul.f32 %v3176, 1.442695
        %v3425 = vpow.pop %v3424
        %v3426 = vmul.f32 %v3177, 1.442695
        %v3427 = vpow.pop %v3426
        %v3428 = vmul.f32 %v3178, 1.442695
        %v3429 = vpow.pop %v3428
        %v3430 = vmul.f32 %v3179, 1.442695
        %v3431 = vpow.pop %v3430
        %v3432 = vmul.f32 %v3180, 1.442695
        %v3433 = vpow.pop %v3432
        %v3434 = vmul.f32 %v3181, 1.442695
        %v3435 = vpow.pop %v3434
        %v3436 = vmul.f32 %v3182, 1.442695
        %v3437 = vpow.pop %v3436
        %v3438 = vmul.f32 %v3183, 1.442695
        %v3439 = vpow.pop %v3438
        %v3440 = vmul.f32 %v2800, %v3185
        %v3441 = vmul.f32 %v2801, %v3187
        %v3442 = vmul.f32 %v2802, %v3189
        %v3443 = vmul.f32 %v2803, %v3191
        %v3444 = vmul.f32 %v2804, %v3193
        %v3445 = vmul.f32 %v2805, %v3195
        %v3446 = vmul.f32 %v2806, %v3197
        %v3447 = vmul.f32 %v2807, %v3199
        %v3448 = vmul.f32 %v2808, %v3201
        %v3449 = vmul.f32 %v2809, %v3203
        %v3450 = vmul.f32 %v2810, %v3205
        %v3451 = vmul.f32 %v2811, %v3207
        %v3452 = vmul.f32 %v2812, %v3209
        %v3453 = vmul.f32 %v2813, %v3211
        %v3454 = vmul.f32 %v2814, %v3213
        %v3455 = vmul.f32 %v2815, %v3215
        %v3456 = vmul.f32 %v2816, %v3217
        %v3457 = vmul.f32 %v2817, %v3219
        %v3458 = vmul.f32 %v2818, %v3221
        %v3459 = vmul.f32 %v2819, %v3223
        %v3460 = vmul.f32 %v2820, %v3225
        %v3461 = vmul.f32 %v2821, %v3227
        %v3462 = vmul.f32 %v2822, %v3229
        %v3463 = vmul.f32 %v2823, %v3231
        %v3464 = vmul.f32 %v2824, %v3233
        %v3465 = vmul.f32 %v2825, %v3235
        %v3466 = vmul.f32 %v2826, %v3237
        %v3467 = vmul.f32 %v2827, %v3239
        %v3468 = vmul.f32 %v2828, %v3241
        %v3469 = vmul.f32 %v2829, %v3243
        %v3470 = vmul.f32 %v2830, %v3245
        %v3471 = vmul.f32 %v2831, %v3247
        %v3472 = vmul.f32 %v2832, %v3249
        %v3473 = vmul.f32 %v2833, %v3251
        %v3474 = vmul.f32 %v2834, %v3253
        %v3475 = vmul.f32 %v2835, %v3255
        %v3476 = vmul.f32 %v2836, %v3257
        %v3477 = vmul.f32 %v2837, %v3259
        %v3478 = vmul.f32 %v2838, %v3261
        %v3479 = vmul.f32 %v2839, %v3263
        %v3480 = vmul.f32 %v2840, %v3265
        %v3481 = vmul.f32 %v2841, %v3267
        %v3482 = vmul.f32 %v2842, %v3269
        %v3483 = vmul.f32 %v2843, %v3271
        %v3484 = vmul.f32 %v2844, %v3273
        %v3485 = vmul.f32 %v2845, %v3275
        %v3486 = vmul.f32 %v2846, %v3277
        %v3487 = vmul.f32 %v2847, %v3279
        %v3488 = vmul.f32 %v2848, %v3281
        %v3489 = vmul.f32 %v2849, %v3283
        %v3490 = vmul.f32 %v2850, %v3285
        %v3491 = vmul.f32 %v2851, %v3287
        %v3492 = vmul.f32 %v2852, %v3289
        %v3493 = vmul.f32 %v2853, %v3291
        %v3494 = vmul.f32 %v2854, %v3293
        %v3495 = vmul.f32 %v2855, %v3295
        %v3496 = vmul.f32 %v2856, %v3297
        %v3497 = vmul.f32 %v2857, %v3299
        %v3498 = vmul.f32 %v2858, %v3301
        %v3499 = vmul.f32 %v2859, %v3303
        %v3500 = vmul.f32 %v2860, %v3305
        %v3501 = vmul.f32 %v2861, %v3307
        %v3502 = vmul.f32 %v2862, %v3309
        %v3503 = vmul.f32 %v2863, %v3311
        %v3504 = vmul.f32 %v2864, %v3313
        %v3505 = vmul.f32 %v2865, %v3315
        %v3506 = vmul.f32 %v2866, %v3317
        %v3507 = vmul.f32 %v2867, %v3319
        %v3508 = vmul.f32 %v2868, %v3321
        %v3509 = vmul.f32 %v2869, %v3323
        %v3510 = vmul.f32 %v2870, %v3325
        %v3511 = vmul.f32 %v2871, %v3327
        %v3512 = vmul.f32 %v2872, %v3329
        %v3513 = vmul.f32 %v2873, %v3331
        %v3514 = vmul.f32 %v2874, %v3333
        %v3515 = vmul.f32 %v2875, %v3335
        %v3516 = vmul.f32 %v2876, %v3337
        %v3517 = vmul.f32 %v2877, %v3339
        %v3518 = vmul.f32 %v2878, %v3341
        %v3519 = vmul.f32 %v2879, %v3343
        %v3520 = vmul.f32 %v2880, %v3345
        %v3521 = vmul.f32 %v2881, %v3347
        %v3522 = vmul.f32 %v2882, %v3349
        %v3523 = vmul.f32 %v2883, %v3351
        %v3524 = vmul.f32 %v2884, %v3353
        %v3525 = vmul.f32 %v2885, %v3355
        %v3526 = vmul.f32 %v2886, %v3357
        %v3527 = vmul.f32 %v2887, %v3359
        %v3528 = vmul.f32 %v2888, %v3361
        %v3529 = vmul.f32 %v2889, %v3363
        %v3530 = vmul.f32 %v2890, %v3365
        %v3531 = vmul.f32 %v2891, %v3367
        %v3532 = vmul.f32 %v2892, %v3369
        %v3533 = vmul.f32 %v2893, %v3371
        %v3534 = vmul.f32 %v2894, %v3373
        %v3535 = vmul.f32 %v2895, %v3375
        %v3536 = vmul.f32 %v2896, %v3377
        %v3537 = vmul.f32 %v2897, %v3379
        %v3538 = vmul.f32 %v2898, %v3381
        %v3539 = vmul.f32 %v2899, %v3383
        %v3540 = vmul.f32 %v2900, %v3385
        %v3541 = vmul.f32 %v2901, %v3387
        %v3542 = vmul.f32 %v2902, %v3389
        %v3543 = vmul.f32 %v2903, %v3391
        %v3544 = vmul.f32 %v2904, %v3393
        %v3545 = vmul.f32 %v2905, %v3395
        %v3546 = vmul.f32 %v2906, %v3397
        %v3547 = vmul.f32 %v2907, %v3399
        %v3548 = vmul.f32 %v2908, %v3401
        %v3549 = vmul.f32 %v2909, %v3403
        %v3550 = vmul.f32 %v2910, %v3405
        %v3551 = vmul.f32 %v2911, %v3407
        %v3552 = vmul.f32 %v2912, %v3409
        %v3553 = vmul.f32 %v2913, %v3411
        %v3554 = vmul.f32 %v2914, %v3413
        %v3555 = vmul.f32 %v2915, %v3415
        %v3556 = vmul.f32 %v2916, %v3417
        %v3557 = vmul.f32 %v2917, %v3419
        %v3558 = vmul.f32 %v2918, %v3421
        %v3559 = vmul.f32 %v2919, %v3423
        %v3560 = vmul.f32 %v2920, %v3425
        %v3561 = vmul.f32 %v2921, %v3427
        %v3562 = vmul.f32 %v2922, %v3429
        %v3563 = vmul.f32 %v2923, %v3431
        %v3564 = vmul.f32 %v2924, %v3433
        %v3565 = vmul.f32 %v2925, %v3435
        %v3566 = vmul.f32 %v2926, %v3437
        %v3567 = vmul.f32 %v2927, %v3439
        %v3568 = vsub.f32 1.0, %v3440
        %v3569 = vsub.f32 1.0, %v3441
        %v3570 = vsub.f32 1.0, %v3442
        %v3571 = vsub.f32 1.0, %v3443
        %v3572 = vsub.f32 1.0, %v3444
        %v3573 = vsub.f32 1.0, %v3445
        %v3574 = vsub.f32 1.0, %v3446
        %v3575 = vsub.f32 1.0, %v3447
        %v3576 = vsub.f32 1.0, %v3448
        %v3577 = vsub.f32 1.0, %v3449
        %v3578 = vsub.f32 1.0, %v3450
        %v3579 = vsub.f32 1.0, %v3451
        %v3580 = vsub.f32 1.0, %v3452
        %v3581 = vsub.f32 1.0, %v3453
        %v3582 = vsub.f32 1.0, %v3454
        %v3583 = vsub.f32 1.0, %v3455
        %v3584 = vsub.f32 1.0, %v3456
        %v3585 = vsub.f32 1.0, %v3457
        %v3586 = vsub.f32 1.0, %v3458
        %v3587 = vsub.f32 1.0, %v3459
        %v3588 = vsub.f32 1.0, %v3460
        %v3589 = vsub.f32 1.0, %v3461
        %v3590 = vsub.f32 1.0, %v3462
        %v3591 = vsub.f32 1.0, %v3463
        %v3592 = vsub.f32 1.0, %v3464
        %v3593 = vsub.f32 1.0, %v3465
        %v3594 = vsub.f32 1.0, %v3466
        %v3595 = vsub.f32 1.0, %v3467
        %v3596 = vsub.f32 1.0, %v3468
        %v3597 = vsub.f32 1.0, %v3469
        %v3598 = vsub.f32 1.0, %v3470
        %v3599 = vsub.f32 1.0, %v3471
        %v3600 = vsub.f32 1.0, %v3472
        %v3601 = vsub.f32 1.0, %v3473
        %v3602 = vsub.f32 1.0, %v3474
        %v3603 = vsub.f32 1.0, %v3475
        %v3604 = vsub.f32 1.0, %v3476
        %v3605 = vsub.f32 1.0, %v3477
        %v3606 = vsub.f32 1.0, %v3478
        %v3607 = vsub.f32 1.0, %v3479
        %v3608 = vsub.f32 1.0, %v3480
        %v3609 = vsub.f32 1.0, %v3481
        %v3610 = vsub.f32 1.0, %v3482
        %v3611 = vsub.f32 1.0, %v3483
        %v3612 = vsub.f32 1.0, %v3484
        %v3613 = vsub.f32 1.0, %v3485
        %v3614 = vsub.f32 1.0, %v3486
        %v3615 = vsub.f32 1.0, %v3487
        %v3616 = vsub.f32 1.0, %v3488
        %v3617 = vsub.f32 1.0, %v3489
        %v3618 = vsub.f32 1.0, %v3490
        %v3619 = vsub.f32 1.0, %v3491
        %v3620 = vsub.f32 1.0, %v3492
        %v3621 = vsub.f32 1.0, %v3493
        %v3622 = vsub.f32 1.0, %v3494
        %v3623 = vsub.f32 1.0, %v3495
        %v3624 = vsub.f32 1.0, %v3496
        %v3625 = vsub.f32 1.0, %v3497
        %v3626 = vsub.f32 1.0, %v3498
        %v3627 = vsub.f32 1.0, %v3499
        %v3628 = vsub.f32 1.0, %v3500
        %v3629 = vsub.f32 1.0, %v3501
        %v3630 = vsub.f32 1.0, %v3502
        %v3631 = vsub.f32 1.0, %v3503
        %v3632 = vsub.f32 1.0, %v3504
        %v3633 = vsub.f32 1.0, %v3505
        %v3634 = vsub.f32 1.0, %v3506
        %v3635 = vsub.f32 1.0, %v3507
        %v3636 = vsub.f32 1.0, %v3508
        %v3637 = vsub.f32 1.0, %v3509
        %v3638 = vsub.f32 1.0, %v3510
        %v3639 = vsub.f32 1.0, %v3511
        %v3640 = vsub.f32 1.0, %v3512
        %v3641 = vsub.f32 1.0, %v3513
        %v3642 = vsub.f32 1.0, %v3514
        %v3643 = vsub.f32 1.0, %v3515
        %v3644 = vsub.f32 1.0, %v3516
        %v3645 = vsub.f32 1.0, %v3517
        %v3646 = vsub.f32 1.0, %v3518
        %v3647 = vsub.f32 1.0, %v3519
        %v3648 = vsub.f32 1.0, %v3520
        %v3649 = vsub.f32 1.0, %v3521
        %v3650 = vsub.f32 1.0, %v3522
        %v3651 = vsub.f32 1.0, %v3523
        %v3652 = vsub.f32 1.0, %v3524
        %v3653 = vsub.f32 1.0, %v3525
        %v3654 = vsub.f32 1.0, %v3526
        %v3655 = vsub.f32 1.0, %v3527
        %v3656 = vsub.f32 1.0, %v3528
        %v3657 = vsub.f32 1.0, %v3529
        %v3658 = vsub.f32 1.0, %v3530
        %v3659 = vsub.f32 1.0, %v3531
        %v3660 = vsub.f32 1.0, %v3532
        %v3661 = vsub.f32 1.0, %v3533
        %v3662 = vsub.f32 1.0, %v3534
        %v3663 = vsub.f32 1.0, %v3535
        %v3664 = vsub.f32 1.0, %v3536
        %v3665 = vsub.f32 1.0, %v3537
        %v3666 = vsub.f32 1.0, %v3538
        %v3667 = vsub.f32 1.0, %v3539
        %v3668 = vsub.f32 1.0, %v3540
        %v3669 = vsub.f32 1.0, %v3541
        %v3670 = vsub.f32 1.0, %v3542
        %v3671 = vsub.f32 1.0, %v3543
        %v3672 = vsub.f32 1.0, %v3544
        %v3673 = vsub.f32 1.0, %v3545
        %v3674 = vsub.f32 1.0, %v3546
        %v3675 = vsub.f32 1.0, %v3547
        %v3676 = vsub.f32 1.0, %v3548
        %v3677 = vsub.f32 1.0, %v3549
        %v3678 = vsub.f32 1.0, %v3550
        %v3679 = vsub.f32 1.0, %v3551
        %v3680 = vsub.f32 1.0, %v3552
        %v3681 = vsub.f32 1.0, %v3553
        %v3682 = vsub.f32 1.0, %v3554
        %v3683 = vsub.f32 1.0, %v3555
        %v3684 = vsub.f32 1.0, %v3556
        %v3685 = vsub.f32 1.0, %v3557
        %v3686 = vsub.f32 1.0, %v3558
        %v3687 = vsub.f32 1.0, %v3559
        %v3688 = vsub.f32 1.0, %v3560
        %v3689 = vsub.f32 1.0, %v3561
        %v3690 = vsub.f32 1.0, %v3562
        %v3691 = vsub.f32 1.0, %v3563
        %v3692 = vsub.f32 1.0, %v3564
        %v3693 = vsub.f32 1.0, %v3565
        %v3694 = vsub.f32 1.0, %v3566
        %v3695 = vsub.f32 1.0, %v3567
        %vm3696 = vcmp.ge.f32.partialorder %v1008, 0.0
        %vm3697 = vcmp.ge.f32.partialorder %v1009, 0.0
        %vm3698 = vcmp.ge.f32.partialorder %v1010, 0.0
        %vm3699 = vcmp.ge.f32.partialorder %v1011, 0.0
        %vm3700 = vcmp.ge.f32.partialorder %v1012, 0.0
        %vm3701 = vcmp.ge.f32.partialorder %v1013, 0.0
        %vm3702 = vcmp.ge.f32.partialorder %v1014, 0.0
        %vm3703 = vcmp.ge.f32.partialorder %v1015, 0.0
        %vm3704 = vcmp.ge.f32.partialorder %v1016, 0.0
        %vm3705 = vcmp.ge.f32.partialorder %v1017, 0.0
        %vm3706 = vcmp.ge.f32.partialorder %v1018, 0.0
        %vm3707 = vcmp.ge.f32.partialorder %v1019, 0.0
        %vm3708 = vcmp.ge.f32.partialorder %v1020, 0.0
        %vm3709 = vcmp.ge.f32.partialorder %v1021, 0.0
        %vm3710 = vcmp.ge.f32.partialorder %v1022, 0.0
        %vm3711 = vcmp.ge.f32.partialorder %v1023, 0.0
        %vm3712 = vcmp.ge.f32.partialorder %v1024, 0.0
        %vm3713 = vcmp.ge.f32.partialorder %v1025, 0.0
        %vm3714 = vcmp.ge.f32.partialorder %v1026, 0.0
        %vm3715 = vcmp.ge.f32.partialorder %v1027, 0.0
        %vm3716 = vcmp.ge.f32.partialorder %v1028, 0.0
        %vm3717 = vcmp.ge.f32.partialorder %v1029, 0.0
        %vm3718 = vcmp.ge.f32.partialorder %v1030, 0.0
        %vm3719 = vcmp.ge.f32.partialorder %v1031, 0.0
        %vm3720 = vcmp.ge.f32.partialorder %v1032, 0.0
        %vm3721 = vcmp.ge.f32.partialorder %v1033, 0.0
        %vm3722 = vcmp.ge.f32.partialorder %v1034, 0.0
        %vm3723 = vcmp.ge.f32.partialorder %v1035, 0.0
        %vm3724 = vcmp.ge.f32.partialorder %v1036, 0.0
        %vm3725 = vcmp.ge.f32.partialorder %v1037, 0.0
        %vm3726 = vcmp.ge.f32.partialorder %v1038, 0.0
        %vm3727 = vcmp.ge.f32.partialorder %v1039, 0.0
        %vm3728 = vcmp.ge.f32.partialorder %v1040, 0.0
        %vm3729 = vcmp.ge.f32.partialorder %v1041, 0.0
        %vm3730 = vcmp.ge.f32.partialorder %v1042, 0.0
        %vm3731 = vcmp.ge.f32.partialorder %v1043, 0.0
        %vm3732 = vcmp.ge.f32.partialorder %v1044, 0.0
        %vm3733 = vcmp.ge.f32.partialorder %v1045, 0.0
        %vm3734 = vcmp.ge.f32.partialorder %v1046, 0.0
        %vm3735 = vcmp.ge.f32.partialorder %v1047, 0.0
        %vm3736 = vcmp.ge.f32.partialorder %v1048, 0.0
        %vm3737 = vcmp.ge.f32.partialorder %v1049, 0.0
        %vm3738 = vcmp.ge.f32.partialorder %v1050, 0.0
        %vm3739 = vcmp.ge.f32.partialorder %v1051, 0.0
        %vm3740 = vcmp.ge.f32.partialorder %v1052, 0.0
        %vm3741 = vcmp.ge.f32.partialorder %v1053, 0.0
        %vm3742 = vcmp.ge.f32.partialorder %v1054, 0.0
        %vm3743 = vcmp.ge.f32.partialorder %v1055, 0.0
        %vm3744 = vcmp.ge.f32.partialorder %v1056, 0.0
        %vm3745 = vcmp.ge.f32.partialorder %v1057, 0.0
        %vm3746 = vcmp.ge.f32.partialorder %v1058, 0.0
        %vm3747 = vcmp.ge.f32.partialorder %v1059, 0.0
        %vm3748 = vcmp.ge.f32.partialorder %v1060, 0.0
        %vm3749 = vcmp.ge.f32.partialorder %v1061, 0.0
        %vm3750 = vcmp.ge.f32.partialorder %v1062, 0.0
        %vm3751 = vcmp.ge.f32.partialorder %v1063, 0.0
        %vm3752 = vcmp.ge.f32.partialorder %v1064, 0.0
        %vm3753 = vcmp.ge.f32.partialorder %v1065, 0.0
        %vm3754 = vcmp.ge.f32.partialorder %v1066, 0.0
        %vm3755 = vcmp.ge.f32.partialorder %v1067, 0.0
        %vm3756 = vcmp.ge.f32.partialorder %v1068, 0.0
        %vm3757 = vcmp.ge.f32.partialorder %v1069, 0.0
        %vm3758 = vcmp.ge.f32.partialorder %v1070, 0.0
        %vm3759 = vcmp.ge.f32.partialorder %v1071, 0.0
        %vm3760 = vcmp.ge.f32.partialorder %v1072, 0.0
        %vm3761 = vcmp.ge.f32.partialorder %v1073, 0.0
        %vm3762 = vcmp.ge.f32.partialorder %v1074, 0.0
        %vm3763 = vcmp.ge.f32.partialorder %v1075, 0.0
        %vm3764 = vcmp.ge.f32.partialorder %v1076, 0.0
        %vm3765 = vcmp.ge.f32.partialorder %v1077, 0.0
        %vm3766 = vcmp.ge.f32.partialorder %v1078, 0.0
        %vm3767 = vcmp.ge.f32.partialorder %v1079, 0.0
        %vm3768 = vcmp.ge.f32.partialorder %v1080, 0.0
        %vm3769 = vcmp.ge.f32.partialorder %v1081, 0.0
        %vm3770 = vcmp.ge.f32.partialorder %v1082, 0.0
        %vm3771 = vcmp.ge.f32.partialorder %v1083, 0.0
        %vm3772 = vcmp.ge.f32.partialorder %v1084, 0.0
        %vm3773 = vcmp.ge.f32.partialorder %v1085, 0.0
        %vm3774 = vcmp.ge.f32.partialorder %v1086, 0.0
        %vm3775 = vcmp.ge.f32.partialorder %v1087, 0.0
        %vm3776 = vcmp.ge.f32.partialorder %v1088, 0.0
        %vm3777 = vcmp.ge.f32.partialorder %v1089, 0.0
        %vm3778 = vcmp.ge.f32.partialorder %v1090, 0.0
        %vm3779 = vcmp.ge.f32.partialorder %v1091, 0.0
        %vm3780 = vcmp.ge.f32.partialorder %v1092, 0.0
        %vm3781 = vcmp.ge.f32.partialorder %v1093, 0.0
        %vm3782 = vcmp.ge.f32.partialorder %v1094, 0.0
        %vm3783 = vcmp.ge.f32.partialorder %v1095, 0.0
        %vm3784 = vcmp.ge.f32.partialorder %v1096, 0.0
        %vm3785 = vcmp.ge.f32.partialorder %v1097, 0.0
        %vm3786 = vcmp.ge.f32.partialorder %v1098, 0.0
        %vm3787 = vcmp.ge.f32.partialorder %v1099, 0.0
        %vm3788 = vcmp.ge.f32.partialorder %v1100, 0.0
        %vm3789 = vcmp.ge.f32.partialorder %v1101, 0.0
        %vm3790 = vcmp.ge.f32.partialorder %v1102, 0.0
        %vm3791 = vcmp.ge.f32.partialorder %v1103, 0.0
        %vm3792 = vcmp.ge.f32.partialorder %v1104, 0.0
        %vm3793 = vcmp.ge.f32.partialorder %v1105, 0.0
        %vm3794 = vcmp.ge.f32.partialorder %v1106, 0.0
        %vm3795 = vcmp.ge.f32.partialorder %v1107, 0.0
        %vm3796 = vcmp.ge.f32.partialorder %v1108, 0.0
        %vm3797 = vcmp.ge.f32.partialorder %v1109, 0.0
        %vm3798 = vcmp.ge.f32.partialorder %v1110, 0.0
        %vm3799 = vcmp.ge.f32.partialorder %v1111, 0.0
        %vm3800 = vcmp.ge.f32.partialorder %v1112, 0.0
        %vm3801 = vcmp.ge.f32.partialorder %v1113, 0.0
        %vm3802 = vcmp.ge.f32.partialorder %v1114, 0.0
        %vm3803 = vcmp.ge.f32.partialorder %v1115, 0.0
        %vm3804 = vcmp.ge.f32.partialorder %v1116, 0.0
        %vm3805 = vcmp.ge.f32.partialorder %v1117, 0.0
        %vm3806 = vcmp.ge.f32.partialorder %v1118, 0.0
        %vm3807 = vcmp.ge.f32.partialorder %v1119, 0.0
        %vm3808 = vcmp.ge.f32.partialorder %v1120, 0.0
        %vm3809 = vcmp.ge.f32.partialorder %v1121, 0.0
        %vm3810 = vcmp.ge.f32.partialorder %v1122, 0.0
        %vm3811 = vcmp.ge.f32.partialorder %v1123, 0.0
        %vm3812 = vcmp.ge.f32.partialorder %v1124, 0.0
        %vm3813 = vcmp.ge.f32.partialorder %v1125, 0.0
        %vm3814 = vcmp.ge.f32.partialorder %v1126, 0.0
        %vm3815 = vcmp.ge.f32.partialorder %v1127, 0.0
        %vm3816 = vcmp.ge.f32.partialorder %v1128, 0.0
        %vm3817 = vcmp.ge.f32.partialorder %v1129, 0.0
        %vm3818 = vcmp.ge.f32.partialorder %v1130, 0.0
        %vm3819 = vcmp.ge.f32.partialorder %v1131, 0.0
        %vm3820 = vcmp.ge.f32.partialorder %v1132, 0.0
        %vm3821 = vcmp.ge.f32.partialorder %v1133, 0.0
        %vm3822 = vcmp.ge.f32.partialorder %v1134, 0.0
        %vm3823 = vcmp.ge.f32.partialorder %v1135, 0.0
        %v3824 = vsub.f32 0.0, %v3568
        %v3825 = vsub.f32 0.0, %v3569
        %v3826 = vsub.f32 0.0, %v3570
        %v3827 = vsub.f32 0.0, %v3571
        %v3828 = vsub.f32 0.0, %v3572
        %v3829 = vsub.f32 0.0, %v3573
        %v3830 = vsub.f32 0.0, %v3574
        %v3831 = vsub.f32 0.0, %v3575
        %v3832 = vsub.f32 0.0, %v3576
        %v3833 = vsub.f32 0.0, %v3577
        %v3834 = vsub.f32 0.0, %v3578
        %v3835 = vsub.f32 0.0, %v3579
        %v3836 = vsub.f32 0.0, %v3580
        %v3837 = vsub.f32 0.0, %v3581
        %v3838 = vsub.f32 0.0, %v3582
        %v3839 = vsub.f32 0.0, %v3583
        %v3840 = vsub.f32 0.0, %v3584
        %v3841 = vsub.f32 0.0, %v3585
        %v3842 = vsub.f32 0.0, %v3586
        %v3843 = vsub.f32 0.0, %v3587
        %v3844 = vsub.f32 0.0, %v3588
        %v3845 = vsub.f32 0.0, %v3589
        %v3846 = vsub.f32 0.0, %v3590
        %v3847 = vsub.f32 0.0, %v3591
        %v3848 = vsub.f32 0.0, %v3592
        %v3849 = vsub.f32 0.0, %v3593
        %v3850 = vsub.f32 0.0, %v3594
        %v3851 = vsub.f32 0.0, %v3595
        %v3852 = vsub.f32 0.0, %v3596
        %v3853 = vsub.f32 0.0, %v3597
        %v3854 = vsub.f32 0.0, %v3598
        %v3855 = vsub.f32 0.0, %v3599
        %v3856 = vsub.f32 0.0, %v3600
        %v3857 = vsub.f32 0.0, %v3601
        %v3858 = vsub.f32 0.0, %v3602
        %v3859 = vsub.f32 0.0, %v3603
        %v3860 = vsub.f32 0.0, %v3604
        %v3861 = vsub.f32 0.0, %v3605
        %v3862 = vsub.f32 0.0, %v3606
        %v3863 = vsub.f32 0.0, %v3607
        %v3864 = vsub.f32 0.0, %v3608
        %v3865 = vsub.f32 0.0, %v3609
        %v3866 = vsub.f32 0.0, %v3610
        %v3867 = vsub.f32 0.0, %v3611
        %v3868 = vsub.f32 0.0, %v3612
        %v3869 = vsub.f32 0.0, %v3613
        %v3870 = vsub.f32 0.0, %v3614
        %v3871 = vsub.f32 0.0, %v3615
        %v3872 = vsub.f32 0.0, %v3616
        %v3873 = vsub.f32 0.0, %v3617
        %v3874 = vsub.f32 0.0, %v3618
        %v3875 = vsub.f32 0.0, %v3619
        %v3876 = vsub.f32 0.0, %v3620
        %v3877 = vsub.f32 0.0, %v3621
        %v3878 = vsub.f32 0.0, %v3622
        %v3879 = vsub.f32 0.0, %v3623
        %v3880 = vsub.f32 0.0, %v3624
        %v3881 = vsub.f32 0.0, %v3625
        %v3882 = vsub.f32 0.0, %v3626
        %v3883 = vsub.f32 0.0, %v3627
        %v3884 = vsub.f32 0.0, %v3628
        %v3885 = vsub.f32 0.0, %v3629
        %v3886 = vsub.f32 0.0, %v3630
        %v3887 = vsub.f32 0.0, %v3631
        %v3888 = vsub.f32 0.0, %v3632
        %v3889 = vsub.f32 0.0, %v3633
        %v3890 = vsub.f32 0.0, %v3634
        %v3891 = vsub.f32 0.0, %v3635
        %v3892 = vsub.f32 0.0, %v3636
        %v3893 = vsub.f32 0.0, %v3637
        %v3894 = vsub.f32 0.0, %v3638
        %v3895 = vsub.f32 0.0, %v3639
        %v3896 = vsub.f32 0.0, %v3640
        %v3897 = vsub.f32 0.0, %v3641
        %v3898 = vsub.f32 0.0, %v3642
        %v3899 = vsub.f32 0.0, %v3643
        %v3900 = vsub.f32 0.0, %v3644
        %v3901 = vsub.f32 0.0, %v3645
        %v3902 = vsub.f32 0.0, %v3646
        %v3903 = vsub.f32 0.0, %v3647
        %v3904 = vsub.f32 0.0, %v3648
        %v3905 = vsub.f32 0.0, %v3649
        %v3906 = vsub.f32 0.0, %v3650
        %v3907 = vsub.f32 0.0, %v3651
        %v3908 = vsub.f32 0.0, %v3652
        %v3909 = vsub.f32 0.0, %v3653
        %v3910 = vsub.f32 0.0, %v3654
        %v3911 = vsub.f32 0.0, %v3655
        %v3912 = vsub.f32 0.0, %v3656
        %v3913 = vsub.f32 0.0, %v3657
        %v3914 = vsub.f32 0.0, %v3658
        %v3915 = vsub.f32 0.0, %v3659
        %v3916 = vsub.f32 0.0, %v3660
        %v3917 = vsub.f32 0.0, %v3661
        %v3918 = vsub.f32 0.0, %v3662
        %v3919 = vsub.f32 0.0, %v3663
        %v3920 = vsub.f32 0.0, %v3664
        %v3921 = vsub.f32 0.0, %v3665
        %v3922 = vsub.f32 0.0, %v3666
        %v3923 = vsub.f32 0.0, %v3667
        %v3924 = vsub.f32 0.0, %v3668
        %v3925 = vsub.f32 0.0, %v3669
        %v3926 = vsub.f32 0.0, %v3670
        %v3927 = vsub.f32 0.0, %v3671
        %v3928 = vsub.f32 0.0, %v3672
        %v3929 = vsub.f32 0.0, %v3673
        %v3930 = vsub.f32 0.0, %v3674
        %v3931 = vsub.f32 0.0, %v3675
        %v3932 = vsub.f32 0.0, %v3676
        %v3933 = vsub.f32 0.0, %v3677
        %v3934 = vsub.f32 0.0, %v3678
        %v3935 = vsub.f32 0.0, %v3679
        %v3936 = vsub.f32 0.0, %v3680
        %v3937 = vsub.f32 0.0, %v3681
        %v3938 = vsub.f32 0.0, %v3682
        %v3939 = vsub.f32 0.0, %v3683
        %v3940 = vsub.f32 0.0, %v3684
        %v3941 = vsub.f32 0.0, %v3685
        %v3942 = vsub.f32 0.0, %v3686
        %v3943 = vsub.f32 0.0, %v3687
        %v3944 = vsub.f32 0.0, %v3688
        %v3945 = vsub.f32 0.0, %v3689
        %v3946 = vsub.f32 0.0, %v3690
        %v3947 = vsub.f32 0.0, %v3691
        %v3948 = vsub.f32 0.0, %v3692
        %v3949 = vsub.f32 0.0, %v3693
        %v3950 = vsub.f32 0.0, %v3694
        %v3951 = vsub.f32 0.0, %v3695
        %v3952 = vsel %vm3696, %v3568, %v3824
        %v3953 = vsel %vm3697, %v3569, %v3825
        %v3954 = vsel %vm3698, %v3570, %v3826
        %v3955 = vsel %vm3699, %v3571, %v3827
        %v3956 = vsel %vm3700, %v3572, %v3828
        %v3957 = vsel %vm3701, %v3573, %v3829
        %v3958 = vsel %vm3702, %v3574, %v3830
        %v3959 = vsel %vm3703, %v3575, %v3831
        %v3960 = vsel %vm3704, %v3576, %v3832
        %v3961 = vsel %vm3705, %v3577, %v3833
        %v3962 = vsel %vm3706, %v3578, %v3834
        %v3963 = vsel %vm3707, %v3579, %v3835
        %v3964 = vsel %vm3708, %v3580, %v3836
        %v3965 = vsel %vm3709, %v3581, %v3837
        %v3966 = vsel %vm3710, %v3582, %v3838
        %v3967 = vsel %vm3711, %v3583, %v3839
        %v3968 = vsel %vm3712, %v3584, %v3840
        %v3969 = vsel %vm3713, %v3585, %v3841
        %v3970 = vsel %vm3714, %v3586, %v3842
        %v3971 = vsel %vm3715, %v3587, %v3843
        %v3972 = vsel %vm3716, %v3588, %v3844
        %v3973 = vsel %vm3717, %v3589, %v3845
        %v3974 = vsel %vm3718, %v3590, %v3846
        %v3975 = vsel %vm3719, %v3591, %v3847
        %v3976 = vsel %vm3720, %v3592, %v3848
        %v3977 = vsel %vm3721, %v3593, %v3849
        %v3978 = vsel %vm3722, %v3594, %v3850
        %v3979 = vsel %vm3723, %v3595, %v3851
        %v3980 = vsel %vm3724, %v3596, %v3852
        %v3981 = vsel %vm3725, %v3597, %v3853
        %v3982 = vsel %vm3726, %v3598, %v3854
        %v3983 = vsel %vm3727, %v3599, %v3855
        %v3984 = vsel %vm3728, %v3600, %v3856
        %v3985 = vsel %vm3729, %v3601, %v3857
        %v3986 = vsel %vm3730, %v3602, %v3858
        %v3987 = vsel %vm3731, %v3603, %v3859
        %v3988 = vsel %vm3732, %v3604, %v3860
        %v3989 = vsel %vm3733, %v3605, %v3861
        %v3990 = vsel %vm3734, %v3606, %v3862
        %v3991 = vsel %vm3735, %v3607, %v3863
        %v3992 = vsel %vm3736, %v3608, %v3864
        %v3993 = vsel %vm3737, %v3609, %v3865
        %v3994 = vsel %vm3738, %v3610, %v3866
        %v3995 = vsel %vm3739, %v3611, %v3867
        %v3996 = vsel %vm3740, %v3612, %v3868
        %v3997 = vsel %vm3741, %v3613, %v3869
        %v3998 = vsel %vm3742, %v3614, %v3870
        %v3999 = vsel %vm3743, %v3615, %v3871
        %v4000 = vsel %vm3744, %v3616, %v3872
        %v4001 = vsel %vm3745, %v3617, %v3873
        %v4002 = vsel %vm3746, %v3618, %v3874
        %v4003 = vsel %vm3747, %v3619, %v3875
        %v4004 = vsel %vm3748, %v3620, %v3876
        %v4005 = vsel %vm3749, %v3621, %v3877
        %v4006 = vsel %vm3750, %v3622, %v3878
        %v4007 = vsel %vm3751, %v3623, %v3879
        %v4008 = vsel %vm3752, %v3624, %v3880
        %v4009 = vsel %vm3753, %v3625, %v3881
        %v4010 = vsel %vm3754, %v3626, %v3882
        %v4011 = vsel %vm3755, %v3627, %v3883
        %v4012 = vsel %vm3756, %v3628, %v3884
        %v4013 = vsel %vm3757, %v3629, %v3885
        %v4014 = vsel %vm3758, %v3630, %v3886
        %v4015 = vsel %vm3759, %v3631, %v3887
        %v4016 = vsel %vm3760, %v3632, %v3888
        %v4017 = vsel %vm3761, %v3633, %v3889
        %v4018 = vsel %vm3762, %v3634, %v3890
        %v4019 = vsel %vm3763, %v3635, %v3891
        %v4020 = vsel %vm3764, %v3636, %v3892
        %v4021 = vsel %vm3765, %v3637, %v3893
        %v4022 = vsel %vm3766, %v3638, %v3894
        %v4023 = vsel %vm3767, %v3639, %v3895
        %v4024 = vsel %vm3768, %v3640, %v3896
        %v4025 = vsel %vm3769, %v3641, %v3897
        %v4026 = vsel %vm3770, %v3642, %v3898
        %v4027 = vsel %vm3771, %v3643, %v3899
        %v4028 = vsel %vm3772, %v3644, %v3900
        %v4029 = vsel %vm3773, %v3645, %v3901
        %v4030 = vsel %vm3774, %v3646, %v3902
        %v4031 = vsel %vm3775, %v3647, %v3903
        %v4032 = vsel %vm3776, %v3648, %v3904
        %v4033 = vsel %vm3777, %v3649, %v3905
        %v4034 = vsel %vm3778, %v3650, %v3906
        %v4035 = vsel %vm3779, %v3651, %v3907
        %v4036 = vsel %vm3780, %v3652, %v3908
        %v4037 = vsel %vm3781, %v3653, %v3909
        %v4038 = vsel %vm3782, %v3654, %v3910
        %v4039 = vsel %vm3783, %v3655, %v3911
        %v4040 = vsel %vm3784, %v3656, %v3912
        %v4041 = vsel %vm3785, %v3657, %v3913
        %v4042 = vsel %vm3786, %v3658, %v3914
        %v4043 = vsel %vm3787, %v3659, %v3915
        %v4044 = vsel %vm3788, %v3660, %v3916
        %v4045 = vsel %vm3789, %v3661, %v3917
        %v4046 = vsel %vm3790, %v3662, %v3918
        %v4047 = vsel %vm3791, %v3663, %v3919
        %v4048 = vsel %vm3792, %v3664, %v3920
        %v4049 = vsel %vm3793, %v3665, %v3921
        %v4050 = vsel %vm3794, %v3666, %v3922
        %v4051 = vsel %vm3795, %v3667, %v3923
        %v4052 = vsel %vm3796, %v3668, %v3924
        %v4053 = vsel %vm3797, %v3669, %v3925
        %v4054 = vsel %vm3798, %v3670, %v3926
        %v4055 = vsel %vm3799, %v3671, %v3927
        %v4056 = vsel %vm3800, %v3672, %v3928
        %v4057 = vsel %vm3801, %v3673, %v3929
        %v4058 = vsel %vm3802, %v3674, %v3930
        %v4059 = vsel %vm3803, %v3675, %v3931
        %v4060 = vsel %vm3804, %v3676, %v3932
        %v4061 = vsel %vm3805, %v3677, %v3933
        %v4062 = vsel %vm3806, %v3678, %v3934
        %v4063 = vsel %vm3807, %v3679, %v3935
        %v4064 = vsel %vm3808, %v3680, %v3936
        %v4065 = vsel %vm3809, %v3681, %v3937
        %v4066 = vsel %vm3810, %v3682, %v3938
        %v4067 = vsel %vm3811, %v3683, %v3939
        %v4068 = vsel %vm3812, %v3684, %v3940
        %v4069 = vsel %vm3813, %v3685, %v3941
        %v4070 = vsel %vm3814, %v3686, %v3942
        %v4071 = vsel %vm3815, %v3687, %v3943
        %v4072 = vsel %vm3816, %v3688, %v3944
        %v4073 = vsel %vm3817, %v3689, %v3945
        %v4074 = vsel %vm3818, %v3690, %v3946
        %v4075 = vsel %vm3819, %v3691, %v3947
        %v4076 = vsel %vm3820, %v3692, %v3948
        %v4077 = vsel %vm3821, %v3693, %v3949
        %v4078 = vsel %vm3822, %v3694, %v3950
        %v4079 = vsel %vm3823, %v3695, %v3951
        %v4080 = vadd.f32 %v3952, 1.0
        %v4081 = vadd.f32 %v3953, 1.0
        %v4082 = vadd.f32 %v3954, 1.0
        %v4083 = vadd.f32 %v3955, 1.0
        %v4084 = vadd.f32 %v3956, 1.0
        %v4085 = vadd.f32 %v3957, 1.0
        %v4086 = vadd.f32 %v3958, 1.0
        %v4087 = vadd.f32 %v3959, 1.0
        %v4088 = vadd.f32 %v3960, 1.0
        %v4089 = vadd.f32 %v3961, 1.0
        %v4090 = vadd.f32 %v3962, 1.0
        %v4091 = vadd.f32 %v3963, 1.0
        %v4092 = vadd.f32 %v3964, 1.0
        %v4093 = vadd.f32 %v3965, 1.0
        %v4094 = vadd.f32 %v3966, 1.0
        %v4095 = vadd.f32 %v3967, 1.0
        %v4096 = vadd.f32 %v3968, 1.0
        %v4097 = vadd.f32 %v3969, 1.0
        %v4098 = vadd.f32 %v3970, 1.0
        %v4099 = vadd.f32 %v3971, 1.0
        %v4100 = vadd.f32 %v3972, 1.0
        %v4101 = vadd.f32 %v3973, 1.0
        %v4102 = vadd.f32 %v3974, 1.0
        %v4103 = vadd.f32 %v3975, 1.0
        %v4104 = vadd.f32 %v3976, 1.0
        %v4105 = vadd.f32 %v3977, 1.0
        %v4106 = vadd.f32 %v3978, 1.0
        %v4107 = vadd.f32 %v3979, 1.0
        %v4108 = vadd.f32 %v3980, 1.0
        %v4109 = vadd.f32 %v3981, 1.0
        %v4110 = vadd.f32 %v3982, 1.0
        %v4111 = vadd.f32 %v3983, 1.0
        %v4112 = vadd.f32 %v3984, 1.0
        %v4113 = vadd.f32 %v3985, 1.0
        %v4114 = vadd.f32 %v3986, 1.0
        %v4115 = vadd.f32 %v3987, 1.0
        %v4116 = vadd.f32 %v3988, 1.0
        %v4117 = vadd.f32 %v3989, 1.0
        %v4118 = vadd.f32 %v3990, 1.0
        %v4119 = vadd.f32 %v3991, 1.0
        %v4120 = vadd.f32 %v3992, 1.0
        %v4121 = vadd.f32 %v3993, 1.0
        %v4122 = vadd.f32 %v3994, 1.0
        %v4123 = vadd.f32 %v3995, 1.0
        %v4124 = vadd.f32 %v3996, 1.0
        %v4125 = vadd.f32 %v3997, 1.0
        %v4126 = vadd.f32 %v3998, 1.0
        %v4127 = vadd.f32 %v3999, 1.0
        %v4128 = vadd.f32 %v4000, 1.0
        %v4129 = vadd.f32 %v4001, 1.0
        %v4130 = vadd.f32 %v4002, 1.0
        %v4131 = vadd.f32 %v4003, 1.0
        %v4132 = vadd.f32 %v4004, 1.0
        %v4133 = vadd.f32 %v4005, 1.0
        %v4134 = vadd.f32 %v4006, 1.0
        %v4135 = vadd.f32 %v4007, 1.0
        %v4136 = vadd.f32 %v4008, 1.0
        %v4137 = vadd.f32 %v4009, 1.0
        %v4138 = vadd.f32 %v4010, 1.0
        %v4139 = vadd.f32 %v4011, 1.0
        %v4140 = vadd.f32 %v4012, 1.0
        %v4141 = vadd.f32 %v4013, 1.0
        %v4142 = vadd.f32 %v4014, 1.0
        %v4143 = vadd.f32 %v4015, 1.0
        %v4144 = vadd.f32 %v4016, 1.0
        %v4145 = vadd.f32 %v4017, 1.0
        %v4146 = vadd.f32 %v4018, 1.0
        %v4147 = vadd.f32 %v4019, 1.0
        %v4148 = vadd.f32 %v4020, 1.0
        %v4149 = vadd.f32 %v4021, 1.0
        %v4150 = vadd.f32 %v4022, 1.0
        %v4151 = vadd.f32 %v4023, 1.0
        %v4152 = vadd.f32 %v4024, 1.0
        %v4153 = vadd.f32 %v4025, 1.0
        %v4154 = vadd.f32 %v4026, 1.0
        %v4155 = vadd.f32 %v4027, 1.0
        %v4156 = vadd.f32 %v4028, 1.0
        %v4157 = vadd.f32 %v4029, 1.0
        %v4158 = vadd.f32 %v4030, 1.0
        %v4159 = vadd.f32 %v4031, 1.0
        %v4160 = vadd.f32 %v4032, 1.0
        %v4161 = vadd.f32 %v4033, 1.0
        %v4162 = vadd.f32 %v4034, 1.0
        %v4163 = vadd.f32 %v4035, 1.0
        %v4164 = vadd.f32 %v4036, 1.0
        %v4165 = vadd.f32 %v4037, 1.0
        %v4166 = vadd.f32 %v4038, 1.0
        %v4167 = vadd.f32 %v4039, 1.0
        %v4168 = vadd.f32 %v4040, 1.0
        %v4169 = vadd.f32 %v4041, 1.0
        %v4170 = vadd.f32 %v4042, 1.0
        %v4171 = vadd.f32 %v4043, 1.0
        %v4172 = vadd.f32 %v4044, 1.0
        %v4173 = vadd.f32 %v4045, 1.0
        %v4174 = vadd.f32 %v4046, 1.0
        %v4175 = vadd.f32 %v4047, 1.0
        %v4176 = vadd.f32 %v4048, 1.0
        %v4177 = vadd.f32 %v4049, 1.0
        %v4178 = vadd.f32 %v4050, 1.0
        %v4179 = vadd.f32 %v4051, 1.0
        %v4180 = vadd.f32 %v4052, 1.0
        %v4181 = vadd.f32 %v4053, 1.0
        %v4182 = vadd.f32 %v4054, 1.0
        %v4183 = vadd.f32 %v4055, 1.0
        %v4184 = vadd.f32 %v4056, 1.0
        %v4185 = vadd.f32 %v4057, 1.0
        %v4186 = vadd.f32 %v4058, 1.0
        %v4187 = vadd.f32 %v4059, 1.0
        %v4188 = vadd.f32 %v4060, 1.0
        %v4189 = vadd.f32 %v4061, 1.0
        %v4190 = vadd.f32 %v4062, 1.0
        %v4191 = vadd.f32 %v4063, 1.0
        %v4192 = vadd.f32 %v4064, 1.0
        %v4193 = vadd.f32 %v4065, 1.0
        %v4194 = vadd.f32 %v4066, 1.0
        %v4195 = vadd.f32 %v4067, 1.0
        %v4196 = vadd.f32 %v4068, 1.0
        %v4197 = vadd.f32 %v4069, 1.0
        %v4198 = vadd.f32 %v4070, 1.0
        %v4199 = vadd.f32 %v4071, 1.0
        %v4200 = vadd.f32 %v4072, 1.0
        %v4201 = vadd.f32 %v4073, 1.0
        %v4202 = vadd.f32 %v4074, 1.0
        %v4203 = vadd.f32 %v4075, 1.0
        %v4204 = vadd.f32 %v4076, 1.0
        %v4205 = vadd.f32 %v4077, 1.0
        %v4206 = vadd.f32 %v4078, 1.0
        %v4207 = vadd.f32 %v4079, 1.0
        %v4208 = vmul.f32 %v880, %v4080
        %v4209 = vmul.f32 %v881, %v4081
        %v4210 = vmul.f32 %v882, %v4082
        %v4211 = vmul.f32 %v883, %v4083
        %v4212 = vmul.f32 %v884, %v4084
        %v4213 = vmul.f32 %v885, %v4085
        %v4214 = vmul.f32 %v886, %v4086
        %v4215 = vmul.f32 %v887, %v4087
        %v4216 = vmul.f32 %v888, %v4088
        %v4217 = vmul.f32 %v889, %v4089
        %v4218 = vmul.f32 %v890, %v4090
        %v4219 = vmul.f32 %v891, %v4091
        %v4220 = vmul.f32 %v892, %v4092
        %v4221 = vmul.f32 %v893, %v4093
        %v4222 = vmul.f32 %v894, %v4094
        %v4223 = vmul.f32 %v895, %v4095
        %v4224 = vmul.f32 %v896, %v4096
        %v4225 = vmul.f32 %v897, %v4097
        %v4226 = vmul.f32 %v898, %v4098
        %v4227 = vmul.f32 %v899, %v4099
        %v4228 = vmul.f32 %v900, %v4100
        %v4229 = vmul.f32 %v901, %v4101
        %v4230 = vmul.f32 %v902, %v4102
        %v4231 = vmul.f32 %v903, %v4103
        %v4232 = vmul.f32 %v904, %v4104
        %v4233 = vmul.f32 %v905, %v4105
        %v4234 = vmul.f32 %v906, %v4106
        %v4235 = vmul.f32 %v907, %v4107
        %v4236 = vmul.f32 %v908, %v4108
        %v4237 = vmul.f32 %v909, %v4109
        %v4238 = vmul.f32 %v910, %v4110
        %v4239 = vmul.f32 %v911, %v4111
        %v4240 = vmul.f32 %v912, %v4112
        %v4241 = vmul.f32 %v913, %v4113
        %v4242 = vmul.f32 %v914, %v4114
        %v4243 = vmul.f32 %v915, %v4115
        %v4244 = vmul.f32 %v916, %v4116
        %v4245 = vmul.f32 %v917, %v4117
        %v4246 = vmul.f32 %v918, %v4118
        %v4247 = vmul.f32 %v919, %v4119
        %v4248 = vmul.f32 %v920, %v4120
        %v4249 = vmul.f32 %v921, %v4121
        %v4250 = vmul.f32 %v922, %v4122
        %v4251 = vmul.f32 %v923, %v4123
        %v4252 = vmul.f32 %v924, %v4124
        %v4253 = vmul.f32 %v925, %v4125
        %v4254 = vmul.f32 %v926, %v4126
        %v4255 = vmul.f32 %v927, %v4127
        %v4256 = vmul.f32 %v928, %v4128
        %v4257 = vmul.f32 %v929, %v4129
        %v4258 = vmul.f32 %v930, %v4130
        %v4259 = vmul.f32 %v931, %v4131
        %v4260 = vmul.f32 %v932, %v4132
        %v4261 = vmul.f32 %v933, %v4133
        %v4262 = vmul.f32 %v934, %v4134
        %v4263 = vmul.f32 %v935, %v4135
        %v4264 = vmul.f32 %v936, %v4136
        %v4265 = vmul.f32 %v937, %v4137
        %v4266 = vmul.f32 %v938, %v4138
        %v4267 = vmul.f32 %v939, %v4139
        %v4268 = vmul.f32 %v940, %v4140
        %v4269 = vmul.f32 %v941, %v4141
        %v4270 = vmul.f32 %v942, %v4142
        %v4271 = vmul.f32 %v943, %v4143
        %v4272 = vmul.f32 %v944, %v4144
        %v4273 = vmul.f32 %v945, %v4145
        %v4274 = vmul.f32 %v946, %v4146
        %v4275 = vmul.f32 %v947, %v4147
        %v4276 = vmul.f32 %v948, %v4148
        %v4277 = vmul.f32 %v949, %v4149
        %v4278 = vmul.f32 %v950, %v4150
        %v4279 = vmul.f32 %v951, %v4151
        %v4280 = vmul.f32 %v952, %v4152
        %v4281 = vmul.f32 %v953, %v4153
        %v4282 = vmul.f32 %v954, %v4154
        %v4283 = vmul.f32 %v955, %v4155
        %v4284 = vmul.f32 %v956, %v4156
        %v4285 = vmul.f32 %v957, %v4157
        %v4286 = vmul.f32 %v958, %v4158
        %v4287 = vmul.f32 %v959, %v4159
        %v4288 = vmul.f32 %v960, %v4160
        %v4289 = vmul.f32 %v961, %v4161
        %v4290 = vmul.f32 %v962, %v4162
        %v4291 = vmul.f32 %v963, %v4163
        %v4292 = vmul.f32 %v964, %v4164
        %v4293 = vmul.f32 %v965, %v4165
        %v4294 = vmul.f32 %v966, %v4166
        %v4295 = vmul.f32 %v967, %v4167
        %v4296 = vmul.f32 %v968, %v4168
        %v4297 = vmul.f32 %v969, %v4169
        %v4298 = vmul.f32 %v970, %v4170
        %v4299 = vmul.f32 %v971, %v4171
        %v4300 = vmul.f32 %v972, %v4172
        %v4301 = vmul.f32 %v973, %v4173
        %v4302 = vmul.f32 %v974, %v4174
        %v4303 = vmul.f32 %v975, %v4175
        %v4304 = vmul.f32 %v976, %v4176
        %v4305 = vmul.f32 %v977, %v4177
        %v4306 = vmul.f32 %v978, %v4178
        %v4307 = vmul.f32 %v979, %v4179
        %v4308 = vmul.f32 %v980, %v4180
        %v4309 = vmul.f32 %v981, %v4181
        %v4310 = vmul.f32 %v982, %v4182
        %v4311 = vmul.f32 %v983, %v4183
        %v4312 = vmul.f32 %v984, %v4184
        %v4313 = vmul.f32 %v985, %v4185
        %v4314 = vmul.f32 %v986, %v4186
        %v4315 = vmul.f32 %v987, %v4187
        %v4316 = vmul.f32 %v988, %v4188
        %v4317 = vmul.f32 %v989, %v4189
        %v4318 = vmul.f32 %v990, %v4190
        %v4319 = vmul.f32 %v991, %v4191
        %v4320 = vmul.f32 %v992, %v4192
        %v4321 = vmul.f32 %v993, %v4193
        %v4322 = vmul.f32 %v994, %v4194
        %v4323 = vmul.f32 %v995, %v4195
        %v4324 = vmul.f32 %v996, %v4196
        %v4325 = vmul.f32 %v997, %v4197
        %v4326 = vmul.f32 %v998, %v4198
        %v4327 = vmul.f32 %v999, %v4199
        %v4328 = vmul.f32 %v1000, %v4200
        %v4329 = vmul.f32 %v1001, %v4201
        %v4330 = vmul.f32 %v1002, %v4202
        %v4331 = vmul.f32 %v1003, %v4203
        %v4332 = vmul.f32 %v1004, %v4204
        %v4333 = vmul.f32 %v1005, %v4205
        %v4334 = vmul.f32 %v1006, %v4206
        %v4335 = vmul.f32 %v1007, %v4207
        %v4336 = vld [vmem:[#allocation7] sm:$0xff]
        %v4337 = vld [vmem:[#allocation7 + $0x8] sm:$0xff]
        %v4338 = vld [vmem:[#allocation7 + $0x10] sm:$0xff]
        %v4339 = vld [vmem:[#allocation7 + $0x18] sm:$0xff]
        %v4340 = vld [vmem:[#allocation7 + $0x20] sm:$0xff]
        %v4341 = vld [vmem:[#allocation7 + $0x28] sm:$0xff]
        %v4342 = vld [vmem:[#allocation7 + $0x30] sm:$0xff]
        %v4343 = vld [vmem:[#allocation7 + $0x38] sm:$0xff]
        %v4344 = vld [vmem:[#allocation7 + $0x40] sm:$0xff]
        %v4345 = vld [vmem:[#allocation7 + $0x48] sm:$0xff]
        %v4346 = vld [vmem:[#allocation7 + $0x50] sm:$0xff]
        %v4347 = vld [vmem:[#allocation7 + $0x58] sm:$0xff]
        %v4348 = vld [vmem:[#allocation7 + $0x60] sm:$0xff]
        %v4349 = vld [vmem:[#allocation7 + $0x68] sm:$0xff]
        %v4350 = vld [vmem:[#allocation7 + $0x70] sm:$0xff]
        %v4351 = vld [vmem:[#allocation7 + $0x78] sm:$0xff]
        %v4352 = vld [vmem:[#allocation7 + $0x80] sm:$0xff]
        %v4353 = vld [vmem:[#allocation7 + $0x88] sm:$0xff]
        %v4354 = vld [vmem:[#allocation7 + $0x90] sm:$0xff]
        %v4355 = vld [vmem:[#allocation7 + $0x98] sm:$0xff]
        %v4356 = vld [vmem:[#allocation7 + $0xa0] sm:$0xff]
        %v4357 = vld [vmem:[#allocation7 + $0xa8] sm:$0xff]
        %v4358 = vld [vmem:[#allocation7 + $0xb0] sm:$0xff]
        %v4359 = vld [vmem:[#allocation7 + $0xb8] sm:$0xff]
        %v4360 = vld [vmem:[#allocation7 + $0xc0] sm:$0xff]
        %v4361 = vld [vmem:[#allocation7 + $0xc8] sm:$0xff]
        %v4362 = vld [vmem:[#allocation7 + $0xd0] sm:$0xff]
        %v4363 = vld [vmem:[#allocation7 + $0xd8] sm:$0xff]
        %v4364 = vld [vmem:[#allocation7 + $0xe0] sm:$0xff]
        %v4365 = vld [vmem:[#allocation7 + $0xe8] sm:$0xff]
        %v4366 = vld [vmem:[#allocation7 + $0xf0] sm:$0xff]
        %v4367 = vld [vmem:[#allocation7 + $0xf8] sm:$0xff]
        %v4368 = vld [vmem:[%s4] sm:$0x1]
        %v4370 = vlaneseq
        %v4371 = vshrl.u32 %v4370, 7
        %v4372 = vsub.s32 0, %v4371
        %v4373 = vrot.slane %v4368, %v4372
        %4375 = vmatprep.subr.mxu0 0.0
        %4376 = vmatpush1.msra.mxu0 %v4336
        %4377 = vmatprep.subr.mxu0 0.0
        %4378 = vmatpush1.msra.mxu0 %v4337
        %4379 = vmatprep.subr.mxu0 0.0
        %4380 = vmatpush1.msra.mxu0 %v4338
        %4381 = vmatprep.subr.mxu0 0.0
        %4382 = vmatpush1.msra.mxu0 %v4339
        %4383 = vmatprep.subr.mxu0 0.0
        %4384 = vmatpush1.msra.mxu0 %v4340
        %4385 = vmatprep.subr.mxu0 0.0
        %4386 = vmatpush1.msra.mxu0 %v4341
        %4387 = vmatprep.subr.mxu0 0.0
        %4388 = vmatpush1.msra.mxu0 %v4342
        %4389 = vmatprep.subr.mxu0 0.0
        %4390 = vmatpush1.msra.mxu0 %v4343
        %4391 = vmatprep.subr.mxu0 0.0
        %4392 = vmatpush1.msra.mxu0 %v4344
        %4393 = vmatprep.subr.mxu0 0.0
        %4394 = vmatpush1.msra.mxu0 %v4345
        %4395 = vmatprep.subr.mxu0 0.0
        %4396 = vmatpush1.msra.mxu0 %v4346
        %4397 = vmatprep.subr.mxu0 0.0
        %4398 = vmatpush1.msra.mxu0 %v4347
        %4399 = vmatprep.subr.mxu0 0.0
        %4400 = vmatpush1.msra.mxu0 %v4348
        %4401 = vmatprep.subr.mxu0 0.0
        %4402 = vmatpush1.msra.mxu0 %v4349
        %4403 = vmatprep.subr.mxu0 0.0
        %4404 = vmatpush1.msra.mxu0 %v4350
        %4405 = vmatprep.subr.mxu0 0.0
        %4406 = vmatpush1.msra.mxu0 %v4351
        %4407 = vmatprep.subr.mxu0 0.0
        %4408 = vmatpush1.msra.mxu0 %v4352
        %4409 = vmatprep.subr.mxu0 0.0
        %4410 = vmatpush1.msra.mxu0 %v4353
        %4411 = vmatprep.subr.mxu0 0.0
        %4412 = vmatpush1.msra.mxu0 %v4354
        %4413 = vmatprep.subr.mxu0 0.0
        %4414 = vmatpush1.msra.mxu0 %v4355
        %4415 = vmatprep.subr.mxu0 0.0
        %4416 = vmatpush1.msra.mxu0 %v4356
        %4417 = vmatprep.subr.mxu0 0.0
        %4418 = vmatpush1.msra.mxu0 %v4357
        %4419 = vmatprep.subr.mxu0 0.0
        %4420 = vmatpush1.msra.mxu0 %v4358
        %4421 = vmatprep.subr.mxu0 0.0
        %4422 = vmatpush1.msra.mxu0 %v4359
        %4423 = vmatprep.subr.mxu0 0.0
        %4424 = vmatpush1.msra.mxu0 %v4360
        %4425 = vmatprep.subr.mxu0 0.0
        %4426 = vmatpush1.msra.mxu0 %v4361
        %4427 = vmatprep.subr.mxu0 0.0
        %4428 = vmatpush1.msra.mxu0 %v4362
        %4429 = vmatprep.subr.mxu0 0.0
        %4430 = vmatpush1.msra.mxu0 %v4363
        %4431 = vmatprep.subr.mxu0 0.0
        %4432 = vmatpush1.msra.mxu0 %v4364
        %4433 = vmatprep.subr.mxu0 0.0
        %4434 = vmatpush1.msra.mxu0 %v4365
        %4435 = vmatprep.subr.mxu0 0.0
        %4436 = vmatpush1.msra.mxu0 %v4366
        %4437 = vmatprep.subr.mxu0 0.0
        %4438 = vmatpush1.msra.mxu0 %v4367
        %4439 = vmatprep.mubr.f32.mxu0 %v4209
        %4440 = vmatmul.mubr.f32.gmra.mrb[0].mxu0 %v4208
        %v4441 = vpop.f32.mrb[0].mxu0
        %v4442 = vadd.f32 %v4373, %v4441
        %v4443 = vpop.f32.mrb[0].mxu0
        %4444 = vmatprep.mubr.f32.mxu0 %v4211
        %4445 = vmatmul.mubr.f32.gmra.mrb[0].mxu0 %v4210
        %v4446 = vpop.f32.mrb[0].mxu0
        %v4447 = vadd.f32 %v4373, %v4446
        %v4448 = vpop.f32.mrb[0].mxu0
        %4449 = vmatprep.mubr.f32.mxu0 %v4213
        %4450 = vmatmul.mubr.f32.gmra.mrb[0].mxu0 %v4212
        %v4451 = vpop.f32.mrb[0].mxu0
        %v4452 = vadd.f32 %v4373, %v4451
        %v4453 = vpop.f32.mrb[0].mxu0
        %4454 = vmatprep.mubr.f32.mxu0 %v4215
        %4455 = vmatmul.mubr.f32.gmra.mrb[0].mxu0 %v4214
        %v4456 = vpop.f32.mrb[0].mxu0
        %v4457 = vadd.f32 %v4373, %v4456
        %v4458 = vpop.f32.mrb[0].mxu0
        %4459 = vmatprep.mubr.f32.mxu0 %v4217
        %4460 = vmatmul.mubr.f32.gmra.mrb[0].mxu0 %v4216
        %v4461 = vpop.f32.mrb[0].mxu0
        %v4462 = vadd.f32 %v4373, %v4461
        %v4463 = vpop.f32.mrb[0].mxu0
        %4464 = vmatprep.mubr.f32.mxu0 %v4219
        %4465 = vmatmul.mubr.f32.gmra.mrb[0].mxu0 %v4218
        %v4466 = vpop.f32.mrb[0].mxu0
        %v4467 = vadd.f32 %v4373, %v4466
        %v4468 = vpop.f32.mrb[0].mxu0
        %4469 = vmatprep.mubr.f32.mxu0 %v4221
        %4470 = vmatmul.mubr.f32.gmra.mrb[0].mxu0 %v4220
        %v4471 = vpop.f32.mrb[0].mxu0
        %v4472 = vadd.f32 %v4373, %v4471
        %v4473 = vpop.f32.mrb[0].mxu0
        %4474 = vmatprep.mubr.f32.mxu0 %v4223
        %4475 = vmatmul.mubr.f32.gmra.mrb[0].mxu0 %v4222
        %v4476 = vpop.f32.mrb[0].mxu0
        %v4477 = vadd.f32 %v4373, %v4476
        %v4478 = vpop.f32.mrb[0].mxu0
        %4479 = vmatprep.mubr.f32.mxu0 %v4225
        %4480 = vmatmul.mubr.f32.gmra.mrb[0].mxu0 %v4224
        %v4481 = vpop.f32.mrb[0].mxu0
        %v4482 = vadd.f32 %v4373, %v4481
        %v4483 = vpop.f32.mrb[0].mxu0
        %4484 = vmatprep.mubr.f32.mxu0 %v4227
        %4485 = vmatmul.mubr.f32.gmra.mrb[0].mxu0 %v4226
        %v4486 = vpop.f32.mrb[0].mxu0
        %v4487 = vadd.f32 %v4373, %v4486
        %v4488 = vpop.f32.mrb[0].mxu0
        %4489 = vmatprep.mubr.f32.mxu0 %v4229
        %4490 = vmatmul.mubr.f32.gmra.mrb[0].mxu0 %v4228
        %v4491 = vpop.f32.mrb[0].mxu0
        %v4492 = vadd.f32 %v4373, %v4491
        %v4493 = vpop.f32.mrb[0].mxu0
        %4494 = vmatprep.mubr.f32.mxu0 %v4231
        %4495 = vmatmul.mubr.f32.gmra.mrb[0].mxu0 %v4230
        %v4496 = vpop.f32.mrb[0].mxu0
        %v4497 = vadd.f32 %v4373, %v4496
        %v4498 = vpop.f32.mrb[0].mxu0
        %4499 = vmatprep.mubr.f32.mxu0 %v4233
        %4500 = vmatmul.mubr.f32.gmra.mrb[0].mxu0 %v4232
        %v4501 = vpop.f32.mrb[0].mxu0
        %v4502 = vadd.f32 %v4373, %v4501
        %v4503 = vpop.f32.mrb[0].mxu0
        %4504 = vmatprep.mubr.f32.mxu0 %v4235
        %4505 = vmatmul.mubr.f32.gmra.mrb[0].mxu0 %v4234
        %v4506 = vpop.f32.mrb[0].mxu0
        %v4507 = vadd.f32 %v4373, %v4506
        %v4508 = vpop.f32.mrb[0].mxu0
        %4509 = vmatprep.mubr.f32.mxu0 %v4237
        %4510 = vmatmul.mubr.f32.gmra.mrb[0].mxu0 %v4236
        %v4511 = vpop.f32.mrb[0].mxu0
        %v4512 = vadd.f32 %v4373, %v4511
        %v4513 = vpop.f32.mrb[0].mxu0
        %4514 = vmatprep.mubr.f32.mxu0 %v4239
        %4515 = vmatmul.mubr.f32.gmra.mrb[0].mxu0 %v4238
        %v4516 = vpop.f32.mrb[0].mxu0
        %v4517 = vadd.f32 %v4373, %v4516
        %v4518 = vpop.f32.mrb[0].mxu0
        %4519 = vmatprep.mubr.f32.mxu0 %v4241
        %4520 = vmatmul.mubr.f32.gmra.mrb[0].mxu0 %v4240
        %v4521 = vpop.f32.mrb[0].mxu0
        %v4522 = vadd.f32 %v4373, %v4521
        %v4523 = vpop.f32.mrb[0].mxu0
        %4524 = vmatprep.mubr.f32.mxu0 %v4243
        %4525 = vmatmul.mubr.f32.gmra.mrb[0].mxu0 %v4242
        %v4526 = vpop.f32.mrb[0].mxu0
        %v4527 = vadd.f32 %v4373, %v4526
        %v4528 = vpop.f32.mrb[0].mxu0
        %4529 = vmatprep.mubr.f32.mxu0 %v4245
        %4530 = vmatmul.mubr.f32.gmra.mrb[0].mxu0 %v4244
        %v4531 = vpop.f32.mrb[0].mxu0
        %v4532 = vadd.f32 %v4373, %v4531
        %v4533 = vpop.f32.mrb[0].mxu0
        %4534 = vmatprep.mubr.f32.mxu0 %v4247
        %4535 = vmatmul.mubr.f32.gmra.mrb[0].mxu0 %v4246
        %v4536 = vpop.f32.mrb[0].mxu0
        %v4537 = vadd.f32 %v4373, %v4536
        %v4538 = vpop.f32.mrb[0].mxu0
        %4539 = vmatprep.mubr.f32.mxu0 %v4249
        %4540 = vmatmul.mubr.f32.gmra.mrb[0].mxu0 %v4248
        %v4541 = vpop.f32.mrb[0].mxu0
        %v4542 = vadd.f32 %v4373, %v4541
        %v4543 = vpop.f32.mrb[0].mxu0
        %4544 = vmatprep.mubr.f32.mxu0 %v4251
        %4545 = vmatmul.mubr.f32.gmra.mrb[0].mxu0 %v4250
        %v4546 = vpop.f32.mrb[0].mxu0
        %v4547 = vadd.f32 %v4373, %v4546
        %v4548 = vpop.f32.mrb[0].mxu0
        %4549 = vmatprep.mubr.f32.mxu0 %v4253
        %4550 = vmatmul.mubr.f32.gmra.mrb[0].mxu0 %v4252
        %v4551 = vpop.f32.mrb[0].mxu0
        %v4552 = vadd.f32 %v4373, %v4551
        %v4553 = vpop.f32.mrb[0].mxu0
        %4554 = vmatprep.mubr.f32.mxu0 %v4255
        %4555 = vmatmul.mubr.f32.gmra.mrb[0].mxu0 %v4254
        %v4556 = vpop.f32.mrb[0].mxu0
        %v4557 = vadd.f32 %v4373, %v4556
        %v4558 = vpop.f32.mrb[0].mxu0
        %4559 = vmatprep.mubr.f32.mxu0 %v4257
        %4560 = vmatmul.mubr.f32.gmra.mrb[0].mxu0 %v4256
        %v4561 = vpop.f32.mrb[0].mxu0
        %v4562 = vadd.f32 %v4373, %v4561
        %v4563 = vpop.f32.mrb[0].mxu0
        %4564 = vmatprep.mubr.f32.mxu0 %v4259
        %4565 = vmatmul.mubr.f32.gmra.mrb[0].mxu0 %v4258
        %v4566 = vpop.f32.mrb[0].mxu0
        %v4567 = vadd.f32 %v4373, %v4566
        %v4568 = vpop.f32.mrb[0].mxu0
        %4569 = vmatprep.mubr.f32.mxu0 %v4261
        %4570 = vmatmul.mubr.f32.gmra.mrb[0].mxu0 %v4260
        %v4571 = vpop.f32.mrb[0].mxu0
        %v4572 = vadd.f32 %v4373, %v4571
        %v4573 = vpop.f32.mrb[0].mxu0
        %4574 = vmatprep.mubr.f32.mxu0 %v4263
        %4575 = vmatmul.mubr.f32.gmra.mrb[0].mxu0 %v4262
        %v4576 = vpop.f32.mrb[0].mxu0
        %v4577 = vadd.f32 %v4373, %v4576
        %v4578 = vpop.f32.mrb[0].mxu0
        %4579 = vmatprep.mubr.f32.mxu0 %v4265
        %4580 = vmatmul.mubr.f32.gmra.mrb[0].mxu0 %v4264
        %v4581 = vpop.f32.mrb[0].mxu0
        %v4582 = vadd.f32 %v4373, %v4581
        %v4583 = vpop.f32.mrb[0].mxu0
        %4584 = vmatprep.mubr.f32.mxu0 %v4267
        %4585 = vmatmul.mubr.f32.gmra.mrb[0].mxu0 %v4266
        %v4586 = vpop.f32.mrb[0].mxu0
        %v4587 = vadd.f32 %v4373, %v4586
        %v4588 = vpop.f32.mrb[0].mxu0
        %4589 = vmatprep.mubr.f32.mxu0 %v4269
        %4590 = vmatmul.mubr.f32.gmra.mrb[0].mxu0 %v4268
        %v4591 = vpop.f32.mrb[0].mxu0
        %v4592 = vadd.f32 %v4373, %v4591
        %v4593 = vpop.f32.mrb[0].mxu0
        %4594 = vmatprep.mubr.f32.mxu0 %v4271
        %4595 = vmatmul.mubr.f32.gmra.mrb[0].mxu0 %v4270
        %v4596 = vpop.f32.mrb[0].mxu0
        %v4597 = vadd.f32 %v4373, %v4596
        %v4598 = vpop.f32.mrb[0].mxu0
        %4599 = vmatprep.mubr.f32.mxu0 %v4273
        %4600 = vmatmul.mubr.f32.gmra.mrb[0].mxu0 %v4272
        %v4601 = vpop.f32.mrb[0].mxu0
        %v4602 = vadd.f32 %v4373, %v4601
        %v4603 = vpop.f32.mrb[0].mxu0
        %4604 = vmatprep.mubr.f32.mxu0 %v4275
        %4605 = vmatmul.mubr.f32.gmra.mrb[0].mxu0 %v4274
        %v4606 = vpop.f32.mrb[0].mxu0
        %v4607 = vadd.f32 %v4373, %v4606
        %v4608 = vpop.f32.mrb[0].mxu0
        %4609 = vmatprep.mubr.f32.mxu0 %v4277
        %4610 = vmatmul.mubr.f32.gmra.mrb[0].mxu0 %v4276
        %v4611 = vpop.f32.mrb[0].mxu0
        %v4612 = vadd.f32 %v4373, %v4611
        %v4613 = vpop.f32.mrb[0].mxu0
        %4614 = vmatprep.mubr.f32.mxu0 %v4279
        %4615 = vmatmul.mubr.f32.gmra.mrb[0].mxu0 %v4278
        %v4616 = vpop.f32.mrb[0].mxu0
        %v4617 = vadd.f32 %v4373, %v4616
        %v4618 = vpop.f32.mrb[0].mxu0
        %4619 = vmatprep.mubr.f32.mxu0 %v4281
        %4620 = vmatmul.mubr.f32.gmra.mrb[0].mxu0 %v4280
        %v4621 = vpop.f32.mrb[0].mxu0
        %v4622 = vadd.f32 %v4373, %v4621
        %v4623 = vpop.f32.mrb[0].mxu0
        %4624 = vmatprep.mubr.f32.mxu0 %v4283
        %4625 = vmatmul.mubr.f32.gmra.mrb[0].mxu0 %v4282
        %v4626 = vpop.f32.mrb[0].mxu0
        %v4627 = vadd.f32 %v4373, %v4626
        %v4628 = vpop.f32.mrb[0].mxu0
        %4629 = vmatprep.mubr.f32.mxu0 %v4285
        %4630 = vmatmul.mubr.f32.gmra.mrb[0].mxu0 %v4284
        %v4631 = vpop.f32.mrb[0].mxu0
        %v4632 = vadd.f32 %v4373, %v4631
        %v4633 = vpop.f32.mrb[0].mxu0
        %4634 = vmatprep.mubr.f32.mxu0 %v4287
        %4635 = vmatmul.mubr.f32.gmra.mrb[0].mxu0 %v4286
        %v4636 = vpop.f32.mrb[0].mxu0
        %v4637 = vadd.f32 %v4373, %v4636
        %v4638 = vpop.f32.mrb[0].mxu0
        %4639 = vmatprep.mubr.f32.mxu0 %v4289
        %4640 = vmatmul.mubr.f32.gmra.mrb[0].mxu0 %v4288
        %v4641 = vpop.f32.mrb[0].mxu0
        %v4642 = vadd.f32 %v4373, %v4641
        %v4643 = vpop.f32.mrb[0].mxu0
        %4644 = vmatprep.mubr.f32.mxu0 %v4291
        %4645 = vmatmul.mubr.f32.gmra.mrb[0].mxu0 %v4290
        %v4646 = vpop.f32.mrb[0].mxu0
        %v4647 = vadd.f32 %v4373, %v4646
        %v4648 = vpop.f32.mrb[0].mxu0
        %4649 = vmatprep.mubr.f32.mxu0 %v4293
        %4650 = vmatmul.mubr.f32.gmra.mrb[0].mxu0 %v4292
        %v4651 = vpop.f32.mrb[0].mxu0
        %v4652 = vadd.f32 %v4373, %v4651
        %v4653 = vpop.f32.mrb[0].mxu0
        %4654 = vmatprep.mubr.f32.mxu0 %v4295
        %4655 = vmatmul.mubr.f32.gmra.mrb[0].mxu0 %v4294
        %v4656 = vpop.f32.mrb[0].mxu0
        %v4657 = vadd.f32 %v4373, %v4656
        %v4658 = vpop.f32.mrb[0].mxu0
        %4659 = vmatprep.mubr.f32.mxu0 %v4297
        %4660 = vmatmul.mubr.f32.gmra.mrb[0].mxu0 %v4296
        %v4661 = vpop.f32.mrb[0].mxu0
        %v4662 = vadd.f32 %v4373, %v4661
        %v4663 = vpop.f32.mrb[0].mxu0
        %4664 = vmatprep.mubr.f32.mxu0 %v4299
        %4665 = vmatmul.mubr.f32.gmra.mrb[0].mxu0 %v4298
        %v4666 = vpop.f32.mrb[0].mxu0
        %v4667 = vadd.f32 %v4373, %v4666
        %v4668 = vpop.f32.mrb[0].mxu0
        %4669 = vmatprep.mubr.f32.mxu0 %v4301
        %4670 = vmatmul.mubr.f32.gmra.mrb[0].mxu0 %v4300
        %v4671 = vpop.f32.mrb[0].mxu0
        %v4672 = vadd.f32 %v4373, %v4671
        %v4673 = vpop.f32.mrb[0].mxu0
        %4674 = vmatprep.mubr.f32.mxu0 %v4303
        %4675 = vmatmul.mubr.f32.gmra.mrb[0].mxu0 %v4302
        %v4676 = vpop.f32.mrb[0].mxu0
        %v4677 = vadd.f32 %v4373, %v4676
        %v4678 = vpop.f32.mrb[0].mxu0
        %4679 = vmatprep.mubr.f32.mxu0 %v4305
        %4680 = vmatmul.mubr.f32.gmra.mrb[0].mxu0 %v4304
        %v4681 = vpop.f32.mrb[0].mxu0
        %v4682 = vadd.f32 %v4373, %v4681
        %v4683 = vpop.f32.mrb[0].mxu0
        %4684 = vmatprep.mubr.f32.mxu0 %v4307
        %4685 = vmatmul.mubr.f32.gmra.mrb[0].mxu0 %v4306
        %v4686 = vpop.f32.mrb[0].mxu0
        %v4687 = vadd.f32 %v4373, %v4686
        %v4688 = vpop.f32.mrb[0].mxu0
        %4689 = vmatprep.mubr.f32.mxu0 %v4309
        %4690 = vmatmul.mubr.f32.gmra.mrb[0].mxu0 %v4308
        %v4691 = vpop.f32.mrb[0].mxu0
        %v4692 = vadd.f32 %v4373, %v4691
        %v4693 = vpop.f32.mrb[0].mxu0
        %4694 = vmatprep.mubr.f32.mxu0 %v4311
        %4695 = vmatmul.mubr.f32.gmra.mrb[0].mxu0 %v4310
        %v4696 = vpop.f32.mrb[0].mxu0
        %v4697 = vadd.f32 %v4373, %v4696
        %v4698 = vpop.f32.mrb[0].mxu0
        %4699 = vmatprep.mubr.f32.mxu0 %v4313
        %4700 = vmatmul.mubr.f32.gmra.mrb[0].mxu0 %v4312
        %v4701 = vpop.f32.mrb[0].mxu0
        %v4702 = vadd.f32 %v4373, %v4701
        %v4703 = vpop.f32.mrb[0].mxu0
        %4704 = vmatprep.mubr.f32.mxu0 %v4315
        %4705 = vmatmul.mubr.f32.gmra.mrb[0].mxu0 %v4314
        %v4706 = vpop.f32.mrb[0].mxu0
        %v4707 = vadd.f32 %v4373, %v4706
        %v4708 = vpop.f32.mrb[0].mxu0
        %4709 = vmatprep.mubr.f32.mxu0 %v4317
        %4710 = vmatmul.mubr.f32.gmra.mrb[0].mxu0 %v4316
        %v4711 = vpop.f32.mrb[0].mxu0
        %v4712 = vadd.f32 %v4373, %v4711
        %v4713 = vpop.f32.mrb[0].mxu0
        %4714 = vmatprep.mubr.f32.mxu0 %v4319
        %4715 = vmatmul.mubr.f32.gmra.mrb[0].mxu0 %v4318
        %v4716 = vpop.f32.mrb[0].mxu0
        %v4717 = vadd.f32 %v4373, %v4716
        %v4718 = vpop.f32.mrb[0].mxu0
        %4719 = vmatprep.mubr.f32.mxu0 %v4321
        %4720 = vmatmul.mubr.f32.gmra.mrb[0].mxu0 %v4320
        %v4721 = vpop.f32.mrb[0].mxu0
        %v4722 = vadd.f32 %v4373, %v4721
        %v4723 = vpop.f32.mrb[0].mxu0
        %4724 = vmatprep.mubr.f32.mxu0 %v4323
        %4725 = vmatmul.mubr.f32.gmra.mrb[0].mxu0 %v4322
        %v4726 = vpop.f32.mrb[0].mxu0
        %v4727 = vadd.f32 %v4373, %v4726
        %v4728 = vpop.f32.mrb[0].mxu0
        %4729 = vmatprep.mubr.f32.mxu0 %v4325
        %4730 = vmatmul.mubr.f32.gmra.mrb[0].mxu0 %v4324
        %v4731 = vpop.f32.mrb[0].mxu0
        %v4732 = vadd.f32 %v4373, %v4731
        %v4733 = vpop.f32.mrb[0].mxu0
        %4734 = vmatprep.mubr.f32.mxu0 %v4327
        %4735 = vmatmul.mubr.f32.gmra.mrb[0].mxu0 %v4326
        %v4736 = vpop.f32.mrb[0].mxu0
        %v4737 = vadd.f32 %v4373, %v4736
        %v4738 = vpop.f32.mrb[0].mxu0
        %4739 = vmatprep.mubr.f32.mxu0 %v4329
        %4740 = vmatmul.mubr.f32.gmra.mrb[0].mxu0 %v4328
        %v4741 = vpop.f32.mrb[0].mxu0
        %v4742 = vadd.f32 %v4373, %v4741
        %v4743 = vpop.f32.mrb[0].mxu0
        %4744 = vmatprep.mubr.f32.mxu0 %v4331
        %4745 = vmatmul.mubr.f32.gmra.mrb[0].mxu0 %v4330
        %v4746 = vpop.f32.mrb[0].mxu0
        %v4747 = vadd.f32 %v4373, %v4746
        %v4748 = vpop.f32.mrb[0].mxu0
        %4749 = vmatprep.mubr.f32.mxu0 %v4333
        %4750 = vmatmul.mubr.f32.gmra.mrb[0].mxu0 %v4332
        %v4751 = vpop.f32.mrb[0].mxu0
        %v4752 = vadd.f32 %v4373, %v4751
        %v4753 = vpop.f32.mrb[0].mxu0
        %4754 = vmatprep.mubr.f32.mxu0 %v4335
        %4755 = vmatmul.mubr.f32.gmra.mrb[0].mxu0 %v4334
        %v4756 = vpop.f32.mrb[0].mxu0
        %v4757 = vadd.f32 %v4373, %v4756
        %v4758 = vpop.f32.mrb[0].mxu0
        %4759 = vdwg.mxu0
        %4760 = vst [vmem:[%s313] sm:$0xff] %v4442
        %4761 = vst [vmem:[%s313 + $0x8] sm:$0xff] %v4447
        %4762 = vst [vmem:[%s313 + $0x10] sm:$0xff] %v4452
        %4763 = vst [vmem:[%s313 + $0x18] sm:$0xff] %v4457
        %4764 = vst [vmem:[%s313 + $0x20] sm:$0xff] %v4462
        %4765 = vst [vmem:[%s313 + $0x28] sm:$0xff] %v4467
        %4766 = vst [vmem:[%s313 + $0x30] sm:$0xff] %v4472
        %4767 = vst [vmem:[%s313 + $0x38] sm:$0xff] %v4477
        %4768 = vst [vmem:[%s313 + $0x40] sm:$0xff] %v4482
        %4769 = vst [vmem:[%s313 + $0x48] sm:$0xff] %v4487
        %4770 = vst [vmem:[%s313 + $0x50] sm:$0xff] %v4492
        %4771 = vst [vmem:[%s313 + $0x58] sm:$0xff] %v4497
        %4772 = vst [vmem:[%s313 + $0x60] sm:$0xff] %v4502
        %4773 = vst [vmem:[%s313 + $0x68] sm:$0xff] %v4507
        %4774 = vst [vmem:[%s313 + $0x70] sm:$0xff] %v4512
        %4775 = vst [vmem:[%s313 + $0x78] sm:$0xff] %v4517
        %4776 = vst [vmem:[%s313 + $0x80] sm:$0xff] %v4522
        %4777 = vst [vmem:[%s313 + $0x88] sm:$0xff] %v4527
        %4778 = vst [vmem:[%s313 + $0x90] sm:$0xff] %v4532
        %4779 = vst [vmem:[%s313 + $0x98] sm:$0xff] %v4537
        %4780 = vst [vmem:[%s313 + $0xa0] sm:$0xff] %v4542
        %4781 = vst [vmem:[%s313 + $0xa8] sm:$0xff] %v4547
        %4782 = vst [vmem:[%s313 + $0xb0] sm:$0xff] %v4552
        %4783 = vst [vmem:[%s313 + $0xb8] sm:$0xff] %v4557
        %4784 = vst [vmem:[%s313 + $0xc0] sm:$0xff] %v4562
        %4785 = vst [vmem:[%s313 + $0xc8] sm:$0xff] %v4567
        %4786 = vst [vmem:[%s313 + $0xd0] sm:$0xff] %v4572
        %4787 = vst [vmem:[%s313 + $0xd8] sm:$0xff] %v4577
        %4788 = vst [vmem:[%s313 + $0xe0] sm:$0xff] %v4582
        %4789 = vst [vmem:[%s313 + $0xe8] sm:$0xff] %v4587
        %4790 = vst [vmem:[%s313 + $0xf0] sm:$0xff] %v4592
        %4791 = vst [vmem:[%s313 + $0xf8] sm:$0xff] %v4597
        %4792 = vst [vmem:[%s313 + $0x100] sm:$0xff] %v4602
        %4793 = vst [vmem:[%s313 + $0x108] sm:$0xff] %v4607
        %4794 = vst [vmem:[%s313 + $0x110] sm:$0xff] %v4612
        %4795 = vst [vmem:[%s313 + $0x118] sm:$0xff] %v4617
        %4796 = vst [vmem:[%s313 + $0x120] sm:$0xff] %v4622
        %4797 = vst [vmem:[%s313 + $0x128] sm:$0xff] %v4627
        %4798 = vst [vmem:[%s313 + $0x130] sm:$0xff] %v4632
        %4799 = vst [vmem:[%s313 + $0x138] sm:$0xff] %v4637
        %4800 = vst [vmem:[%s313 + $0x140] sm:$0xff] %v4642
        %4801 = vst [vmem:[%s313 + $0x148] sm:$0xff] %v4647
        %4802 = vst [vmem:[%s313 + $0x150] sm:$0xff] %v4652
        %4803 = vst [vmem:[%s313 + $0x158] sm:$0xff] %v4657
        %4804 = vst [vmem:[%s313 + $0x160] sm:$0xff] %v4662
        %4805 = vst [vmem:[%s313 + $0x168] sm:$0xff] %v4667
        %4806 = vst [vmem:[%s313 + $0x170] sm:$0xff] %v4672
        %4807 = vst [vmem:[%s313 + $0x178] sm:$0xff] %v4677
        %4808 = vst [vmem:[%s313 + $0x180] sm:$0xff] %v4682
        %4809 = vst [vmem:[%s313 + $0x188] sm:$0xff] %v4687
        %4810 = vst [vmem:[%s313 + $0x190] sm:$0xff] %v4692
        %4811 = vst [vmem:[%s313 + $0x198] sm:$0xff] %v4697
        %4812 = vst [vmem:[%s313 + $0x1a0] sm:$0xff] %v4702
        %4813 = vst [vmem:[%s313 + $0x1a8] sm:$0xff] %v4707
        %4814 = vst [vmem:[%s313 + $0x1b0] sm:$0xff] %v4712
        %4815 = vst [vmem:[%s313 + $0x1b8] sm:$0xff] %v4717
        %4816 = vst [vmem:[%s313 + $0x1c0] sm:$0xff] %v4722
        %4817 = vst [vmem:[%s313 + $0x1c8] sm:$0xff] %v4727
        %4818 = vst [vmem:[%s313 + $0x1d0] sm:$0xff] %v4732
        %4819 = vst [vmem:[%s313 + $0x1d8] sm:$0xff] %v4737
        %4820 = vst [vmem:[%s313 + $0x1e0] sm:$0xff] %v4742
        %4821 = vst [vmem:[%s313 + $0x1e8] sm:$0xff] %v4747
        %4822 = vst [vmem:[%s313 + $0x1f0] sm:$0xff] %v4752
        %4823 = vst [vmem:[%s313 + $0x1f8] sm:$0xff] %v4757
        %s4824 = sand.u32 %s168, 1
        %s4825 = scalar_lea.sflag [#allocation4], %s4824
        %s4826 = sand.u32 %s168, 1
        %s4827 = smul.addr %s4826, 512
        %s4828 = scalar_lea.vmem [#allocation8], %s4827
        // Predicated region
        $region53: #{feedforward.1} parent=39 // pred_check
          %p4829 = pneg %p178
        $region54: #{feedforward.1} parent=39 // pred_check_branch
          %4831 = sbr.rel (%p4829) target = $region56
        $region55: #{feedforward.1} parent=39 // pred_region
          %s4832 = smul.u32 64, %s27
          %s4834 = ssub.s32 8192, 8192
          %4835 = vsyncadd %s4825, %s4834
          %s4836 = smul.addr %s4832, 128
          %s4837 = scalar_lea.hbm %s5, %s4836
          %s4838 = sshll.u32 %s4828, 4
          %s4839 = int_to_ptr.vmem [resolvable:$true] %s4838
          %4844 = dma.vmem_to_hbm [thread:$0]  %s4839, 8192, %s4837, %s4825, 128, 128, 8
        $region56: #{feedforward.1} parent=39 // pred_fallthru
          _
      $region40: #{feedforward.1} parent=5 // pred_fallthru
        _
      %p4845 = scmp.le.s32.totalorder 2, %s18
      // Predicated region
      $region57: #{feedforward.1} parent=5 // pred_check
        %p4846 = pneg %p4845
      $region58: #{feedforward.1} parent=5 // pred_check_branch
        %4848 = sbr.rel (%p4846) target = $region60
      $region59: #{feedforward.1} parent=5 // pred_region
        %s4849 = ssub.s32 %s18, 2
        // Predicated region
        $region61: #{feedforward.1} parent=59 // pred_check
          %p4850 = pneg %p184
        $region62: #{feedforward.1} parent=59 // pred_check_branch
          %4852 = sbr.rel (%p4850) target = $region64
        $region63: #{feedforward.1} parent=59 // pred_region
          %s4853 = sand.u32 %s169, 1
          %s4854 = scalar_lea.sflag [#allocation4], %s4853
          %s4855 = sand.u32 %s169, 1
          %s4856 = smul.addr %s4855, 512
          %s4857 = scalar_lea.vmem [#allocation8], %s4856
          %4858 = dma.done %s4854, 8192
        $region64: #{feedforward.1} parent=59 // pred_fallthru
          _
      $region60: #{feedforward.1} parent=5 // pred_fallthru
        _
    $region6: #{feedforward.1} parent=1 // loop_footer
      %s22 = sadd.s32 1, %s18
    $region7: #{feedforward.1} parent=1 // loop_footer_branch
      %17 = sbr.rel target = $region3
    $region8: #{feedforward.1} parent=1 // loop_exit
      _
    %4859 = vsyncpa [#allocation3], 1
    %s4860 = scalar_lea.sflag [#allocation3], 1
    %4861 = vsyncpa %s4860, 1
    %4862 = vsyncpa [#allocation6], 1
    %4863 = vsyncpa [#allocation4], 1
    %s4864 = scalar_lea.sflag [#allocation4], 1
    %4865 = vsyncpa %s4864, 1

</llo_original>
